<compile_context>
chip_gen: v5e
topology: v5e:2x2
jax: 0.10.0
libtpu: 0.0.40
codegen_flags: <defaults>
</compile_context>

<pallas_src>
import functools

import jax
import jax.numpy as jnp
import numpy as np
from jax.experimental import pallas as pl
from jax.experimental.pallas import tpu as pltpu


# ----------------------------------------------------------------------------
# Small helpers
# ----------------------------------------------------------------------------
def _round_up(x, m):
    return (x + m - 1) // m * m


def _round_up_channels(c):
    # Narrow layers pad to 128 lanes; wider layers to 256 so each vmatmul
    # fills the 2x256^2 MXU on v6e/v7x.
    return 128 if c <= 128 else _round_up(c, 256)


def _detect_vmem_limit():
    # Generation-aware scoped-VMEM budget: 96 MiB on 128-MiB parts (v5e/v6e),
    # conservative 32 MiB otherwise (v7x only has 64 MiB physical).
    try:
        cap = int(pltpu.get_tpu_info().vmem_capacity_bytes)
    except Exception:
        cap = 0
    return 96 * 2**20 if cap >= 128 * 2**20 else 32 * 2**20


VMEM_LIMIT_BYTES = _detect_vmem_limit()
_ROW_TILE_MAX = 1024 if VMEM_LIMIT_BYTES >= 64 * 2**20 else 512


def _pick_row_tile(m, n_col_blocks=1):
    """Row (sublane) tile.  Prefers a tile that divides M exactly (no padding
    copy) and guarantees >=2 output grid blocks when possible so both v7x
    TensorCores get work under 'parallel' dimension semantics."""
    tm = None
    for cand in (1024, 512, 256, 128, 64, 32, 16):
        if cand <= _ROW_TILE_MAX and m % cand == 0:
            tm = cand
            break
    if tm is None:
        tm = min(256, _round_up(m, 16))
    mp = _round_up(m, tm)
    if n_col_blocks * (mp // tm) < 2 and tm >= 32 and tm % 32 == 0:
        tm //= 2
    return tm, mp


def _pick_k_tile(k):
    for cand in (512, 384, 256, 128):
        if k > cand and k % cand == 0:
            return cand
    return k            # single K block: full extent, no 128-divisibility needed


# ----------------------------------------------------------------------------
# Pallas kernel 1: tiled matmul with fused bias / ReLU-in / ReLU-out / residual
# ----------------------------------------------------------------------------
def _mm_kernel_single(*refs, has_res, relu_in, relu_out):
    """nk == 1 specialisation: no accumulator scratch, no pl.when gates."""
    if has_res:
        a_ref, b_ref, bias_ref, r_ref, o_ref = refs
    else:
        a_ref, b_ref, bias_ref, o_ref = refs
        r_ref = None
    a = a_ref[...]
    if relu_in:
        a = jnp.maximum(a, 0)
    out = jnp.dot(a, b_ref[...], preferred_element_type=jnp.float32)
    out = out + bias_ref[...]
    if has_res:
        out = out + r_ref[...].astype(jnp.float32)
    if relu_out:
        out = jnp.maximum(out, 0.0)
    o_ref[...] = out.astype(o_ref.dtype)


def _mm_kernel_acc(*refs, nk, has_res, relu_in, relu_out):
    """General K-tiled path with an f32 VMEM accumulator."""
    if has_res:
        a_ref, b_ref, bias_ref, r_ref, o_ref, acc_ref = refs
    else:
        a_ref, b_ref, bias_ref, o_ref, acc_ref = refs
        r_ref = None
    k = pl.program_id(2)

    @pl.when(k == 0)
    def _():
        acc_ref[...] = jnp.zeros_like(acc_ref)

    a = a_ref[...]
    if relu_in:
        a = jnp.maximum(a, 0)
    acc_ref[...] += jnp.dot(a, b_ref[...], preferred_element_type=jnp.float32)

    @pl.when(k == nk - 1)
    def _():
        out = acc_ref[...] + bias_ref[...]
        if has_res:
            out = out + r_ref[...].astype(jnp.float32)
        if relu_out:
            out = jnp.maximum(out, 0.0)
        o_ref[...] = out.astype(o_ref.dtype)


def matmul_fused(a, w_p, bias_p, residual=None, relu_in=False, relu_out=False,
                 out_dtype=jnp.bfloat16):
    """a: (M, K) activations; w_p: (K, Np) bf16 pre-packed weights;
    bias_p: (1, Np) f32.  Returns (M, Np) in `out_dtype` (default bf16)."""
    m, k = a.shape
    kw_, np_ = w_p.shape
    assert k == kw_, (k, kw_)

    tn = 256 if np_ % 256 == 0 else 128
    nj = np_ // tn
    tm, mp = _pick_row_tile(m, nj)
    tk = _pick_k_tile(k)
    nk = k // tk

    if a.dtype != jnp.bfloat16:
        a = a.astype(jnp.bfloat16)
    if mp != m:
        a = jnp.pad(a, ((0, mp - m), (0, 0)))

    has_res = residual is not None
    r = None
    if has_res:
        r = residual
        if r.dtype != jnp.bfloat16:
            r = r.astype(jnp.bfloat16)
        if mp != m:
            r = jnp.pad(r, ((0, mp - m), (0, 0)))
        assert r.shape == (mp, np_), (r.shape, (mp, np_))

    if nk == 1:
        in_specs = [pl.BlockSpec((tm, k), lambda i, j: (i, 0)),
                    pl.BlockSpec((k, tn), lambda i, j: (0, j)),
                    pl.BlockSpec((1, tn), lambda i, j: (0, j))]
        operands = [a, w_p, bias_p]
        if has_res:
            in_specs.append(pl.BlockSpec((tm, tn), lambda i, j: (i, j)))
            operands.append(r)
        out = pl.pallas_call(
            functools.partial(_mm_kernel_single, has_res=has_res,
                              relu_in=relu_in, relu_out=relu_out),
            out_shape=jax.ShapeDtypeStruct((mp, np_), out_dtype),
            grid=(mp // tm, nj),
            in_specs=in_specs,
            out_specs=pl.BlockSpec((tm, tn), lambda i, j: (i, j)),
            compiler_params=pltpu.CompilerParams(
                dimension_semantics=("parallel", "parallel"),
                vmem_limit_bytes=VMEM_LIMIT_BYTES),
        )(*operands)
    else:
        in_specs = [pl.BlockSpec((tm, tk), lambda i, j, kk: (i, kk)),
                    pl.BlockSpec((tk, tn), lambda i, j, kk: (kk, j)),
                    pl.BlockSpec((1, tn), lambda i, j, kk: (0, j))]
        operands = [a, w_p, bias_p]
        if has_res:
            in_specs.append(pl.BlockSpec((tm, tn), lambda i, j, kk: (i, j)))
            operands.append(r)
        out = pl.pallas_call(
            functools.partial(_mm_kernel_acc, nk=nk, has_res=has_res,
                              relu_in=relu_in, relu_out=relu_out),
            out_shape=jax.ShapeDtypeStruct((mp, np_), out_dtype),
            grid=(mp // tm, nj, nk),
            in_specs=in_specs,
            out_specs=pl.BlockSpec((tm, tn), lambda i, j, kk: (i, j)),
            scratch_shapes=[pltpu.VMEM((tm, tn), jnp.float32)],
            compiler_params=pltpu.CompilerParams(
                dimension_semantics=("parallel", "parallel", "arbitrary"),
                vmem_limit_bytes=VMEM_LIMIT_BYTES),
        )(*operands)

    if mp != m:
        out = out[:m]
    return out


# ----------------------------------------------------------------------------
# Pallas kernel 2: fused residual block (two chained MXU dots, no HBM bounce)
#   out = [ReLU?]( x + W2 @ ReLU( W1 @ ReLU(x_patches) ) )
# ----------------------------------------------------------------------------
def _resblock_kernel(p_ref, w1_ref, w2_ref, r_ref, o_ref, *, relu_out):
    p = jnp.maximum(p_ref[...], 0)                          # fused pre-ReLU (bf16)
    h = jnp.dot(p, w1_ref[...], preferred_element_type=jnp.float32)
    h = jnp.maximum(h, 0.0).astype(jnp.bfloat16)            # mid ReLU, stays in VMEM
    out = jnp.dot(h, w2_ref[...], preferred_element_type=jnp.float32)
    out = out + r_ref[...].astype(jnp.float32)               # fused skip add
    if relu_out:
        out = jnp.maximum(out, 0.0)
    o_ref[...] = out.astype(o_ref.dtype)


def resblock_fused(x, wp3, wp1, relu_out):
    """x: (N,H,W,Cp) bf16 channel-padded.  Returns same shape bf16."""
    n, h, w_sp, c = x.shape
    cin = wp3['cin']
    xs = x[..., :cin] if c != cin else x
    xp = jnp.pad(xs, ((0, 0), (1, 1), (1, 1), (0, 0)))
    cols = [xp[:, i:i + h, j:j + w_sp, :] for i in range(3) for j in range(3)]
    patches = jnp.concatenate(cols, axis=-1).reshape(n * h * w_sp, 9 * cin)

    m, k1 = patches.shape
    n1 = wp3['w'].shape[1]
    n2 = wp1['w'].shape[1]
    assert c == n2, (c, n2)

    tm, mp = _pick_row_tile(m, 1)
    r_flat = x.reshape(m, c)
    if mp != m:
        patches = jnp.pad(patches, ((0, mp - m), (0, 0)))
        r_flat = jnp.pad(r_flat, ((0, mp - m), (0, 0)))

    out = pl.pallas_call(
        functools.partial(_resblock_kernel, relu_out=relu_out),
        out_shape=jax.ShapeDtypeStruct((mp, n2), jnp.bfloat16),
        grid=(mp // tm,),
        in_specs=[pl.BlockSpec((tm, k1), lambda i: (i, 0)),
                  pl.BlockSpec((k1, n1), lambda i: (0, 0)),
                  pl.BlockSpec((n1, n2), lambda i: (0, 0)),
                  pl.BlockSpec((tm, n2), lambda i: (i, 0))],
        out_specs=pl.BlockSpec((tm, n2), lambda i: (i, 0)),
        compiler_params=pltpu.CompilerParams(
            dimension_semantics=("parallel",),
            vmem_limit_bytes=VMEM_LIMIT_BYTES),
    )(patches, wp3['w'], wp1['w'], r_flat)

    if mp != m:
        out = out[:m]
    return out.reshape(n, h, w_sp, n2)


# ----------------------------------------------------------------------------
# Pallas kernel 3: vector quantization argmin (bf16 cross term on the MXU)
# ----------------------------------------------------------------------------
def _vq_kernel(z_ref, et_ref, e2_ref, idx_ref, *, k_real):
    z = z_ref[...].astype(jnp.bfloat16)                      # (tm, Dp)
    # argmin_k ||z - e_k||^2 == argmin_k (||e_k||^2 - 2 z.e_k); z^2 is constant.
    cross = jnp.dot(z, et_ref[...], preferred_element_type=jnp.float32)  # (tm, Kp)
    d = e2_ref[...] - 2.0 * cross
    col = jax.lax.broadcasted_iota(jnp.int32, d.shape, 1)
    d = jnp.where(col < k_real, d, jnp.float32(1e30))        # mask padded codes
    d_min = jnp.min(d, axis=-1, keepdims=True)
    # argmin with first-occurrence tie-break (matches torch.argmin)
    idx_f = jnp.min(jnp.where(d == d_min, col.astype(jnp.float32),
                              jnp.float32(1e9)), axis=-1, keepdims=True)
    idx_ref[...] = idx_f.astype(jnp.int32)


def vq_lookup_indices(z_flat, codebook_t, codebook_sq, k_real):
    m, dp = z_flat.shape
    _, kp = codebook_t.shape
    tm, mp = _pick_row_tile(m, 1)
    z_p = z_flat if mp == m else jnp.pad(z_flat, ((0, mp - m), (0, 0)))
    idx = pl.pallas_call(
        functools.partial(_vq_kernel, k_real=k_real),
        out_shape=jax.ShapeDtypeStruct((mp, 1), jnp.int32),
        grid=(mp // tm,),
        in_specs=[pl.BlockSpec((tm, dp), lambda i: (i, 0)),
                  pl.BlockSpec((dp, kp), lambda i: (0, 0)),
                  pl.BlockSpec((1, kp), lambda i: (0, 0))],
        out_specs=pl.BlockSpec((tm, 1), lambda i: (i, 0)),
        compiler_params=pltpu.CompilerParams(
            dimension_semantics=("parallel",),
            vmem_limit_bytes=VMEM_LIMIT_BYTES),
    )(z_p, codebook_t, codebook_sq)
    return idx[:m, 0]


# ----------------------------------------------------------------------------
# Conv helpers (thin XLA glue + fused Pallas matmul)
# ----------------------------------------------------------------------------
def conv2d(x, wp, stride=1, pad=0, relu_in=False, relu_out=False,
           residual=None, out_dtype=jnp.bfloat16):
    """x: (N,H,W,C) NHWC bf16, possibly channel-padded; only the first `cin`
    channels are real.  Output channels are padded to a multiple of 128."""
    cout, cin, kh, kw = wp['cout'], wp['cin'], wp['kh'], wp['kw']
    n, h, w_sp, c = x.shape
    if isinstance(pad, int):
        pad = ((pad, pad), (pad, pad))
    (pt, pb), (pleft, pright) = pad
    hout = (h + pt + pb - kh) // stride + 1
    wout = (w_sp + pleft + pright - kw) // stride + 1
    np_ = wp['w'].shape[1]

    if kh == 1 and kw == 1 and stride == 1 and (pt, pb, pleft, pright) == (0, 0, 0, 0):
        # 1x1 fast path: weight K is padded to the activation's channel width,
        # so the channel-padded input feeds the MXU with no slice/copy.
        k_w = wp['w'].shape[0]
        if c == k_w:
            patches = x.reshape(n * h * w_sp, c)
        else:
            xs = x[..., :cin]
            if k_w > cin:
                xs = jnp.pad(xs, ((0, 0), (0, 0), (0, 0), (0, k_w - cin)))
            patches = xs.reshape(n * h * w_sp, k_w)
    else:
        xs = x[..., :cin] if c != cin else x
        xp = jnp.pad(xs, ((0, 0), (pt, pb), (pleft, pright), (0, 0)))
        cols = [xp[:, i:i + stride * hout:stride, j:j + stride * wout:stride, :]
                for i in range(kh) for j in range(kw)]
        patches = jnp.concatenate(cols, axis=-1).reshape(
            n * hout * wout, kh * kw * cin)

    res_flat = None
    if residual is not None:
        res_flat = residual.reshape(n * hout * wout, residual.shape[-1])
    y = matmul_fused(patches, wp['w'], wp['b'], residual=res_flat,
                     relu_in=relu_in, relu_out=relu_out, out_dtype=out_dtype)
    return y.reshape(n, hout, wout, np_)


def conv_transpose2d_s2(x, wp, relu_out=False):
    """ConvTranspose2d(k=4, s=2, p=1) as ONE combined sub-pixel GEMM: a single
    3x3-window patch tensor of the symmetrically padded input times a packed
    (9*cin, 4*cout_p) weight yields all four output phases in one launch."""
    n, h, w_sp, c = x.shape
    cin = wp['cin']
    xs = x[..., :cin] if c != cin else x
    xp = jnp.pad(xs, ((0, 0), (1, 1), (1, 1), (0, 0)))
    cols = [xp[:, i:i + h, j:j + w_sp, :] for i in range(3) for j in range(3)]
    patches = jnp.concatenate(cols, axis=-1).reshape(n * h * w_sp, 9 * cin)

    y = matmul_fused(patches, wp['w'], wp['b'], relu_out=relu_out)  # (M, 4*cout_p)
    cp = wp['cout_p']
    y = y.reshape(n, h, w_sp, 2, 2, cp)                    # (..., phase_r, phase_c, C)
    y = jnp.transpose(y, (0, 1, 3, 2, 4, 5)).reshape(n, 2 * h, 2 * w_sp, cp)
    return y


def residual_stack(x, blocks):
    # ResBlock: x + Conv1x1(ReLU(Conv3x3(ReLU(x)))); stack ends with ReLU.
    nb = len(blocks)
    for bi, (wp3, wp1) in enumerate(blocks):
        last = (bi == nb - 1)
        if (9 * wp3['cin'] <= 2048 and wp3['w'].shape[1] <= 512
                and wp1['w'].shape[1] <= 512):
            x = resblock_fused(x, wp3, wp1, relu_out=last)
        else:  # fallback for very wide configs: two fused-epilogue matmuls
            h = conv2d(x, wp3, stride=1, pad=1, relu_in=True, relu_out=True)
            x = conv2d(h, wp1, stride=1, pad=0, residual=x, relu_out=last)
    return x


# ----------------------------------------------------------------------------
# VQVAE forward
# ----------------------------------------------------------------------------
def vqvae_forward(prep, x_nchw, commitment_cost=0.25):
    x = jnp.transpose(x_nchw, (0, 2, 3, 1)).astype(jnp.bfloat16)   # NCHW -> NHWC bf16

    # --- Encoder ---
    h = conv2d(x, prep['enc1'], stride=2, pad=1, relu_out=True)
    h = conv2d(h, prep['enc2'], stride=2, pad=1, relu_out=True)
    h = conv2d(h, prep['enc3'], stride=1, pad=1)
    h = residual_stack(h, prep['enc_res'])

    # --- pre_vq (1x1 conv, kept f32 for loss fidelity) + VQ ---
    z = conv2d(h, prep['prevq'], stride=1, pad=0, out_dtype=jnp.float32)
    n, hl, wl, dp = z.shape
    d_real = prep['codebook_dim']
    kcb = prep['codebook_size']
    z_flat = z.reshape(n * hl * wl, dp)

    idx = vq_lookup_indices(z_flat, prep['codebook_t'], prep['codebook_sq'], kcb)
    z_r = z_flat[:, :d_real]                                  # (M, D) f32
    q_r = jnp.take(prep['codebook'], idx, axis=0)             # exact f32 codebook rows

    e_latent_loss = jnp.mean((jax.lax.stop_gradient(q_r) - z_r) ** 2)
    q_latent_loss = jnp.mean((q_r - jax.lax.stop_gradient(z_r)) ** 2)
    loss = q_latent_loss + commitment_cost * e_latent_loss

    quant_st = z_r + jax.lax.stop_gradient(q_r - z_r)         # straight-through
    one_hot = jax.nn.one_hot(idx, kcb, dtype=jnp.float32)
    avg_probs = jnp.mean(one_hot, axis=0)
    perplexity = jnp.exp(-jnp.sum(avg_probs * jnp.log(avg_probs + 1e-10)))

    qs = quant_st.reshape(n, hl, wl, d_real)                  # f32 quantized latents

    # --- Decoder ---
    dec = conv2d(qs.astype(jnp.bfloat16), prep['dec1'], stride=1, pad=1)
    dec = residual_stack(dec, prep['dec_res'])
    dec = conv_transpose2d_s2(dec, prep['dect1'], relu_out=True)
    dec = conv_transpose2d_s2(dec, prep['dect2'], relu_out=False)

    recon = jnp.transpose(dec[..., :prep['in_channels']],
                          (0, 3, 1, 2)).astype(jnp.float32)
    vq_result = {
        'quantize': jnp.transpose(qs, (0, 3, 1, 2)),          # b c h w, f32
        'loss': loss,
        'encoding_indices': idx.reshape(n, hl, wl),
        'perplexity': perplexity,
    }
    return recon, vq_result


# ----------------------------------------------------------------------------
# Parameter init (torch layouts) + one-time packing into bf16 GEMM form
# ----------------------------------------------------------------------------
def init_params(key, in_channels, num_channels, num_residual_blocks,
                num_residual_channels, codebook_size, codebook_dim):
    keys = iter(jax.random.split(key, 64))

    def w(shape, scale=0.1):
        return jax.random.normal(next(keys), shape, jnp.float32) * scale

    def b(nn):
        return jnp.zeros((nn,), jnp.float32)

    nc, nrc = num_channels, num_residual_channels
    p = {}
    # Encoder
    p['enc1_w'] = w((nc // 2, in_channels, 4, 4)); p['enc1_b'] = b(nc // 2)
    p['enc2_w'] = w((nc, nc // 2, 4, 4));          p['enc2_b'] = b(nc)
    p['enc3_w'] = w((nc, nc, 3, 3));               p['enc3_b'] = b(nc)
    p['enc_res'] = [(w((nrc, nc, 3, 3)), w((nc, nrc, 1, 1)))
                    for _ in range(num_residual_blocks)]
    # pre_vq + codebook
    p['prevq_w'] = w((codebook_dim, nc, 1, 1));    p['prevq_b'] = b(codebook_dim)
    p['codebook'] = w((codebook_size, codebook_dim), scale=1.0)
    # Decoder
    p['dec1_w'] = w((nc, codebook_dim, 3, 3));     p['dec1_b'] = b(nc)
    p['dec_res'] = [(w((nrc, nc, 3, 3)), w((nc, nrc, 1, 1)))
                    for _ in range(num_residual_blocks)]
    p['dect1_w'] = w((nc, nc // 2, 4, 4));         p['dect1_b'] = b(nc // 2)   # (Cin,Cout,4,4)
    p['dect2_w'] = w((nc // 2, in_channels, 4, 4)); p['dect2_b'] = b(in_channels)
    return p


def _prep_conv(w, b):
    """Torch Conv2d weight (Cout,Cin,kh,kw) -> packed bf16 GEMM matrix.
    1x1 convs pad K to the channel-padded activation width (no-slice path);
    spatial convs keep K = kh*kw*cin exactly (full-extent block, no pad)."""
    w = np.asarray(w, np.float32)
    cout, cin, kh, kw = w.shape
    k_real = kh * kw * cin
    k = _round_up_channels(cin) if (kh == 1 and kw == 1) else k_real
    np_ = _round_up_channels(cout)
    wm = np.zeros((k, np_), np.float32)
    wm[:k_real, :cout] = np.transpose(w, (2, 3, 1, 0)).reshape(k_real, cout)
    bias = np.zeros((1, np_), np.float32)
    if b is not None:
        bias[0, :cout] = np.asarray(b, np.float32)
    return {'w': jnp.asarray(wm, jnp.bfloat16), 'b': jnp.asarray(bias),
            'cout': int(cout), 'cin': int(cin), 'kh': int(kh), 'kw': int(kw)}


def _prep_convt4x2(w, b):
    """Torch ConvTranspose2d weight (Cin,Cout,4,4), stride=2, padding=1 ->
    combined (9*cin, 4*cout_p) GEMM matrix over a 3x3 window of the
    symmetrically padded input, producing all four sub-pixel phases at once.
    Phase r uses window rows {r, r+1} with original taps SEL[r]=(3,1)/(2,0)."""
    w = np.asarray(w, np.float32)
    cin, cout = w.shape[0], w.shape[1]
    cout_p = _round_up_channels(cout)
    sel = ((3, 1), (2, 0))
    wc = np.zeros((9 * cin, 4 * cout_p), np.float32)
    for r in (0, 1):
        for c in (0, 1):
            ph = r * 2 + c
            for da in (0, 1):
                for db in (0, 1):
                    a, bb = r + da, c + db
                    kh, kw = sel[r][da], sel[c][db]
                    row0 = (a * 3 + bb) * cin
                    wc[row0:row0 + cin, ph * cout_p:ph * cout_p + cout] = w[:, :, kh, kw]
    bias = np.zeros((1, 4 * cout_p), np.float32)
    if b is not None:
        bv = np.asarray(b, np.float32)
        for ph in range(4):
            bias[0, ph * cout_p:ph * cout_p + cout] = bv
    return {'w': jnp.asarray(wc, jnp.bfloat16), 'b': jnp.asarray(bias),
            'cin': int(cin), 'cout': int(cout), 'cout_p': int(cout_p)}


def prepare_params(p, in_channels, num_channels, num_residual_blocks,
                   num_residual_channels, codebook_size, codebook_dim):
    """One-time (outside jit) padding / packing of all weights & the codebook."""
    prep = {'in_channels': in_channels,
            'codebook_dim': codebook_dim,
            'codebook_size': codebook_size}
    prep['enc1'] = _prep_conv(p['enc1_w'], p['enc1_b'])
    prep['enc2'] = _prep_conv(p['enc2_w'], p['enc2_b'])
    prep['enc3'] = _prep_conv(p['enc3_w'], p['enc3_b'])
    prep['enc_res'] = [(_prep_conv(w1, None), _prep_conv(w2, None))
                       for (w1, w2) in p['enc_res']]
    prep['prevq'] = _prep_conv(p['prevq_w'], p['prevq_b'])

    cb = np.asarray(p['codebook'], np.float32)                # (K, D)
    kcb, d = cb.shape
    kp, dp = _round_up(kcb, 128), _round_up(d, 128)
    cb_pad = np.zeros((kp, dp), np.float32)
    cb_pad[:kcb, :d] = cb
    cb_bf = jnp.asarray(cb_pad, jnp.bfloat16)
    prep['codebook'] = jnp.asarray(cb)                        # exact f32, for gather
    prep['codebook_t'] = jnp.asarray(jnp.transpose(cb_bf))    # (Dp, Kp) bf16 for MXU
    prep['codebook_sq'] = jnp.sum(cb_bf.astype(jnp.float32) ** 2,
                                  axis=-1).reshape(1, kp)

    prep['dec1'] = _prep_conv(p['dec1_w'], p['dec1_b'])
    prep['dec_res'] = [(_prep_conv(w1, None), _prep_conv(w2, None))
                       for (w1, w2) in p['dec_res']]
    prep['dect1'] = _prep_convt4x2(p['dect1_w'], p['dect1_b'])
    prep['dect2'] = _prep_convt4x2(p['dect2_w'], p['dect2_b'])
    return prep


if __name__ == "__main__":
    key = jax.random.PRNGKey(0)
    kparam, kx = jax.random.split(key)
    cfg = dict(in_channels=3, num_channels=32, num_residual_blocks=2,
               num_residual_channels=16, codebook_size=32, codebook_dim=8)
    raw_params = init_params(kparam, **cfg)
    prep = prepare_params(raw_params, **cfg)        # pad / pack weights once

    x = jax.random.normal(kx, (2, 3, 16, 16), jnp.float32)

    fwd = jax.jit(lambda inp: vqvae_forward(prep, inp, commitment_cost=0.25))
    recon, vq_result = fwd(x)
    jax.block_until_ready(recon)
    jax.block_until_ready(vq_result['quantize'])
    jax.block_until_ready(vq_result['loss'])
    jax.block_until_ready(vq_result['perplexity'])

    assert recon.shape == (2, 3, 16, 16)
    assert vq_result['quantize'].shape == (2, 8, 4, 4)       # b c h w
    assert vq_result['encoding_indices'].shape == (2, 4, 4)
    print("KERNEL_OK")
</pallas_src>

<mosaic_0001>
module attributes {stable_mosaic.version = 11 : i64} {
  func.func @_mm_kernel_single(%arg0: i32, %arg1: i32, %arg2: memref<64x48xbf16, #tpu.memory_space<vmem>>, %arg3: memref<48x128xbf16, #tpu.memory_space<vmem>>, %arg4: memref<1x128xf32, #tpu.memory_space<vmem>>, %arg5: memref<64x128xbf16, #tpu.memory_space<vmem>>) attributes {dimension_semantics = [#tpu.dimension_semantics<parallel>, #tpu.dimension_semantics<parallel>], iteration_bounds = array<i64: 2, 1>, scalar_prefetch = 0 : i64, scratch_operands = 0 : i64, tpu.core_type = #tpu.core_type<tc>, window_params = [{transform_indices = @transform_0, window_bounds = array<i64: 64, 48>}, {transform_indices = @transform_1, window_bounds = array<i64: 48, 128>}, {transform_indices = @transform_2, window_bounds = array<i64: 1, 128>}, {transform_indices = @transform_3, window_bounds = array<i64: 64, 128>}]} {
    %c0 = arith.constant 0 : index
    %c0_0 = arith.constant 0 : index
    %0 = vector.load %arg2[%c0, %c0_0] : memref<64x48xbf16, #tpu.memory_space<vmem>>, vector<64x48xbf16>
    %c0_1 = arith.constant 0 : index
    %c0_2 = arith.constant 0 : index
    %1 = vector.load %arg3[%c0_1, %c0_2] : memref<48x128xbf16, #tpu.memory_space<vmem>>, vector<48x128xbf16>
    %cst = arith.constant dense<0.000000e+00> : vector<64x128xf32>
    %2 = tpu.matmul %0, %1, %cst {dimension_numbers = #tpu.dot_dimension_numbers<[1], [0], [0], [1], [0, 0, 1, 1], [], []>} : vector<64x48xbf16>, vector<48x128xbf16>, vector<64x128xf32> -> vector<64x128xf32>
    %c0_3 = arith.constant 0 : index
    %c0_4 = arith.constant 0 : index
    %3 = vector.load %arg4[%c0_3, %c0_4] : memref<1x128xf32, #tpu.memory_space<vmem>>, vector<1x128xf32>
    %4 = vector.broadcast %3 : vector<1x128xf32> to vector<64x128xf32>
    %5 = arith.addf %2, %4 : vector<64x128xf32>
    %cst_5 = arith.constant 0.000000e+00 : f32
    %6 = vector.broadcast %cst_5 : f32 to vector<64x128xf32>
    %7 = arith.maximumf %5, %6 : vector<64x128xf32>
    %8 = arith.truncf %7 : vector<64x128xf32> to vector<64x128xbf16>
    %c0_6 = arith.constant 0 : index
    %c0_7 = arith.constant 0 : index
    %9 = vector.load %arg5[%c0_6, %c0_7] : memref<64x128xbf16, #tpu.memory_space<vmem>>, vector<64x128xbf16>
    tpu.vector_store %arg5[%c0_6, %c0_7], %8 {strides = array<i32>} : memref<64x128xbf16, #tpu.memory_space<vmem>>, vector<64x128xbf16>,
    return
  }
  func.func @transform_0(%arg0: i32, %arg1: i32) -> (i32, i32) {
    %c0_i32 = arith.constant 0 : i32
    %c0_i32_0 = arith.constant 0 : i32
    return %arg0, %c0_i32 : i32, i32
  }
  func.func @transform_1(%arg0: i32, %arg1: i32) -> (i32, i32) {
    %c0_i32 = arith.constant 0 : i32
    %c0_i32_0 = arith.constant 0 : i32
    return %c0_i32, %arg1 : i32, i32
  }
  func.func @transform_2(%arg0: i32, %arg1: i32) -> (i32, i32) {
    %c0_i32 = arith.constant 0 : i32
    %c0_i32_0 = arith.constant 0 : i32
    return %c0_i32, %arg1 : i32, i32
  }
  func.func @transform_3(%arg0: i32, %arg1: i32) -> (i32, i32) {
    %c0_i32 = arith.constant 0 : i32
    return %arg0, %arg1 : i32, i32
  }
}

module attributes {stable_mosaic.version = 11 : i64} {
  func.func @_mm_kernel_acc(%arg0: i32, %arg1: i32, %arg2: i32, %arg3: memref<16x128xbf16, #tpu.memory_space<vmem>>, %arg4: memref<128x128xbf16, #tpu.memory_space<vmem>>, %arg5: memref<1x128xf32, #tpu.memory_space<vmem>>, %arg6: memref<16x128xbf16, #tpu.memory_space<vmem>>, %arg7: memref<16x128xf32, #tpu.memory_space<vmem>>) attributes {dimension_semantics = [#tpu.dimension_semantics<parallel>, #tpu.dimension_semantics<parallel>, #tpu.dimension_semantics<arbitrary>], iteration_bounds = array<i64: 2, 1, 2>, scalar_prefetch = 0 : i64, scratch_operands = 1 : i64, tpu.core_type = #tpu.core_type<tc>, window_params = [{transform_indices = @transform_0, window_bounds = array<i64: 16, 128>}, {transform_indices = @transform_1, window_bounds = array<i64: 128, 128>}, {transform_indices = @transform_2, window_bounds = array<i64: 1, 128>}, {transform_indices = @transform_3, window_bounds = array<i64: 16, 128>}]} {
    %c0_i32 = arith.constant 0 : i32
    %0 = arith.cmpi eq, %arg2, %c0_i32 : i32
    %1 = arith.extui %0 : i1 to i32
    %c0_i32_0 = arith.constant 0 : i32
    %2 = arith.cmpi ne, %1, %c0_i32_0 : i32
    scf.if %2 {
      %cst_9 = arith.constant 0.000000e+00 : f32
      %12 = vector.broadcast %cst_9 : f32 to vector<16x128xf32>
      %c0_10 = arith.constant 0 : index
      %c0_11 = arith.constant 0 : index
      %13 = vector.load %arg7[%c0_10, %c0_11] : memref<16x128xf32, #tpu.memory_space<vmem>>, vector<16x128xf32>
      tpu.vector_store %arg7[%c0_10, %c0_11], %12 {strides = array<i32>} : memref<16x128xf32, #tpu.memory_space<vmem>>, vector<16x128xf32>,
    } else {
    }
    %c0 = arith.constant 0 : index
    %c0_1 = arith.constant 0 : index
    %3 = vector.load %arg3[%c0, %c0_1] : memref<16x128xbf16, #tpu.memory_space<vmem>>, vector<16x128xbf16>
    %c0_2 = arith.constant 0 : index
    %c0_3 = arith.constant 0 : index
    %4 = vector.load %arg7[%c0_2, %c0_3] : memref<16x128xf32, #tpu.memory_space<vmem>>, vector<16x128xf32>
    %c0_4 = arith.constant 0 : index
    %c0_5 = arith.constant 0 : index
    %5 = vector.load %arg4[%c0_4, %c0_5] : memref<128x128xbf16, #tpu.memory_space<vmem>>, vector<128x128xbf16>
    %cst = arith.constant dense<0.000000e+00> : vector<16x128xf32>
    %6 = tpu.matmul %3, %5, %cst {dimension_numbers = #tpu.dot_dimension_numbers<[1], [0], [0], [1], [0, 0, 1, 1], [], []>} : vector<16x128xbf16>, vector<128x128xbf16>, vector<16x128xf32> -> vector<16x128xf32>
    %7 = arith.addf %4, %6 : vector<16x128xf32>
    %c0_6 = arith.constant 0 : index
    %c0_7 = arith.constant 0 : index
    %8 = vector.load %arg7[%c0_6, %c0_7] : memref<16x128xf32, #tpu.memory_space<vmem>>, vector<16x128xf32>
    tpu.vector_store %arg7[%c0_6, %c0_7], %7 {strides = array<i32>} : memref<16x128xf32, #tpu.memory_space<vmem>>, vector<16x128xf32>,
    %c1_i32 = arith.constant 1 : i32
    %9 = arith.cmpi eq, %arg2, %c1_i32 : i32
    %10 = arith.extui %9 : i1 to i32
    %c0_i32_8 = arith.constant 0 : i32
    %11 = arith.cmpi ne, %10, %c0_i32_8 : i32
    scf.if %11 {
      %c0_9 = arith.constant 0 : index
      %c0_10 = arith.constant 0 : index
      %12 = vector.load %arg7[%c0_9, %c0_10] : memref<16x128xf32, #tpu.memory_space<vmem>>, vector<16x128xf32>
      %c0_11 = arith.constant 0 : index
      %c0_12 = arith.constant 0 : index
      %13 = vector.load %arg5[%c0_11, %c0_12] : memref<1x128xf32, #tpu.memory_space<vmem>>, vector<1x128xf32>
      %14 = vector.broadcast %13 : vector<1x128xf32> to vector<16x128xf32>
      %15 = arith.addf %12, %14 : vector<16x128xf32>
      %cst_13 = arith.constant 0.000000e+00 : f32
      %16 = vector.broadcast %cst_13 : f32 to vector<16x128xf32>
      %17 = arith.maximumf %15, %16 : vector<16x128xf32>
      %18 = arith.truncf %17 : vector<16x128xf32> to vector<16x128xbf16>
      %c0_14 = arith.constant 0 : index
      %c0_15 = arith.constant 0 : index
      %19 = vector.load %arg6[%c0_14, %c0_15] : memref<16x128xbf16, #tpu.memory_space<vmem>>, vector<16x128xbf16>
      tpu.vector_store %arg6[%c0_14, %c0_15], %18 {strides = array<i32>} : memref<16x128xbf16, #tpu.memory_space<vmem>>, vector<16x128xbf16>,
    } else {
    }
    return
  }
  func.func @transform_0(%arg0: i32, %arg1: i32, %arg2: i32) -> (i32, i32) {
    %c0_i32 = arith.constant 0 : i32
    return %arg0, %arg2 : i32, i32
  }
  func.func @transform_1(%arg0: i32, %arg1: i32, %arg2: i32) -> (i32, i32) {
    %c0_i32 = arith.constant 0 : i32
    return %arg2, %arg1 : i32, i32
  }
  func.func @transform_2(%arg0: i32, %arg1: i32, %arg2: i32) -> (i32, i32) {
    %c0_i32 = arith.constant 0 : i32
    %c0_i32_0 = arith.constant 0 : i32
    return %c0_i32, %arg1 : i32, i32
  }
  func.func @transform_3(%arg0: i32, %arg1: i32, %arg2: i32) -> (i32, i32) {
    %c0_i32 = arith.constant 0 : i32
    return %arg0, %arg1 : i32, i32
  }
}

module attributes {stable_mosaic.version = 11 : i64} {
  func.func @_mm_kernel_single(%arg0: i32, %arg1: i32, %arg2: memref<16x288xbf16, #tpu.memory_space<vmem>>, %arg3: memref<288x128xbf16, #tpu.memory_space<vmem>>, %arg4: memref<1x128xf32, #tpu.memory_space<vmem>>, %arg5: memref<16x128xbf16, #tpu.memory_space<vmem>>) attributes {dimension_semantics = [#tpu.dimension_semantics<parallel>, #tpu.dimension_semantics<parallel>], iteration_bounds = array<i64: 2, 1>, scalar_prefetch = 0 : i64, scratch_operands = 0 : i64, tpu.core_type = #tpu.core_type<tc>, window_params = [{transform_indices = @transform_0, window_bounds = array<i64: 16, 288>}, {transform_indices = @transform_1, window_bounds = array<i64: 288, 128>}, {transform_indices = @transform_2, window_bounds = array<i64: 1, 128>}, {transform_indices = @transform_3, window_bounds = array<i64: 16, 128>}]} {
    %c0 = arith.constant 0 : index
    %c0_0 = arith.constant 0 : index
    %0 = vector.load %arg2[%c0, %c0_0] : memref<16x288xbf16, #tpu.memory_space<vmem>>, vector<16x288xbf16>
    %c0_1 = arith.constant 0 : index
    %c0_2 = arith.constant 0 : index
    %1 = vector.load %arg3[%c0_1, %c0_2] : memref<288x128xbf16, #tpu.memory_space<vmem>>, vector<288x128xbf16>
    %cst = arith.constant dense<0.000000e+00> : vector<16x128xf32>
    %2 = tpu.matmul %0, %1, %cst {dimension_numbers = #tpu.dot_dimension_numbers<[1], [0], [0], [1], [0, 0, 1, 1], [], []>} : vector<16x288xbf16>, vector<288x128xbf16>, vector<16x128xf32> -> vector<16x128xf32>
    %c0_3 = arith.constant 0 : index
    %c0_4 = arith.constant 0 : index
    %3 = vector.load %arg4[%c0_3, %c0_4] : memref<1x128xf32, #tpu.memory_space<vmem>>, vector<1x128xf32>
    %4 = vector.broadcast %3 : vector<1x128xf32> to vector<16x128xf32>
    %5 = arith.addf %2, %4 : vector<16x128xf32>
    %6 = arith.truncf %5 : vector<16x128xf32> to vector<16x128xbf16>
    %c0_5 = arith.constant 0 : index
    %c0_6 = arith.constant 0 : index
    %7 = vector.load %arg5[%c0_5, %c0_6] : memref<16x128xbf16, #tpu.memory_space<vmem>>, vector<16x128xbf16>
    tpu.vector_store %arg5[%c0_5, %c0_6], %6 {strides = array<i32>} : memref<16x128xbf16, #tpu.memory_space<vmem>>, vector<16x128xbf16>,
    return
  }
  func.func @transform_0(%arg0: i32, %arg1: i32) -> (i32, i32) {
    %c0_i32 = arith.constant 0 : i32
    %c0_i32_0 = arith.constant 0 : i32
    return %arg0, %c0_i32 : i32, i32
  }
  func.func @transform_1(%arg0: i32, %arg1: i32) -> (i32, i32) {
    %c0_i32 = arith.constant 0 : i32
    %c0_i32_0 = arith.constant 0 : i32
    return %c0_i32, %arg1 : i32, i32
  }
  func.func @transform_2(%arg0: i32, %arg1: i32) -> (i32, i32) {
    %c0_i32 = arith.constant 0 : i32
    %c0_i32_0 = arith.constant 0 : i32
    return %c0_i32, %arg1 : i32, i32
  }
  func.func @transform_3(%arg0: i32, %arg1: i32) -> (i32, i32) {
    %c0_i32 = arith.constant 0 : i32
    return %arg0, %arg1 : i32, i32
  }
}

module attributes {stable_mosaic.version = 11 : i64} {
  func.func @_resblock_kernel(%arg0: i32, %arg1: memref<16x288xbf16, #tpu.memory_space<vmem>>, %arg2: memref<288x128xbf16, #tpu.memory_space<vmem>>, %arg3: memref<128x128xbf16, #tpu.memory_space<vmem>>, %arg4: memref<16x128xbf16, #tpu.memory_space<vmem>>, %arg5: memref<16x128xbf16, #tpu.memory_space<vmem>>) attributes {dimension_semantics = [#tpu.dimension_semantics<parallel>], iteration_bounds = array<i64: 2>, scalar_prefetch = 0 : i64, scratch_operands = 0 : i64, tpu.core_type = #tpu.core_type<tc>, window_params = [{transform_indices = @transform_0, window_bounds = array<i64: 16, 288>}, {pipeline_mode = #tpu.pipeline_mode<synchronous>, transform_indices = @transform_1, window_bounds = array<i64: 288, 128>}, {pipeline_mode = #tpu.pipeline_mode<synchronous>, transform_indices = @transform_2, window_bounds = array<i64: 128, 128>}, {transform_indices = @transform_3, window_bounds = array<i64: 16, 128>}, {transform_indices = @transform_4, window_bounds = array<i64: 16, 128>}]} {
    %c0 = arith.constant 0 : index
    %c0_0 = arith.constant 0 : index
    %0 = vector.load %arg1[%c0, %c0_0] : memref<16x288xbf16, #tpu.memory_space<vmem>>, vector<16x288xbf16>
    %cst = arith.constant 0.000000e+00 : bf16
    %1 = vector.broadcast %cst : bf16 to vector<16x288xbf16>
    %2 = arith.maximumf %0, %1 : vector<16x288xbf16>
    %c0_1 = arith.constant 0 : index
    %c0_2 = arith.constant 0 : index
    %3 = vector.load %arg2[%c0_1, %c0_2] : memref<288x128xbf16, #tpu.memory_space<vmem>>, vector<288x128xbf16>
    %cst_3 = arith.constant dense<0.000000e+00> : vector<16x128xf32>
    %4 = tpu.matmul %2, %3, %cst_3 {dimension_numbers = #tpu.dot_dimension_numbers<[1], [0], [0], [1], [0, 0, 1, 1], [], []>} : vector<16x288xbf16>, vector<288x128xbf16>, vector<16x128xf32> -> vector<16x128xf32>
    %cst_4 = arith.constant 0.000000e+00 : f32
    %5 = vector.broadcast %cst_4 : f32 to vector<16x128xf32>
    %6 = arith.maximumf %4, %5 : vector<16x128xf32>
    %7 = arith.truncf %6 : vector<16x128xf32> to vector<16x128xbf16>
    %c0_5 = arith.constant 0 : index
    %c0_6 = arith.constant 0 : index
    %8 = vector.load %arg3[%c0_5, %c0_6] : memref<128x128xbf16, #tpu.memory_space<vmem>>, vector<128x128xbf16>
    %cst_7 = arith.constant dense<0.000000e+00> : vector<16x128xf32>
    %9 = tpu.matmul %7, %8, %cst_7 {dimension_numbers = #tpu.dot_dimension_numbers<[1], [0], [0], [1], [0, 0, 1, 1], [], []>} : vector<16x128xbf16>, vector<128x128xbf16>, vector<16x128xf32> -> vector<16x128xf32>
    %c0_8 = arith.constant 0 : index
    %c0_9 = arith.constant 0 : index
    %10 = vector.load %arg4[%c0_8, %c0_9] : memref<16x128xbf16, #tpu.memory_space<vmem>>, vector<16x128xbf16>
    %11 = arith.extf %10 : vector<16x128xbf16> to vector<16x128xf32>
    %12 = arith.addf %9, %11 : vector<16x128xf32>
    %13 = arith.truncf %12 : vector<16x128xf32> to vector<16x128xbf16>
    %c0_10 = arith.constant 0 : index
    %c0_11 = arith.constant 0 : index
    %14 = vector.load %arg5[%c0_10, %c0_11] : memref<16x128xbf16, #tpu.memory_space<vmem>>, vector<16x128xbf16>
    tpu.vector_store %arg5[%c0_10, %c0_11], %13 {strides = array<i32>} : memref<16x128xbf16, #tpu.memory_space<vmem>>, vector<16x128xbf16>,
    return
  }
  func.func @transform_0(%arg0: i32) -> (i32, i32) {
    %c0_i32 = arith.constant 0 : i32
    %c0_i32_0 = arith.constant 0 : i32
    return %arg0, %c0_i32 : i32, i32
  }
  func.func @transform_1(%arg0: i32) -> (i32, i32) {
    %c0_i32 = arith.constant 0 : i32
    %c0_i32_0 = arith.constant 0 : i32
    %c0_i32_1 = arith.constant 0 : i32
    return %c0_i32, %c0_i32_0 : i32, i32
  }
  func.func @transform_2(%arg0: i32) -> (i32, i32) {
    %c0_i32 = arith.constant 0 : i32
    %c0_i32_0 = arith.constant 0 : i32
    %c0_i32_1 = arith.constant 0 : i32
    return %c0_i32, %c0_i32_0 : i32, i32
  }
  func.func @transform_3(%arg0: i32) -> (i32, i32) {
    %c0_i32 = arith.constant 0 : i32
    %c0_i32_0 = arith.constant 0 : i32
    return %arg0, %c0_i32 : i32, i32
  }
  func.func @transform_4(%arg0: i32) -> (i32, i32) {
    %c0_i32 = arith.constant 0 : i32
    %c0_i32_0 = arith.constant 0 : i32
    return %arg0, %c0_i32 : i32, i32
  }
}

module attributes {stable_mosaic.version = 11 : i64} {
  func.func @_resblock_kernel(%arg0: i32, %arg1: memref<16x288xbf16, #tpu.memory_space<vmem>>, %arg2: memref<288x128xbf16, #tpu.memory_space<vmem>>, %arg3: memref<128x128xbf16, #tpu.memory_space<vmem>>, %arg4: memref<16x128xbf16, #tpu.memory_space<vmem>>, %arg5: memref<16x128xbf16, #tpu.memory_space<vmem>>) attributes {dimension_semantics = [#tpu.dimension_semantics<parallel>], iteration_bounds = array<i64: 2>, scalar_prefetch = 0 : i64, scratch_operands = 0 : i64, tpu.core_type = #tpu.core_type<tc>, window_params = [{transform_indices = @transform_0, window_bounds = array<i64: 16, 288>}, {pipeline_mode = #tpu.pipeline_mode<synchronous>, transform_indices = @transform_1, window_bounds = array<i64: 288, 128>}, {pipeline_mode = #tpu.pipeline_mode<synchronous>, transform_indices = @transform_2, window_bounds = array<i64: 128, 128>}, {transform_indices = @transform_3, window_bounds = array<i64: 16, 128>}, {transform_indices = @transform_4, window_bounds = array<i64: 16, 128>}]} {
    %c0 = arith.constant 0 : index
    %c0_0 = arith.constant 0 : index
    %0 = vector.load %arg1[%c0, %c0_0] : memref<16x288xbf16, #tpu.memory_space<vmem>>, vector<16x288xbf16>
    %cst = arith.constant 0.000000e+00 : bf16
    %1 = vector.broadcast %cst : bf16 to vector<16x288xbf16>
    %2 = arith.maximumf %0, %1 : vector<16x288xbf16>
    %c0_1 = arith.constant 0 : index
    %c0_2 = arith.constant 0 : index
    %3 = vector.load %arg2[%c0_1, %c0_2] : memref<288x128xbf16, #tpu.memory_space<vmem>>, vector<288x128xbf16>
    %cst_3 = arith.constant dense<0.000000e+00> : vector<16x128xf32>
    %4 = tpu.matmul %2, %3, %cst_3 {dimension_numbers = #tpu.dot_dimension_numbers<[1], [0], [0], [1], [0, 0, 1, 1], [], []>} : vector<16x288xbf16>, vector<288x128xbf16>, vector<16x128xf32> -> vector<16x128xf32>
    %cst_4 = arith.constant 0.000000e+00 : f32
    %5 = vector.broadcast %cst_4 : f32 to vector<16x128xf32>
    %6 = arith.maximumf %4, %5 : vector<16x128xf32>
    %7 = arith.truncf %6 : vector<16x128xf32> to vector<16x128xbf16>
    %c0_5 = arith.constant 0 : index
    %c0_6 = arith.constant 0 : index
    %8 = vector.load %arg3[%c0_5, %c0_6] : memref<128x128xbf16, #tpu.memory_space<vmem>>, vector<128x128xbf16>
    %cst_7 = arith.constant dense<0.000000e+00> : vector<16x128xf32>
    %9 = tpu.matmul %7, %8, %cst_7 {dimension_numbers = #tpu.dot_dimension_numbers<[1], [0], [0], [1], [0, 0, 1, 1], [], []>} : vector<16x128xbf16>, vector<128x128xbf16>, vector<16x128xf32> -> vector<16x128xf32>
    %c0_8 = arith.constant 0 : index
    %c0_9 = arith.constant 0 : index
    %10 = vector.load %arg4[%c0_8, %c0_9] : memref<16x128xbf16, #tpu.memory_space<vmem>>, vector<16x128xbf16>
    %11 = arith.extf %10 : vector<16x128xbf16> to vector<16x128xf32>
    %12 = arith.addf %9, %11 : vector<16x128xf32>
    %cst_10 = arith.constant 0.000000e+00 : f32
    %13 = vector.broadcast %cst_10 : f32 to vector<16x128xf32>
    %14 = arith.maximumf %12, %13 : vector<16x128xf32>
    %15 = arith.truncf %14 : vector<16x128xf32> to vector<16x128xbf16>
    %c0_11 = arith.constant 0 : index
    %c0_12 = arith.constant 0 : index
    %16 = vector.load %arg5[%c0_11, %c0_12] : memref<16x128xbf16, #tpu.memory_space<vmem>>, vector<16x128xbf16>
    tpu.vector_store %arg5[%c0_11, %c0_12], %15 {strides = array<i32>} : memref<16x128xbf16, #tpu.memory_space<vmem>>, vector<16x128xbf16>,
    return
  }
  func.func @transform_0(%arg0: i32) -> (i32, i32) {
    %c0_i32 = arith.constant 0 : i32
    %c0_i32_0 = arith.constant 0 : i32
    return %arg0, %c0_i32 : i32, i32
  }
  func.func @transform_1(%arg0: i32) -> (i32, i32) {
    %c0_i32 = arith.constant 0 : i32
    %c0_i32_0 = arith.constant 0 : i32
    %c0_i32_1 = arith.constant 0 : i32
    return %c0_i32, %c0_i32_0 : i32, i32
  }
  func.func @transform_2(%arg0: i32) -> (i32, i32) {
    %c0_i32 = arith.constant 0 : i32
    %c0_i32_0 = arith.constant 0 : i32
    %c0_i32_1 = arith.constant 0 : i32
    return %c0_i32, %c0_i32_0 : i32, i32
  }
  func.func @transform_3(%arg0: i32) -> (i32, i32) {
    %c0_i32 = arith.constant 0 : i32
    %c0_i32_0 = arith.constant 0 : i32
    return %arg0, %c0_i32 : i32, i32
  }
  func.func @transform_4(%arg0: i32) -> (i32, i32) {
    %c0_i32 = arith.constant 0 : i32
    %c0_i32_0 = arith.constant 0 : i32
    return %arg0, %c0_i32 : i32, i32
  }
}

module attributes {stable_mosaic.version = 11 : i64} {
  func.func @_mm_kernel_single(%arg0: i32, %arg1: i32, %arg2: memref<16x128xbf16, #tpu.memory_space<vmem>>, %arg3: memref<128x128xbf16, #tpu.memory_space<vmem>>, %arg4: memref<1x128xf32, #tpu.memory_space<vmem>>, %arg5: memref<16x128xf32, #tpu.memory_space<vmem>>) attributes {dimension_semantics = [#tpu.dimension_semantics<parallel>, #tpu.dimension_semantics<parallel>], iteration_bounds = array<i64: 2, 1>, scalar_prefetch = 0 : i64, scratch_operands = 0 : i64, tpu.core_type = #tpu.core_type<tc>, window_params = [{transform_indices = @transform_0, window_bounds = array<i64: 16, 128>}, {transform_indices = @transform_1, window_bounds = array<i64: 128, 128>}, {transform_indices = @transform_2, window_bounds = array<i64: 1, 128>}, {transform_indices = @transform_3, window_bounds = array<i64: 16, 128>}]} {
    %c0 = arith.constant 0 : index
    %c0_0 = arith.constant 0 : index
    %0 = vector.load %arg2[%c0, %c0_0] : memref<16x128xbf16, #tpu.memory_space<vmem>>, vector<16x128xbf16>
    %c0_1 = arith.constant 0 : index
    %c0_2 = arith.constant 0 : index
    %1 = vector.load %arg3[%c0_1, %c0_2] : memref<128x128xbf16, #tpu.memory_space<vmem>>, vector<128x128xbf16>
    %cst = arith.constant dense<0.000000e+00> : vector<16x128xf32>
    %2 = tpu.matmul %0, %1, %cst {dimension_numbers = #tpu.dot_dimension_numbers<[1], [0], [0], [1], [0, 0, 1, 1], [], []>} : vector<16x128xbf16>, vector<128x128xbf16>, vector<16x128xf32> -> vector<16x128xf32>
    %c0_3 = arith.constant 0 : index
    %c0_4 = arith.constant 0 : index
    %3 = vector.load %arg4[%c0_3, %c0_4] : memref<1x128xf32, #tpu.memory_space<vmem>>, vector<1x128xf32>
    %4 = vector.broadcast %3 : vector<1x128xf32> to vector<16x128xf32>
    %5 = arith.addf %2, %4 : vector<16x128xf32>
    %c0_5 = arith.constant 0 : index
    %c0_6 = arith.constant 0 : index
    %6 = vector.load %arg5[%c0_5, %c0_6] : memref<16x128xf32, #tpu.memory_space<vmem>>, vector<16x128xf32>
    tpu.vector_store %arg5[%c0_5, %c0_6], %5 {strides = array<i32>} : memref<16x128xf32, #tpu.memory_space<vmem>>, vector<16x128xf32>,
    return
  }
  func.func @transform_0(%arg0: i32, %arg1: i32) -> (i32, i32) {
    %c0_i32 = arith.constant 0 : i32
    %c0_i32_0 = arith.constant 0 : i32
    return %arg0, %c0_i32 : i32, i32
  }
  func.func @transform_1(%arg0: i32, %arg1: i32) -> (i32, i32) {
    %c0_i32 = arith.constant 0 : i32
    %c0_i32_0 = arith.constant 0 : i32
    return %c0_i32, %arg1 : i32, i32
  }
  func.func @transform_2(%arg0: i32, %arg1: i32) -> (i32, i32) {
    %c0_i32 = arith.constant 0 : i32
    %c0_i32_0 = arith.constant 0 : i32
    return %c0_i32, %arg1 : i32, i32
  }
  func.func @transform_3(%arg0: i32, %arg1: i32) -> (i32, i32) {
    %c0_i32 = arith.constant 0 : i32
    return %arg0, %arg1 : i32, i32
  }
}

module attributes {stable_mosaic.version = 11 : i64} {
  func.func @_vq_kernel(%arg0: i32, %arg1: memref<16x128xf32, #tpu.memory_space<vmem>>, %arg2: memref<128x128xbf16, #tpu.memory_space<vmem>>, %arg3: memref<1x128xf32, #tpu.memory_space<vmem>>, %arg4: memref<16x1xi32, #tpu.memory_space<vmem>>) attributes {dimension_semantics = [#tpu.dimension_semantics<parallel>], iteration_bounds = array<i64: 2>, scalar_prefetch = 0 : i64, scratch_operands = 0 : i64, tpu.core_type = #tpu.core_type<tc>, window_params = [{transform_indices = @transform_0, window_bounds = array<i64: 16, 128>}, {pipeline_mode = #tpu.pipeline_mode<synchronous>, transform_indices = @transform_1, window_bounds = array<i64: 128, 128>}, {pipeline_mode = #tpu.pipeline_mode<synchronous>, transform_indices = @transform_2, window_bounds = array<i64: 1, 128>}, {transform_indices = @transform_3, window_bounds = array<i64: 16, 1>}]} {
    %c0 = arith.constant 0 : index
    %c0_0 = arith.constant 0 : index
    %0 = vector.load %arg1[%c0, %c0_0] : memref<16x128xf32, #tpu.memory_space<vmem>>, vector<16x128xf32>
    %1 = arith.truncf %0 : vector<16x128xf32> to vector<16x128xbf16>
    %c0_1 = arith.constant 0 : index
    %c0_2 = arith.constant 0 : index
    %2 = vector.load %arg2[%c0_1, %c0_2] : memref<128x128xbf16, #tpu.memory_space<vmem>>, vector<128x128xbf16>
    %cst = arith.constant dense<0.000000e+00> : vector<16x128xf32>
    %3 = tpu.matmul %1, %2, %cst {dimension_numbers = #tpu.dot_dimension_numbers<[1], [0], [0], [1], [0, 0, 1, 1], [], []>} : vector<16x128xbf16>, vector<128x128xbf16>, vector<16x128xf32> -> vector<16x128xf32>
    %c0_3 = arith.constant 0 : index
    %c0_4 = arith.constant 0 : index
    %4 = vector.load %arg3[%c0_3, %c0_4] : memref<1x128xf32, #tpu.memory_space<vmem>>, vector<1x128xf32>
    %cst_5 = arith.constant 2.000000e+00 : f32
    %5 = vector.broadcast %cst_5 : f32 to vector<16x128xf32>
    %6 = arith.mulf %5, %3 : vector<16x128xf32>
    %7 = vector.broadcast %4 : vector<1x128xf32> to vector<16x128xf32>
    %8 = arith.subf %7, %6 : vector<16x128xf32>
    %9 = tpu.iota {dimensions = array<i32: 1>} : vector<16x128xi32>
    %c32_i32 = arith.constant 32 : i32
    %10 = vector.broadcast %c32_i32 : i32 to vector<16x128xi32>
    %11 = arith.cmpi slt, %9, %10 : vector<16x128xi32>
    %cst_6 = arith.constant 1.000000e+30 : f32
    %12 = vector.broadcast %cst_6 : f32 to vector<16x128xf32>
    %13 = arith.select %11, %8, %12 : vector<16x128xi1>, vector<16x128xf32>
    %cst_7 = arith.constant dense<0x7F800000> : vector<16xf32>
    %14 = vector.multi_reduction <minimumf>, %13, %cst_7 [1] : vector<16x128xf32> to vector<16xf32>
    %15 = vector.shape_cast %14 : vector<16xf32> to vector<16x1xf32>
    %16 = vector.broadcast %15 : vector<16x1xf32> to vector<16x128xf32>
    %17 = arith.cmpf oeq, %13, %16 : vector<16x128xf32>
    %18 = arith.sitofp %9 : vector<16x128xi32> to vector<16x128xf32>
    %cst_8 = arith.constant 1.000000e+09 : f32
    %19 = vector.broadcast %cst_8 : f32 to vector<16x128xf32>
    %20 = arith.select %17, %18, %19 : vector<16x128xi1>, vector<16x128xf32>
    %cst_9 = arith.constant dense<0x7F800000> : vector<16xf32>
    %21 = vector.multi_reduction <minimumf>, %20, %cst_9 [1] : vector<16x128xf32> to vector<16xf32>
    %22 = vector.shape_cast %21 : vector<16xf32> to vector<16x1xf32>
    %23 = arith.fptosi %22 : vector<16x1xf32> to vector<16x1xi32>
    %c0_10 = arith.constant 0 : index
    %c0_11 = arith.constant 0 : index
    %24 = vector.load %arg4[%c0_10, %c0_11] : memref<16x1xi32, #tpu.memory_space<vmem>>, vector<16x1xi32>
    tpu.vector_store %arg4[%c0_10, %c0_11], %23 {strides = array<i32>} : memref<16x1xi32, #tpu.memory_space<vmem>>, vector<16x1xi32>,
    return
  }
  func.func @transform_0(%arg0: i32) -> (i32, i32) {
    %c0_i32 = arith.constant 0 : i32
    %c0_i32_0 = arith.constant 0 : i32
    return %arg0, %c0_i32 : i32, i32
  }
  func.func @transform_1(%arg0: i32) -> (i32, i32) {
    %c0_i32 = arith.constant 0 : i32
    %c0_i32_0 = arith.constant 0 : i32
    %c0_i32_1 = arith.constant 0 : i32
    return %c0_i32, %c0_i32_0 : i32, i32
  }
  func.func @transform_2(%arg0: i32) -> (i32, i32) {
    %c0_i32 = arith.constant 0 : i32
    %c0_i32_0 = arith.constant 0 : i32
    %c0_i32_1 = arith.constant 0 : i32
    return %c0_i32, %c0_i32_0 : i32, i32
  }
  func.func @transform_3(%arg0: i32) -> (i32, i32) {
    %c0_i32 = arith.constant 0 : i32
    %c0_i32_0 = arith.constant 0 : i32
    return %arg0, %c0_i32 : i32, i32
  }
}

module attributes {stable_mosaic.version = 11 : i64} {
  func.func @_mm_kernel_single(%arg0: i32, %arg1: i32, %arg2: memref<16x72xbf16, #tpu.memory_space<vmem>>, %arg3: memref<72x128xbf16, #tpu.memory_space<vmem>>, %arg4: memref<1x128xf32, #tpu.memory_space<vmem>>, %arg5: memref<16x128xbf16, #tpu.memory_space<vmem>>) attributes {dimension_semantics = [#tpu.dimension_semantics<parallel>, #tpu.dimension_semantics<parallel>], iteration_bounds = array<i64: 2, 1>, scalar_prefetch = 0 : i64, scratch_operands = 0 : i64, tpu.core_type = #tpu.core_type<tc>, window_params = [{transform_indices = @transform_0, window_bounds = array<i64: 16, 72>}, {transform_indices = @transform_1, window_bounds = array<i64: 72, 128>}, {transform_indices = @transform_2, window_bounds = array<i64: 1, 128>}, {transform_indices = @transform_3, window_bounds = array<i64: 16, 128>}]} {
    %c0 = arith.constant 0 : index
    %c0_0 = arith.constant 0 : index
    %0 = vector.load %arg2[%c0, %c0_0] : memref<16x72xbf16, #tpu.memory_space<vmem>>, vector<16x72xbf16>
    %c0_1 = arith.constant 0 : index
    %c0_2 = arith.constant 0 : index
    %1 = vector.load %arg3[%c0_1, %c0_2] : memref<72x128xbf16, #tpu.memory_space<vmem>>, vector<72x128xbf16>
    %cst = arith.constant dense<0.000000e+00> : vector<16x128xf32>
    %2 = tpu.matmul %0, %1, %cst {dimension_numbers = #tpu.dot_dimension_numbers<[1], [0], [0], [1], [0, 0, 1, 1], [], []>} : vector<16x72xbf16>, vector<72x128xbf16>, vector<16x128xf32> -> vector<16x128xf32>
    %c0_3 = arith.constant 0 : index
    %c0_4 = arith.constant 0 : index
    %3 = vector.load %arg4[%c0_3, %c0_4] : memref<1x128xf32, #tpu.memory_space<vmem>>, vector<1x128xf32>
    %4 = vector.broadcast %3 : vector<1x128xf32> to vector<16x128xf32>
    %5 = arith.addf %2, %4 : vector<16x128xf32>
    %6 = arith.truncf %5 : vector<16x128xf32> to vector<16x128xbf16>
    %c0_5 = arith.constant 0 : index
    %c0_6 = arith.constant 0 : index
    %7 = vector.load %arg5[%c0_5, %c0_6] : memref<16x128xbf16, #tpu.memory_space<vmem>>, vector<16x128xbf16>
    tpu.vector_store %arg5[%c0_5, %c0_6], %6 {strides = array<i32>} : memref<16x128xbf16, #tpu.memory_space<vmem>>, vector<16x128xbf16>,
    return
  }
  func.func @transform_0(%arg0: i32, %arg1: i32) -> (i32, i32) {
    %c0_i32 = arith.constant 0 : i32
    %c0_i32_0 = arith.constant 0 : i32
    return %arg0, %c0_i32 : i32, i32
  }
  func.func @transform_1(%arg0: i32, %arg1: i32) -> (i32, i32) {
    %c0_i32 = arith.constant 0 : i32
    %c0_i32_0 = arith.constant 0 : i32
    return %c0_i32, %arg1 : i32, i32
  }
  func.func @transform_2(%arg0: i32, %arg1: i32) -> (i32, i32) {
    %c0_i32 = arith.constant 0 : i32
    %c0_i32_0 = arith.constant 0 : i32
    return %c0_i32, %arg1 : i32, i32
  }
  func.func @transform_3(%arg0: i32, %arg1: i32) -> (i32, i32) {
    %c0_i32 = arith.constant 0 : i32
    return %arg0, %arg1 : i32, i32
  }
}

module attributes {stable_mosaic.version = 11 : i64} {
  func.func @_mm_kernel_single(%arg0: i32, %arg1: i32, %arg2: memref<32x288xbf16, #tpu.memory_space<vmem>>, %arg3: memref<288x256xbf16, #tpu.memory_space<vmem>>, %arg4: memref<1x256xf32, #tpu.memory_space<vmem>>, %arg5: memref<32x256xbf16, #tpu.memory_space<vmem>>) attributes {dimension_semantics = [#tpu.dimension_semantics<parallel>, #tpu.dimension_semantics<parallel>], iteration_bounds = array<i64: 1, 2>, scalar_prefetch = 0 : i64, scratch_operands = 0 : i64, tpu.core_type = #tpu.core_type<tc>, window_params = [{transform_indices = @transform_0, window_bounds = array<i64: 32, 288>}, {transform_indices = @transform_1, window_bounds = array<i64: 288, 256>}, {transform_indices = @transform_2, window_bounds = array<i64: 1, 256>}, {transform_indices = @transform_3, window_bounds = array<i64: 32, 256>}]} {
    %c0 = arith.constant 0 : index
    %c0_0 = arith.constant 0 : index
    %0 = vector.load %arg2[%c0, %c0_0] : memref<32x288xbf16, #tpu.memory_space<vmem>>, vector<32x288xbf16>
    %c0_1 = arith.constant 0 : index
    %c0_2 = arith.constant 0 : index
    %1 = vector.load %arg3[%c0_1, %c0_2] : memref<288x256xbf16, #tpu.memory_space<vmem>>, vector<288x256xbf16>
    %cst = arith.constant dense<0.000000e+00> : vector<32x256xf32>
    %2 = tpu.matmul %0, %1, %cst {dimension_numbers = #tpu.dot_dimension_numbers<[1], [0], [0], [1], [0, 0, 1, 1], [], []>} : vector<32x288xbf16>, vector<288x256xbf16>, vector<32x256xf32> -> vector<32x256xf32>
    %c0_3 = arith.constant 0 : index
    %c0_4 = arith.constant 0 : index
    %3 = vector.load %arg4[%c0_3, %c0_4] : memref<1x256xf32, #tpu.memory_space<vmem>>, vector<1x256xf32>
    %4 = vector.broadcast %3 : vector<1x256xf32> to vector<32x256xf32>
    %5 = arith.addf %2, %4 : vector<32x256xf32>
    %cst_5 = arith.constant 0.000000e+00 : f32
    %6 = vector.broadcast %cst_5 : f32 to vector<32x256xf32>
    %7 = arith.maximumf %5, %6 : vector<32x256xf32>
    %8 = arith.truncf %7 : vector<32x256xf32> to vector<32x256xbf16>
    %c0_6 = arith.constant 0 : index
    %c0_7 = arith.constant 0 : index
    %9 = vector.load %arg5[%c0_6, %c0_7] : memref<32x256xbf16, #tpu.memory_space<vmem>>, vector<32x256xbf16>
    tpu.vector_store %arg5[%c0_6, %c0_7], %8 {strides = array<i32>} : memref<32x256xbf16, #tpu.memory_space<vmem>>, vector<32x256xbf16>,
    return
  }
  func.func @transform_0(%arg0: i32, %arg1: i32) -> (i32, i32) {
    %c0_i32 = arith.constant 0 : i32
    %c0_i32_0 = arith.constant 0 : i32
    return %arg0, %c0_i32 : i32, i32
  }
  func.func @transform_1(%arg0: i32, %arg1: i32) -> (i32, i32) {
    %c0_i32 = arith.constant 0 : i32
    %c0_i32_0 = arith.constant 0 : i32
    return %c0_i32, %arg1 : i32, i32
  }
  func.func @transform_2(%arg0: i32, %arg1: i32) -> (i32, i32) {
    %c0_i32 = arith.constant 0 : i32
    %c0_i32_0 = arith.constant 0 : i32
    return %c0_i32, %arg1 : i32, i32
  }
  func.func @transform_3(%arg0: i32, %arg1: i32) -> (i32, i32) {
    %c0_i32 = arith.constant 0 : i32
    return %arg0, %arg1 : i32, i32
  }
}

module attributes {stable_mosaic.version = 11 : i64} {
  func.func @_mm_kernel_single(%arg0: i32, %arg1: i32, %arg2: memref<128x144xbf16, #tpu.memory_space<vmem>>, %arg3: memref<144x256xbf16, #tpu.memory_space<vmem>>, %arg4: memref<1x256xf32, #tpu.memory_space<vmem>>, %arg5: memref<128x256xbf16, #tpu.memory_space<vmem>>) attributes {dimension_semantics = [#tpu.dimension_semantics<parallel>, #tpu.dimension_semantics<parallel>], iteration_bounds = array<i64: 1, 2>, scalar_prefetch = 0 : i64, scratch_operands = 0 : i64, tpu.core_type = #tpu.core_type<tc>, window_params = [{transform_indices = @transform_0, window_bounds = array<i64: 128, 144>}, {transform_indices = @transform_1, window_bounds = array<i64: 144, 256>}, {transform_indices = @transform_2, window_bounds = array<i64: 1, 256>}, {transform_indices = @transform_3, window_bounds = array<i64: 128, 256>}]} {
    %c0 = arith.constant 0 : index
    %c0_0 = arith.constant 0 : index
    %0 = vector.load %arg2[%c0, %c0_0] : memref<128x144xbf16, #tpu.memory_space<vmem>>, vector<128x144xbf16>
    %c0_1 = arith.constant 0 : index
    %c0_2 = arith.constant 0 : index
    %1 = vector.load %arg3[%c0_1, %c0_2] : memref<144x256xbf16, #tpu.memory_space<vmem>>, vector<144x256xbf16>
    %cst = arith.constant dense<0.000000e+00> : vector<128x256xf32>
    %2 = tpu.matmul %0, %1, %cst {dimension_numbers = #tpu.dot_dimension_numbers<[1], [0], [0], [1], [0, 0, 1, 1], [], []>} : vector<128x144xbf16>, vector<144x256xbf16>, vector<128x256xf32> -> vector<128x256xf32>
    %c0_3 = arith.constant 0 : index
    %c0_4 = arith.constant 0 : index
    %3 = vector.load %arg4[%c0_3, %c0_4] : memref<1x256xf32, #tpu.memory_space<vmem>>, vector<1x256xf32>
    %4 = vector.broadcast %3 : vector<1x256xf32> to vector<128x256xf32>
    %5 = arith.addf %2, %4 : vector<128x256xf32>
    %6 = arith.truncf %5 : vector<128x256xf32> to vector<128x256xbf16>
    %c0_5 = arith.constant 0 : index
    %c0_6 = arith.constant 0 : index
    %7 = vector.load %arg5[%c0_5, %c0_6] : memref<128x256xbf16, #tpu.memory_space<vmem>>, vector<128x256xbf16>
    tpu.vector_store %arg5[%c0_5, %c0_6], %6 {strides = array<i32>} : memref<128x256xbf16, #tpu.memory_space<vmem>>, vector<128x256xbf16>,
    return
  }
  func.func @transform_0(%arg0: i32, %arg1: i32) -> (i32, i32) {
    %c0_i32 = arith.constant 0 : i32
    %c0_i32_0 = arith.constant 0 : i32
    return %arg0, %c0_i32 : i32, i32
  }
  func.func @transform_1(%arg0: i32, %arg1: i32) -> (i32, i32) {
    %c0_i32 = arith.constant 0 : i32
    %c0_i32_0 = arith.constant 0 : i32
    return %c0_i32, %arg1 : i32, i32
  }
  func.func @transform_2(%arg0: i32, %arg1: i32) -> (i32, i32) {
    %c0_i32 = arith.constant 0 : i32
    %c0_i32_0 = arith.constant 0 : i32
    return %c0_i32, %arg1 : i32, i32
  }
  func.func @transform_3(%arg0: i32, %arg1: i32) -> (i32, i32) {
    %c0_i32 = arith.constant 0 : i32
    return %arg0, %arg1 : i32, i32
  }
}

</mosaic_0001>

<llo_original>
// kernel: _lambda_.12
$region0: #{_lambda_.12}
  #allocation0 [shape = 'u32[]', space=smem, size = 0x4, offset = 0x4, fixed_abs, tag = 'smem constant byte address 0x4 - core index']
  #allocation1 [shape = 'u32[72,128]{1,0:T(1,128)}', space=vmem, size = 0x9000, scoped, tag = 'internal scratch']
  %s0 = inlined_call_operand.vmem [shape: bf16[128,48], index: 0, kind: input, shape index: {}]
  %s1 = inlined_call_operand.vmem [shape: bf16[48,128], index: 1, kind: input, shape index: {}]
  %s2 = inlined_call_operand.vmem [shape: f32[1,128], index: 2, kind: input, shape index: {}]
  %s3 = inlined_call_operand.vmem [shape: bf16[128,128], index: 3, kind: output, shape index: {}]
  %s4 = sld [smem:[#allocation0]]
  $region45: #{_lambda_.12} parent=0
    _
  %s6 = ssub.s32 1, %s4
  %s7 = scalar_select 0, %s6, %s4
  loop: start=0, step=1, limit=4
  $region2: #{_lambda_.12} parent=0 // loop_pre_header
    _
  $region3: #{_lambda_.12} parent=0 // loop_header
    %s9 = sphi 0, %s13
    %p10 = scmp.ge.s32.totalorder %s9, 4
    %s16 = sphi 0, %s28
    %s17 = sphi 0, %s24
    %s18 = sphi 0, %s16
    %s19 = sphi 0, %s17
    %s20 = sphi 0, %s18
    %s21 = sphi 0, %s19
    %s31 = sphi 0, %s33
    %s34 = sphi 0, %s31
    %s35 = sphi 0, %s34
    %s51 = sphi 0, %s35
    %s57 = sphi 0, %s59
    %s60 = sphi 0, %s57
    %s61 = sphi 0, %s60
    %s77 = sphi 0, %s61
    %s83 = sphi 0, %s85
    %s86 = sphi 0, %s83
    %s87 = sphi 0, %s86
    %s103 = sphi 0, %s87
    %s111 = sphi 0, %s113
    %s114 = sphi 0, %s111
    %s115 = sphi 0, %s114
    %s131 = sphi 0, %s115
  $region4: #{_lambda_.12} parent=0 // loop_header_branch
    %12 = sbr.rel (%p10) target = $region8
  $region5: #{_lambda_.12} parent=0 // loop_body
    %s14 = ssub.s32 %s9, 1
    %s15 = ssub.s32 %s9, 2
    %s22 = sadd.s32 1, %s17
    %p23 = scmp.ge.s32.totalorder %s22, 1
    %s24 = scalar_select %p23, 0, %s22
    %s25 = sadd.s32 1, %s16
    %s26 = scalar_select %p23, %s25, %s16
    %p27 = scmp.ge.s32.totalorder %s26, 2
    %s28 = scalar_select %p27, 0, %s26
    %s29 = ssub.s32 %s16, %s28
    %p30 = scmp.eq.s32.totalorder %s29, 0
    %s32 = sadd.s32 %s31, 1
    %s33 = scalar_select %p30, %s31, %s32
    %p36 = pneg %p30
    %p37 = scmp.eq.s32.totalorder %s9, 1
    %p38 = por %p36, %p37
    %p39 = scmp.ne.s32.totalorder %s31, %s34
    %p40 = scmp.eq.s32.totalorder %s9, 0
    %p41 = por %p39, %p40
    %p42 = scmp.ne.s32.totalorder %s31, %s34
    %p43 = scmp.eq.s32.totalorder %s14, 1
    %p44 = por %p42, %p43
    %p45 = scmp.ne.s32.totalorder %s34, %s35
    %p46 = scmp.eq.s32.totalorder %s14, 0
    %p47 = por %p45, %p46
    %p48 = scmp.ne.s32.totalorder %s34, %s35
    %p49 = scmp.eq.s32.totalorder %s15, 1
    %p50 = por %p48, %p49
    %p52 = scmp.ne.s32.totalorder %s35, %s51
    %p53 = scmp.eq.s32.totalorder %s15, 0
    %p54 = por %p52, %p53
    %s55 = ssub.s32 %s17, %s24
    %p56 = scmp.eq.s32.totalorder %s55, 0
    %s58 = sadd.s32 %s57, 1
    %s59 = scalar_select %p56, %s57, %s58
    %p62 = pneg %p56
    %p63 = scmp.eq.s32.totalorder %s9, 1
    %p64 = por %p62, %p63
    %p65 = scmp.ne.s32.totalorder %s57, %s60
    %p66 = scmp.eq.s32.totalorder %s9, 0
    %p67 = por %p65, %p66
    %p68 = scmp.ne.s32.totalorder %s57, %s60
    %p69 = scmp.eq.s32.totalorder %s14, 1
    %p70 = por %p68, %p69
    %p71 = scmp.ne.s32.totalorder %s60, %s61
    %p72 = scmp.eq.s32.totalorder %s14, 0
    %p73 = por %p71, %p72
    %p74 = scmp.ne.s32.totalorder %s60, %s61
    %p75 = scmp.eq.s32.totalorder %s15, 1
    %p76 = por %p74, %p75
    %p78 = scmp.ne.s32.totalorder %s61, %s77
    %p79 = scmp.eq.s32.totalorder %s15, 0
    %p80 = por %p78, %p79
    %s81 = ssub.s32 %s17, %s24
    %p82 = scmp.eq.s32.totalorder %s81, 0
    %s84 = sadd.s32 %s83, 1
    %s85 = scalar_select %p82, %s83, %s84
    %p88 = pneg %p82
    %p89 = scmp.eq.s32.totalorder %s9, 1
    %p90 = por %p88, %p89
    %p91 = scmp.ne.s32.totalorder %s83, %s86
    %p92 = scmp.eq.s32.totalorder %s9, 0
    %p93 = por %p91, %p92
    %p94 = scmp.ne.s32.totalorder %s83, %s86
    %p95 = scmp.eq.s32.totalorder %s14, 1
    %p96 = por %p94, %p95
    %p97 = scmp.ne.s32.totalorder %s86, %s87
    %p98 = scmp.eq.s32.totalorder %s14, 0
    %p99 = por %p97, %p98
    %p100 = scmp.ne.s32.totalorder %s86, %s87
    %p101 = scmp.eq.s32.totalorder %s15, 1
    %p102 = por %p100, %p101
    %p104 = scmp.ne.s32.totalorder %s87, %s103
    %p105 = scmp.eq.s32.totalorder %s15, 0
    %p106 = por %p104, %p105
    %s107 = ssub.s32 %s16, %s28
    %s108 = ssub.s32 %s17, %s24
    %s109 = sor.u32 %s107, %s108
    %p110 = scmp.eq.s32.totalorder %s109, 0
    %s112 = sadd.s32 %s111, 1
    %s113 = scalar_select %p110, %s111, %s112
    %p116 = pneg %p110
    %p117 = scmp.eq.s32.totalorder %s9, 1
    %p118 = por %p116, %p117
    %p119 = scmp.ne.s32.totalorder %s111, %s114
    %p120 = scmp.eq.s32.totalorder %s9, 0
    %p121 = por %p119, %p120
    %p122 = scmp.ne.s32.totalorder %s111, %s114
    %p123 = scmp.eq.s32.totalorder %s14, 1
    %p124 = por %p122, %p123
    %p125 = scmp.ne.s32.totalorder %s114, %s115
    %p126 = scmp.eq.s32.totalorder %s14, 0
    %p127 = por %p125, %p126
    %p128 = scmp.ne.s32.totalorder %s114, %s115
    %p129 = scmp.eq.s32.totalorder %s15, 1
    %p130 = por %p128, %p129
    %p132 = scmp.ne.s32.totalorder %s115, %s131
    %p133 = scmp.eq.s32.totalorder %s15, 0
    %p134 = por %p132, %p133
    %p135 = scmp.le.s32.totalorder 1, %s9
    %p136 = scmp.lt.s32.totalorder %s9, 3
    %p137 = pnand %p135, %p136
    %p138 = pneg %p137
    // Predicated region
    $region9: #{_lambda_.12} parent=5 // pred_check
      _
    $region10: #{_lambda_.12} parent=5 // pred_check_branch
      %140 = sbr.rel (%p137) target = $region12
    $region11: #{_lambda_.12} parent=5 // pred_region
      %s141 = ssub.s32 %s9, 1
      // Predicated region
      $region13: #{_lambda_.12} parent=11 // pred_check
        %p142 = pneg %p73
      $region14: #{_lambda_.12} parent=11 // pred_check_branch
        %144 = sbr.rel (%p142) target = $region16
      $region15: #{_lambda_.12} parent=11 // pred_region
        %p145 = scmp.lt.s32.totalorder %s19, 0
        %s146 = scalar_select %p145, %s19, 0
        %s147 = smul.addr %s146, 4
        %s148 = scalar_lea.vmem %s1, %s147
      $region16: #{_lambda_.12} parent=11 // pred_fallthru
        _
      // Predicated region
      $region17: #{_lambda_.12} parent=11 // pred_check
        %p149 = pneg %p99
      $region18: #{_lambda_.12} parent=11 // pred_check_branch
        %151 = sbr.rel (%p149) target = $region20
      $region19: #{_lambda_.12} parent=11 // pred_region
        %p152 = scmp.lt.s32.totalorder %s19, 0
        %s153 = scalar_select %p152, %s19, 0
        %s154 = scalar_lea.vmem %s2, %s153
      $region20: #{_lambda_.12} parent=11 // pred_fallthru
        _
    $region12: #{_lambda_.12} parent=5 // pred_fallthru
      _
    %p155 = scmp.lt.s32.totalorder %s9, 2
    // Predicated region
    $region21: #{_lambda_.12} parent=5 // pred_check
      %p156 = pneg %p155
    $region22: #{_lambda_.12} parent=5 // pred_check_branch
      %158 = sbr.rel (%p156) target = $region24
    $region23: #{_lambda_.12} parent=5 // pred_region
      // Predicated region
      $region25: #{_lambda_.12} parent=23 // pred_check
        %p159 = pneg %p41
      $region26: #{_lambda_.12} parent=23 // pred_check_branch
        %161 = sbr.rel (%p159) target = $region28
      $region27: #{_lambda_.12} parent=23 // pred_region
        %s162 = smul.u32 8, %s16
        %p163 = scmp.lt.s32.totalorder %s162, 15
        %s164 = scalar_select %p163, %s162, 15
        %s165 = smul.addr %s164, 4
        %s166 = scalar_lea.vmem %s0, %s165
        %s167 = smul.u32 8, %s16
      $region28: #{_lambda_.12} parent=23 // pred_fallthru
        _
    $region24: #{_lambda_.12} parent=5 // pred_fallthru
      _
    %p168 = scmp.le.s32.totalorder 1, %s9
    %p169 = scmp.lt.s32.totalorder %s9, 3
    %p170 = pnand %p168, %p169
    %p171 = pneg %p170
    // Predicated region
    $region29: #{_lambda_.12} parent=5 // pred_check
      _
    $region30: #{_lambda_.12} parent=5 // pred_check_branch
      %173 = sbr.rel (%p170) target = $region32
    $region31: #{_lambda_.12} parent=5 // pred_region
      %s174 = ssub.s32 %s9, 1
      %s175 = smul.u32 8, %s18
      %p176 = scmp.lt.s32.totalorder %s175, 15
      %s177 = scalar_select %p176, %s175, 15
      %s178 = smul.addr %s177, 4
      %s179 = scalar_lea.vmem %s0, %s178
      %p180 = pneg %p47
      %p181 = pneg %p44
      %p182 = scmp.lt.s32.totalorder %s19, 0
      %s183 = scalar_select %p182, %s19, 0
      %s184 = smul.addr %s183, 4
      %s185 = scalar_lea.vmem %s1, %s184
      %p186 = pneg %p73
      %p187 = pneg %p70
      %p188 = scmp.lt.s32.totalorder %s19, 0
      %s189 = scalar_select %p188, %s19, 0
      %s190 = scalar_lea.vmem %s2, %s189
      %p191 = pneg %p99
      %p192 = pneg %p96
      %p193 = pneg %p127
      %p194 = pneg %p124
      %s195 = smul.u32 8, %s18
      %p196 = scmp.lt.s32.totalorder %s195, 15
      %s197 = scalar_select %p196, %s195, 15
      %p198 = scmp.lt.s32.totalorder %s19, 0
      %s199 = scalar_select %p198, %s19, 0
      %s200 = sadd.s32 %s199, %s197
      %s201 = smul.addr %s200, 4
      %s202 = scalar_lea.vmem %s3, %s201
      %s203 = smul.u32 8, %s18
      %p204 = scmp.lt.s32.totalorder %s203, 15
      %s205 = scalar_select %p204, %s203, 15
      %s206 = smul.addr %s205, 4
      %s207 = scalar_lea.vmem %s0, %s206
      %s208 = smul.u32 8, %s18
      %p209 = scmp.lt.s32.totalorder %s19, 0
      %s210 = scalar_select %p209, %s19, 0
      %s211 = smul.addr %s210, 4
      %s212 = scalar_lea.vmem %s1, %s211
      %p213 = scmp.lt.s32.totalorder %s19, 0
      %s214 = scalar_select %p213, %s19, 0
      %s215 = scalar_lea.vmem %s2, %s214
      %s216 = smul.u32 8, %s18
      %p217 = scmp.lt.s32.totalorder %s216, 15
      %s218 = scalar_select %p217, %s216, 15
      %p219 = scmp.lt.s32.totalorder %s19, 0
      %s220 = scalar_select %p219, %s19, 0
      %s221 = sadd.s32 %s220, %s218
      %s222 = smul.addr %s221, 4
      %s223 = scalar_lea.vmem %s3, %s222
      %s224 = smul.u32 8, %s18
      %v226 = vld [vmem:[%s207] sm:$0xf]
      %v227 = vld [vmem:[%s207 + $0x4] sm:$0xf]
      %v228 = vld [vmem:[%s207 + $0x8] sm:$0xf]
      %v229 = vld [vmem:[%s207 + $0xc] sm:$0xf]
      %v230 = vld [vmem:[%s207 + $0x10] sm:$0xf]
      %v231 = vld [vmem:[%s207 + $0x14] sm:$0xf]
      %v232 = vld [vmem:[%s207 + $0x18] sm:$0xf]
      %v233 = vld [vmem:[%s207 + $0x1c] sm:$0xf]
      %v234 = vld [vmem:[%s212] sm:$0xf]
      %v235 = vld [vmem:[%s212 + $0x4] sm:$0xf]
      %v236 = vld [vmem:[%s212 + $0x8] sm:$0xf]
      %v237 = vld [vmem:[%s212 + $0xc] sm:$0xf]
      %v238 = vld [vmem:[%s212 + $0x10] sm:$0xf]
      %v239 = vld [vmem:[%s212 + $0x14] sm:$0xf]
      %v240 = vld [vmem:[%s215] sm:$0x1]
      %v242 = vperm.slane %v240, 0
      %v252 = vunpack.c.l.b16 %v226
      %v253 = vunpack.c.l.b16 %v227
      %v254 = vunpack.c.l.b16 %v228
      %v255 = vunpack.c.l.b16 %v229
      %v256 = vunpack.c.l.b16 %v230
      %v257 = vunpack.c.l.b16 %v231
      %v258 = vunpack.c.l.b16 %v232
      %v259 = vunpack.c.l.b16 %v233
      %v260 = vpack.c.b16 %v253, %v252
      %v261 = vpack.c.b16 %v255, %v254
      %v262 = vpack.c.b16 %v257, %v256
      %v263 = vpack.c.b16 %v259, %v258
      %v270 = vunpack.c.l.b16 %v234
      %v271 = vunpack.c.l.b16 %v235
      %v272 = vunpack.c.l.b16 %v236
      %v273 = vunpack.c.l.b16 %v237
      %v274 = vunpack.c.l.b16 %v238
      %v275 = vunpack.c.l.b16 %v239
      %v276 = vpack.c.b16 %v271, %v270
      %v277 = vpack.c.b16 %v273, %v272
      %v278 = vpack.c.b16 %v275, %v274
      %vm282 = vcmask 392192
      %v284 = vsel %vm282, %v260, 0
      %v287 = vsel %vm282, %v261, 0
      %v290 = vsel %vm282, %v262, 0
      %v293 = vsel %vm282, %v263, 0
      %295 = vmatpush.bf16.msra.mxu0 0
      %296 = vmatpush.bf16.msra.mxu0 0
      %297 = vmatpush.bf16.msra.mxu0 0
      %298 = vmatpush.bf16.msra.mxu0 0
      %299 = vmatpush.bf16.msra.mxu0 0
      %300 = vmatpush.bf16.msra.mxu0 %v278
      %301 = vmatpush.bf16.msra.mxu0 %v277
      %302 = vmatpush.bf16.msra.mxu0 %v276
      %303 = vmatmul.bf16.gmra.mxu0 %v284
      %v304 = vpop.f32.mrf.mxu0
      %v305 = vadd.f32 %v242, %v304
      %v306 = vpop.f32.mrf.mxu0
      %v307 = vadd.f32 %v242, %v306
      %308 = vmatmul.bf16.gmra.mxu0 %v287
      %v309 = vpop.f32.mrf.mxu0
      %v310 = vadd.f32 %v242, %v309
      %v311 = vpop.f32.mrf.mxu0
      %v312 = vadd.f32 %v242, %v311
      %313 = vmatmul.bf16.gmra.mxu0 %v290
      %v314 = vpop.f32.mrf.mxu0
      %v315 = vadd.f32 %v242, %v314
      %v316 = vpop.f32.mrf.mxu0
      %v317 = vadd.f32 %v242, %v316
      %318 = vmatmul.bf16.gmra.mxu0 %v293
      %v319 = vpop.f32.mrf.mxu0
      %v320 = vadd.f32 %v242, %v319
      %v321 = vpop.f32.mrf.mxu0
      %v322 = vadd.f32 %v242, %v321
      %323 = vdwg.mxu0
      %v324 = vmax.f32 %v305, 0.0
      %v325 = vmax.f32 %v307, 0.0
      %v326 = vmax.f32 %v310, 0.0
      %v327 = vmax.f32 %v312, 0.0
      %v328 = vmax.f32 %v315, 0.0
      %v329 = vmax.f32 %v317, 0.0
      %v330 = vmax.f32 %v320, 0.0
      %v331 = vmax.f32 %v322, 0.0
      %v332 = vpack.c.bf16 %v324, %v324
      %v333 = vpack.c.bf16 %v325, %v325
      %v334 = vpack.c.bf16 %v326, %v326
      %v335 = vpack.c.bf16 %v327, %v327
      %v336 = vpack.c.bf16 %v328, %v328
      %v337 = vpack.c.bf16 %v329, %v329
      %v338 = vpack.c.bf16 %v330, %v330
      %v339 = vpack.c.bf16 %v331, %v331
      %340 = vst [vmem:[%s223] sm:$0xf] %v332
      %341 = vst [vmem:[%s223 + $0x4] sm:$0xf] %v333
      %342 = vst [vmem:[%s223 + $0x8] sm:$0xf] %v334
      %343 = vst [vmem:[%s223 + $0xc] sm:$0xf] %v335
      %344 = vst [vmem:[%s223 + $0x10] sm:$0xf] %v336
      %345 = vst [vmem:[%s223 + $0x14] sm:$0xf] %v337
      %346 = vst [vmem:[%s223 + $0x18] sm:$0xf] %v338
      %347 = vst [vmem:[%s223 + $0x1c] sm:$0xf] %v339
      %s348 = smul.u32 8, %s18
      %p349 = scmp.lt.s32.totalorder %s348, 15
      %s350 = scalar_select %p349, %s348, 15
      %p351 = scmp.lt.s32.totalorder %s19, 0
      %s352 = scalar_select %p351, %s19, 0
      %s353 = sadd.s32 %s352, %s350
      %s354 = smul.addr %s353, 4
      %s355 = scalar_lea.vmem %s3, %s354
      // Predicated region
      $region33: #{_lambda_.12} parent=31 // pred_check
        %p356 = pneg %p124
      $region34: #{_lambda_.12} parent=31 // pred_check_branch
        %358 = sbr.rel (%p356) target = $region36
      $region35: #{_lambda_.12} parent=31 // pred_region
        %s359 = smul.u32 8, %s18
      $region36: #{_lambda_.12} parent=31 // pred_fallthru
        _
    $region32: #{_lambda_.12} parent=5 // pred_fallthru
      _
    %p360 = scmp.le.s32.totalorder 2, %s9
    // Predicated region
    $region37: #{_lambda_.12} parent=5 // pred_check
      %p361 = pneg %p360
    $region38: #{_lambda_.12} parent=5 // pred_check_branch
      %363 = sbr.rel (%p361) target = $region40
    $region39: #{_lambda_.12} parent=5 // pred_region
      %s364 = ssub.s32 %s9, 2
      // Predicated region
      $region41: #{_lambda_.12} parent=39 // pred_check
        %p365 = pneg %p130
      $region42: #{_lambda_.12} parent=39 // pred_check_branch
        %367 = sbr.rel (%p365) target = $region44
      $region43: #{_lambda_.12} parent=39 // pred_region
        %s368 = smul.u32 8, %s20
        %p369 = scmp.lt.s32.totalorder %s368, 15
        %s370 = scalar_select %p369, %s368, 15
        %p371 = scmp.lt.s32.totalorder %s21, 0
        %s372 = scalar_select %p371, %s21, 0
        %s373 = sadd.s32 %s372, %s370
        %s374 = smul.addr %s373, 4
        %s375 = scalar_lea.vmem %s3, %s374
      $region44: #{_lambda_.12} parent=39 // pred_fallthru
        _
    $region40: #{_lambda_.12} parent=5 // pred_fallthru
      _
  $region6: #{_lambda_.12} parent=0 // loop_footer
    %s13 = sadd.s32 1, %s9
  $region7: #{_lambda_.12} parent=0 // loop_footer_branch
    %8 = sbr.rel target = $region3
  $region8: #{_lambda_.12} parent=0 // loop_exit
    _

// kernel: _lambda_.13
$region0: #{_lambda_.13}
  #allocation0 [shape = 'u32[]', space=smem, size = 0x4, offset = 0x4, fixed_abs, tag = 'smem constant byte address 0x4 - core index']
  #allocation1 [shape = 'u32[72,128]{1,0:T(1,128)}', space=vmem, size = 0x9000, scoped, tag = 'internal scratch']
  #allocation2 [shape = 'f32[16,128]{1,0:T(8,128)}', space=vmem, size = 0x2000, scoped, tag = 'scratch operand']
  %s0 = inlined_call_operand.vmem [shape: bf16[32,256], index: 0, kind: input, shape index: {}]
  %s1 = inlined_call_operand.vmem [shape: bf16[256,128], index: 1, kind: input, shape index: {}]
  %s2 = inlined_call_operand.vmem [shape: f32[1,128], index: 2, kind: input, shape index: {}]
  %s3 = inlined_call_operand.vmem [shape: bf16[32,128], index: 3, kind: output, shape index: {}]
  %s4 = sld [smem:[#allocation0]]
  $region94: #{_lambda_.13} parent=0
    _
  %s6 = ssub.s32 1, %s4
  %s7 = scalar_select 0, %s6, %s4
  $region1: #{_lambda_.13} parent=0
    #allocation3 [shape = 'u8[8192]{0}', space=vmem, size = 0x2000, scoped, tag = 'input window, operand 0']
    loop: start=0, step=1, limit=6
    $region2: #{_lambda_.13} parent=1 // loop_pre_header
      _
    $region3: #{_lambda_.13} parent=1 // loop_header
      %s9 = sphi 0, %s13
      %p10 = scmp.ge.s32.totalorder %s9, 6
      %s16 = sphi 0, %s35
      %s17 = sphi 0, %s31
      %s18 = sphi 0, %s27
      %s19 = sphi 0, %s16
      %s20 = sphi 0, %s17
      %s21 = sphi 0, %s18
      %s22 = sphi 0, %s19
      %s23 = sphi 0, %s20
      %s24 = sphi 0, %s21
      %s40 = sphi 0, %s42
      %s43 = sphi 0, %s40
      %s44 = sphi 0, %s43
      %s60 = sphi 0, %s44
      %s68 = sphi 0, %s70
      %s71 = sphi 0, %s68
      %s72 = sphi 0, %s71
      %s88 = sphi 0, %s72
      %s94 = sphi 0, %s96
      %s97 = sphi 0, %s94
      %s98 = sphi 0, %s97
      %s114 = sphi 0, %s98
      %s122 = sphi 0, %s124
      %s125 = sphi 0, %s122
      %s126 = sphi 0, %s125
      %s142 = sphi 0, %s126
    $region4: #{_lambda_.13} parent=1 // loop_header_branch
      %12 = sbr.rel (%p10) target = $region8
    $region5: #{_lambda_.13} parent=1 // loop_body
      %s14 = ssub.s32 %s9, 1
      %s15 = ssub.s32 %s9, 2
      %s25 = sadd.s32 1, %s18
      %p26 = scmp.ge.s32.totalorder %s25, 2
      %s27 = scalar_select %p26, 0, %s25
      %s28 = sadd.s32 1, %s17
      %s29 = scalar_select %p26, %s28, %s17
      %p30 = scmp.ge.s32.totalorder %s29, 1
      %s31 = scalar_select %p30, 0, %s29
      %s32 = sadd.s32 1, %s16
      %s33 = scalar_select %p30, %s32, %s16
      %p34 = scmp.ge.s32.totalorder %s33, 2
      %s35 = scalar_select %p34, 0, %s33
      %s36 = ssub.s32 %s16, %s35
      %s37 = ssub.s32 %s18, %s27
      %s38 = sor.u32 %s36, %s37
      %p39 = scmp.eq.s32.totalorder %s38, 0
      %s41 = sadd.s32 %s40, 1
      %s42 = scalar_select %p39, %s40, %s41
      %p45 = pneg %p39
      %p46 = scmp.eq.s32.totalorder %s9, 3
      %p47 = por %p45, %p46
      %p48 = scmp.ne.s32.totalorder %s40, %s43
      %p49 = scmp.eq.s32.totalorder %s9, 0
      %p50 = por %p48, %p49
      %p51 = scmp.ne.s32.totalorder %s40, %s43
      %p52 = scmp.eq.s32.totalorder %s14, 3
      %p53 = por %p51, %p52
      %p54 = scmp.ne.s32.totalorder %s43, %s44
      %p55 = scmp.eq.s32.totalorder %s14, 0
      %p56 = por %p54, %p55
      %p57 = scmp.ne.s32.totalorder %s43, %s44
      %p58 = scmp.eq.s32.totalorder %s15, 3
      %p59 = por %p57, %p58
      %p61 = scmp.ne.s32.totalorder %s44, %s60
      %p62 = scmp.eq.s32.totalorder %s15, 0
      %p63 = por %p61, %p62
      %s64 = ssub.s32 %s18, %s27
      %s65 = ssub.s32 %s17, %s31
      %s66 = sor.u32 %s64, %s65
      %p67 = scmp.eq.s32.totalorder %s66, 0
      %s69 = sadd.s32 %s68, 1
      %s70 = scalar_select %p67, %s68, %s69
      %p73 = pneg %p67
      %p74 = scmp.eq.s32.totalorder %s9, 3
      %p75 = por %p73, %p74
      %p76 = scmp.ne.s32.totalorder %s68, %s71
      %p77 = scmp.eq.s32.totalorder %s9, 0
      %p78 = por %p76, %p77
      %p79 = scmp.ne.s32.totalorder %s68, %s71
      %p80 = scmp.eq.s32.totalorder %s14, 3
      %p81 = por %p79, %p80
      %p82 = scmp.ne.s32.totalorder %s71, %s72
      %p83 = scmp.eq.s32.totalorder %s14, 0
      %p84 = por %p82, %p83
      %p85 = scmp.ne.s32.totalorder %s71, %s72
      %p86 = scmp.eq.s32.totalorder %s15, 3
      %p87 = por %p85, %p86
      %p89 = scmp.ne.s32.totalorder %s72, %s88
      %p90 = scmp.eq.s32.totalorder %s15, 0
      %p91 = por %p89, %p90
      %s92 = ssub.s32 %s17, %s31
      %p93 = scmp.eq.s32.totalorder %s92, 0
      %s95 = sadd.s32 %s94, 1
      %s96 = scalar_select %p93, %s94, %s95
      %p99 = pneg %p93
      %p100 = scmp.eq.s32.totalorder %s9, 3
      %p101 = por %p99, %p100
      %p102 = scmp.ne.s32.totalorder %s94, %s97
      %p103 = scmp.eq.s32.totalorder %s9, 0
      %p104 = por %p102, %p103
      %p105 = scmp.ne.s32.totalorder %s94, %s97
      %p106 = scmp.eq.s32.totalorder %s14, 3
      %p107 = por %p105, %p106
      %p108 = scmp.ne.s32.totalorder %s97, %s98
      %p109 = scmp.eq.s32.totalorder %s14, 0
      %p110 = por %p108, %p109
      %p111 = scmp.ne.s32.totalorder %s97, %s98
      %p112 = scmp.eq.s32.totalorder %s15, 3
      %p113 = por %p111, %p112
      %p115 = scmp.ne.s32.totalorder %s98, %s114
      %p116 = scmp.eq.s32.totalorder %s15, 0
      %p117 = por %p115, %p116
      %s118 = ssub.s32 %s16, %s35
      %s119 = ssub.s32 %s17, %s31
      %s120 = sor.u32 %s118, %s119
      %p121 = scmp.eq.s32.totalorder %s120, 0
      %s123 = sadd.s32 %s122, 1
      %s124 = scalar_select %p121, %s122, %s123
      %p127 = pneg %p121
      %p128 = scmp.eq.s32.totalorder %s9, 3
      %p129 = por %p127, %p128
      %p130 = scmp.ne.s32.totalorder %s122, %s125
      %p131 = scmp.eq.s32.totalorder %s9, 0
      %p132 = por %p130, %p131
      %p133 = scmp.ne.s32.totalorder %s122, %s125
      %p134 = scmp.eq.s32.totalorder %s14, 3
      %p135 = por %p133, %p134
      %p136 = scmp.ne.s32.totalorder %s125, %s126
      %p137 = scmp.eq.s32.totalorder %s14, 0
      %p138 = por %p136, %p137
      %p139 = scmp.ne.s32.totalorder %s125, %s126
      %p140 = scmp.eq.s32.totalorder %s15, 3
      %p141 = por %p139, %p140
      %p143 = scmp.ne.s32.totalorder %s126, %s142
      %p144 = scmp.eq.s32.totalorder %s15, 0
      %p145 = por %p143, %p144
      %p146 = scmp.le.s32.totalorder 1, %s9
      %p147 = scmp.lt.s32.totalorder %s9, 5
      %p148 = pnand %p146, %p147
      %p149 = pneg %p148
      // Predicated region
      $region9: #{_lambda_.13} parent=5 // pred_check
        _
      $region10: #{_lambda_.13} parent=5 // pred_check_branch
        %151 = sbr.rel (%p148) target = $region12
      $region11: #{_lambda_.13} parent=5 // pred_region
        %s152 = ssub.s32 %s9, 1
        // Predicated region
        $region13: #{_lambda_.13} parent=11 // pred_check
          %p153 = pneg %p110
        $region14: #{_lambda_.13} parent=11 // pred_check_branch
          %155 = sbr.rel (%p153) target = $region16
        $region15: #{_lambda_.13} parent=11 // pred_region
          %p156 = scmp.lt.s32.totalorder %s20, 0
          %s157 = scalar_select %p156, %s20, 0
          %s158 = scalar_lea.vmem %s2, %s157
        $region16: #{_lambda_.13} parent=11 // pred_fallthru
          _
      $region12: #{_lambda_.13} parent=5 // pred_fallthru
        _
      %p159 = scmp.lt.s32.totalorder %s9, 4
      // Predicated region
      $region17: #{_lambda_.13} parent=5 // pred_check
        %p160 = pneg %p159
      $region18: #{_lambda_.13} parent=5 // pred_check_branch
        %162 = sbr.rel (%p160) target = $region20
      $region19: #{_lambda_.13} parent=5 // pred_region
        // Predicated region
        $region21: #{_lambda_.13} parent=19 // pred_check
          %p163 = pneg %p50
        $region22: #{_lambda_.13} parent=19 // pred_check_branch
          %165 = sbr.rel (%p163) target = $region24
        $region23: #{_lambda_.13} parent=19 // pred_region
          %s166 = sand.u32 %s40, 1
          %s167 = sand.u32 %s40, 1
          %s168 = smul.addr %s167, 8
          %s169 = scalar_lea.vmem [#allocation3], %s168
          %s170 = smul.u32 2, %s16
          %s171 = smul.addr %s170, 2
          %s172 = sadd.s32 %s18, %s171
          %s173 = smul.addr %s172, 4
          %s174 = scalar_lea.vmem %s0, %s173
          // Predicated region
          $region25: #{_lambda_.13} parent=23 // pred_check
            _
          $region26: #{_lambda_.13} parent=23 // pred_check_branch
            %176 = sbr.rel (0) target = $region28
          $region27: #{_lambda_.13} parent=23 // pred_region
            // Predicated region
            $region29: #{_lambda_.13} parent=27 // pred_check
              _
            $region30: #{_lambda_.13} parent=27 // pred_check_branch
              %178 = sbr.rel target = $region32
            $region31: #{_lambda_.13} parent=27 // pred_region
              // Predicated region
              $region44: #{_lambda_.13} parent=31 // pred_check
                _
              $region45: #{_lambda_.13} parent=31 // pred_check_branch
                %196 = sbr.rel (0) target = $region47
              $region46: #{_lambda_.13} parent=31 // pred_region
                loop: start=0, step=1, limit=1
                $region48: #{_lambda_.13} parent=46 // loop_pre_header
                  _
                $region49: #{_lambda_.13} parent=46 // loop_header
                  %s198 = sphi 0, %s202
                  %p199 = scmp.ge.s32.totalorder %s198, 1
                  %s203 = sphi %s174, %s174
                  %s204 = sphi %s169, %s169
                $region50: #{_lambda_.13} parent=46 // loop_header_branch
                  %201 = sbr.rel (%p199) target = $region54
                $region51: #{_lambda_.13} parent=46 // loop_body
                  _
                $region52: #{_lambda_.13} parent=46 // loop_footer
                  %s202 = sadd.s32 1, %s198
                $region53: #{_lambda_.13} parent=46 // loop_footer_branch
                  %197 = sbr.rel target = $region49
                $region54: #{_lambda_.13} parent=46 // loop_exit
                  _
                %s206 = ssub.s32 16, 1
                loop: start=0, step=1, limit=1
                $region55: #{_lambda_.13} parent=46 // loop_pre_header
                  _
                $region56: #{_lambda_.13} parent=46 // loop_header
                  %s208 = sphi 0, %s212
                  %p209 = scmp.ge.s32.totalorder %s208, 1
                  %s213 = sphi %s174, %s174
                  %s214 = sphi %s169, %s169
                $region57: #{_lambda_.13} parent=46 // loop_header_branch
                  %211 = sbr.rel (%p209) target = $region61
                $region58: #{_lambda_.13} parent=46 // loop_body
                  %v215 = vld [vmem:[%s213] sm:%s206]
                  %216 = vst [vmem:[%s214] sm:%s206] %v215
                  %v217 = vld [vmem:[%s213 + $0x8] sm:%s206]
                  %218 = vst [vmem:[%s214 + $0x4] sm:%s206] %v217
                $region59: #{_lambda_.13} parent=46 // loop_footer
                  %s212 = sadd.s32 1, %s208
                $region60: #{_lambda_.13} parent=46 // loop_footer_branch
                  %207 = sbr.rel target = $region56
                $region61: #{_lambda_.13} parent=46 // loop_exit
                  _
              $region47: #{_lambda_.13} parent=31 // pred_fallthru
                _
            $region32: #{_lambda_.13} parent=27 // pred_fallthru
              _
            // Predicated region
            $region33: #{_lambda_.13} parent=27 // pred_check
              _
            $region34: #{_lambda_.13} parent=27 // pred_check_branch
              %180 = sbr.rel (0) target = $region36
            $region35: #{_lambda_.13} parent=27 // pred_region
              %s182 = ssub.s32 16, 1
              loop: start=0, step=1, limit=1
              $region37: #{_lambda_.13} parent=35 // loop_pre_header
                _
              $region38: #{_lambda_.13} parent=35 // loop_header
                %s184 = sphi 0, %s188
                %p185 = scmp.ge.s32.totalorder %s184, 1
                %s189 = sphi %s174, %s174
                %s190 = sphi %s169, %s169
              $region39: #{_lambda_.13} parent=35 // loop_header_branch
                %187 = sbr.rel (%p185) target = $region43
              $region40: #{_lambda_.13} parent=35 // loop_body
                %v191 = vld [vmem:[%s189] sm:%s182]
                %192 = vst [vmem:[%s190] sm:%s182] %v191
                %v193 = vld [vmem:[%s189 + $0x8] sm:%s182]
                %194 = vst [vmem:[%s190 + $0x4] sm:%s182] %v193
              $region41: #{_lambda_.13} parent=35 // loop_footer
                %s188 = sadd.s32 1, %s184
              $region42: #{_lambda_.13} parent=35 // loop_footer_branch
                %183 = sbr.rel target = $region38
              $region43: #{_lambda_.13} parent=35 // loop_exit
                _
            $region36: #{_lambda_.13} parent=27 // pred_fallthru
              _
          $region28: #{_lambda_.13} parent=23 // pred_fallthru
            _
          %219 = vnop
        $region24: #{_lambda_.13} parent=19 // pred_fallthru
          _
        // Predicated region
        $region62: #{_lambda_.13} parent=19 // pred_check
          %p220 = pneg %p78
        $region63: #{_lambda_.13} parent=19 // pred_check_branch
          %222 = sbr.rel (%p220) target = $region65
        $region64: #{_lambda_.13} parent=19 // pred_region
          %s223 = smul.u32 16, %s18
          %p224 = scmp.lt.s32.totalorder %s223, 31
          %s225 = scalar_select %p224, %s223, 31
          %p226 = scmp.lt.s32.totalorder %s17, 0
          %s227 = scalar_select %p226, %s17, 0
          %s228 = sadd.s32 %s227, %s225
          %s229 = smul.addr %s228, 4
          %s230 = scalar_lea.vmem %s1, %s229
          %s231 = smul.u32 16, %s18
        $region65: #{_lambda_.13} parent=19 // pred_fallthru
          _
      $region20: #{_lambda_.13} parent=5 // pred_fallthru
        _
      %p232 = scmp.le.s32.totalorder 1, %s9
      %p233 = scmp.lt.s32.totalorder %s9, 5
      %p234 = pnand %p232, %p233
      %p235 = pneg %p234
      // Predicated region
      $region66: #{_lambda_.13} parent=5 // pred_check
        _
      $region67: #{_lambda_.13} parent=5 // pred_check_branch
        %237 = sbr.rel (%p234) target = $region69
      $region68: #{_lambda_.13} parent=5 // pred_region
        %s238 = ssub.s32 %s9, 1
        %s239 = sand.u32 %s43, 1
        %s240 = sand.u32 %s43, 1
        %s241 = smul.addr %s240, 8
        %s242 = scalar_lea.vmem [#allocation3], %s241
        // Predicated region
        $region70: #{_lambda_.13} parent=68 // pred_check
          %p243 = pneg %p56
        $region71: #{_lambda_.13} parent=68 // pred_check_branch
          %245 = sbr.rel (%p243) target = $region73
        $region72: #{_lambda_.13} parent=68 // pred_region
          _
        $region73: #{_lambda_.13} parent=68 // pred_fallthru
          _
        %s246 = sand.u32 %s43, 1
        %s247 = sand.u32 %s43, 1
        %s248 = smul.addr %s247, 8
        %s249 = scalar_lea.vmem [#allocation3], %s248
        %p250 = pneg %p56
        %p251 = pneg %p53
        %s252 = smul.u32 16, %s21
        %p253 = scmp.lt.s32.totalorder %s252, 31
        %s254 = scalar_select %p253, %s252, 31
        %p255 = scmp.lt.s32.totalorder %s20, 0
        %s256 = scalar_select %p255, %s20, 0
        %s257 = sadd.s32 %s256, %s254
        %s258 = smul.addr %s257, 4
        %s259 = scalar_lea.vmem %s1, %s258
        %p260 = pneg %p84
        %p261 = pneg %p81
        %p262 = scmp.lt.s32.totalorder %s20, 0
        %s263 = scalar_select %p262, %s20, 0
        %s264 = scalar_lea.vmem %s2, %s263
        %p265 = pneg %p110
        %p266 = pneg %p107
        %p267 = pneg %p138
        %p268 = pneg %p135
        %s269 = smul.u32 2, %s19
        %p270 = scmp.lt.s32.totalorder %s269, 3
        %s271 = scalar_select %p270, %s269, 3
        %p272 = scmp.lt.s32.totalorder %s20, 0
        %s273 = scalar_select %p272, %s20, 0
        %s274 = sadd.s32 %s273, %s271
        %s275 = smul.addr %s274, 4
        %s276 = scalar_lea.vmem %s3, %s275
        %s277 = smul.u32 2, %s19
        %s278 = smul.u32 16, %s21
        %p279 = scmp.lt.s32.totalorder %s278, 31
        %s280 = scalar_select %p279, %s278, 31
        %p281 = scmp.lt.s32.totalorder %s20, 0
        %s282 = scalar_select %p281, %s20, 0
        %s283 = sadd.s32 %s282, %s280
        %s284 = smul.addr %s283, 4
        %s285 = scalar_lea.vmem %s1, %s284
        %s286 = smul.u32 16, %s21
        %p287 = scmp.lt.s32.totalorder %s20, 0
        %s288 = scalar_select %p287, %s20, 0
        %s289 = scalar_lea.vmem %s2, %s288
        %s290 = smul.u32 2, %s19
        %p291 = scmp.lt.s32.totalorder %s290, 3
        %s292 = scalar_select %p291, %s290, 3
        %p293 = scmp.lt.s32.totalorder %s20, 0
        %s294 = scalar_select %p293, %s20, 0
        %s295 = sadd.s32 %s294, %s292
        %s296 = smul.addr %s295, 4
        %s297 = scalar_lea.vmem %s3, %s296
        %s298 = smul.u32 2, %s19
        %p299 = scmp.eq.s32.totalorder %s21, 0
        // Predicated region
        $region74: #{_lambda_.13} parent=68 // pred_check
          %p300 = pneg %p299
        $region75: #{_lambda_.13} parent=68 // pred_check_branch
          %302 = sbr.rel (%p300) target = $region77
        $region76: #{_lambda_.13} parent=68 // pred_region
          %303 = vst [vmem:[#allocation2] sm:$0xff] 0.0
          %304 = vst [vmem:[#allocation2 + $0x8] sm:$0xff] 0.0
        $region77: #{_lambda_.13} parent=68 // pred_fallthru
          _
        %v305 = vld [vmem:[%s242] sm:$0xf]
        %v306 = vld [vmem:[%s242 + $0x4] sm:$0xf]
        %v307 = vld [vmem:[#allocation2] sm:$0xff]
        %v308 = vld [vmem:[#allocation2 + $0x8] sm:$0xff]
        %v309 = vld [vmem:[%s285] sm:$0xf]
        %v310 = vld [vmem:[%s285 + $0x4] sm:$0xf]
        %v311 = vld [vmem:[%s285 + $0x8] sm:$0xf]
        %v312 = vld [vmem:[%s285 + $0xc] sm:$0xf]
        %v313 = vld [vmem:[%s285 + $0x10] sm:$0xf]
        %v314 = vld [vmem:[%s285 + $0x14] sm:$0xf]
        %v315 = vld [vmem:[%s285 + $0x18] sm:$0xf]
        %v316 = vld [vmem:[%s285 + $0x1c] sm:$0xf]
        %v317 = vld [vmem:[%s285 + $0x20] sm:$0xf]
        %v318 = vld [vmem:[%s285 + $0x24] sm:$0xf]
        %v319 = vld [vmem:[%s285 + $0x28] sm:$0xf]
        %v320 = vld [vmem:[%s285 + $0x2c] sm:$0xf]
        %v321 = vld [vmem:[%s285 + $0x30] sm:$0xf]
        %v322 = vld [vmem:[%s285 + $0x34] sm:$0xf]
        %v323 = vld [vmem:[%s285 + $0x38] sm:$0xf]
        %v324 = vld [vmem:[%s285 + $0x3c] sm:$0xf]
        %v327 = vunpack.c.l.b16 %v305
        %v328 = vunpack.c.l.b16 %v306
        %v329 = vpack.c.b16 %v328, %v327
        %v347 = vunpack.c.l.b16 %v309
        %v348 = vunpack.c.l.b16 %v310
        %v349 = vunpack.c.l.b16 %v311
        %v350 = vunpack.c.l.b16 %v312
        %v351 = vunpack.c.l.b16 %v313
        %v352 = vunpack.c.l.b16 %v314
        %v353 = vunpack.c.l.b16 %v315
        %v354 = vunpack.c.l.b16 %v316
        %v355 = vunpack.c.l.b16 %v317
        %v356 = vunpack.c.l.b16 %v318
        %v357 = vunpack.c.l.b16 %v319
        %v358 = vunpack.c.l.b16 %v320
        %v359 = vunpack.c.l.b16 %v321
        %v360 = vunpack.c.l.b16 %v322
        %v361 = vunpack.c.l.b16 %v323
        %v362 = vunpack.c.l.b16 %v324
        %v363 = vpack.c.b16 %v348, %v347
        %v364 = vpack.c.b16 %v350, %v349
        %v365 = vpack.c.b16 %v352, %v351
        %v366 = vpack.c.b16 %v354, %v353
        %v367 = vpack.c.b16 %v356, %v355
        %v368 = vpack.c.b16 %v358, %v357
        %v369 = vpack.c.b16 %v360, %v359
        %v370 = vpack.c.b16 %v362, %v361
        %379 = vmatpush.bf16.msra.mxu0 %v370
        %380 = vmatpush.bf16.msra.mxu0 %v369
        %381 = vmatpush.bf16.msra.mxu0 %v368
        %382 = vmatpush.bf16.msra.mxu0 %v367
        %383 = vmatpush.bf16.msra.mxu0 %v366
        %384 = vmatpush.bf16.msra.mxu0 %v365
        %385 = vmatpush.bf16.msra.mxu0 %v364
        %386 = vmatpush.bf16.msra.mxu0 %v363
        %387 = vmatmul.bf16.gmra.mxu0 %v329
        %v388 = vpop.f32.mrf.mxu0
        %v389 = vadd.f32 0.0, %v388
        %v390 = vpop.f32.mrf.mxu0
        %v391 = vadd.f32 0.0, %v390
        %392 = vdwg.mxu0
        %v393 = vadd.f32 %v307, %v389
        %v394 = vadd.f32 %v308, %v391
        %395 = vst [vmem:[#allocation2] sm:$0xff] %v393
        %396 = vst [vmem:[#allocation2 + $0x8] sm:$0xff] %v394
        %p397 = scmp.eq.s32.totalorder %s21, 1
        // Predicated region
        $region78: #{_lambda_.13} parent=68 // pred_check
          %p398 = pneg %p397
        $region79: #{_lambda_.13} parent=68 // pred_check_branch
          %400 = sbr.rel (%p398) target = $region81
        $region80: #{_lambda_.13} parent=68 // pred_region
          %v401 = vld [vmem:[#allocation2] sm:$0xff]
          %v402 = vld [vmem:[#allocation2 + $0x8] sm:$0xff]
          %v403 = vld [vmem:[%s289] sm:$0x1]
          %v405 = vperm.slane %v403, 0
          %v407 = vadd.f32 %v401, %v405
          %v408 = vadd.f32 %v402, %v405
          %v409 = vmax.f32 %v407, 0.0
          %v410 = vmax.f32 %v408, 0.0
          %v411 = vpack.c.bf16 %v409, %v409
          %v412 = vpack.c.bf16 %v410, %v410
          %413 = vst [vmem:[%s297] sm:$0xf] %v411
          %414 = vst [vmem:[%s297 + $0x4] sm:$0xf] %v412
        $region81: #{_lambda_.13} parent=68 // pred_fallthru
          _
        %s415 = smul.u32 2, %s19
        %p416 = scmp.lt.s32.totalorder %s415, 3
        %s417 = scalar_select %p416, %s415, 3
        %p418 = scmp.lt.s32.totalorder %s20, 0
        %s419 = scalar_select %p418, %s20, 0
        %s420 = sadd.s32 %s419, %s417
        %s421 = smul.addr %s420, 4
        %s422 = scalar_lea.vmem %s3, %s421
        // Predicated region
        $region82: #{_lambda_.13} parent=68 // pred_check
          %p423 = pneg %p135
        $region83: #{_lambda_.13} parent=68 // pred_check_branch
          %425 = sbr.rel (%p423) target = $region85
        $region84: #{_lambda_.13} parent=68 // pred_region
          %s426 = smul.u32 2, %s19
        $region85: #{_lambda_.13} parent=68 // pred_fallthru
          _
      $region69: #{_lambda_.13} parent=5 // pred_fallthru
        _
      %p427 = scmp.le.s32.totalorder 2, %s9
      // Predicated region
      $region86: #{_lambda_.13} parent=5 // pred_check
        %p428 = pneg %p427
      $region87: #{_lambda_.13} parent=5 // pred_check_branch
        %430 = sbr.rel (%p428) target = $region89
      $region88: #{_lambda_.13} parent=5 // pred_region
        %s431 = ssub.s32 %s9, 2
        // Predicated region
        $region90: #{_lambda_.13} parent=88 // pred_check
          %p432 = pneg %p141
        $region91: #{_lambda_.13} parent=88 // pred_check_branch
          %434 = sbr.rel (%p432) target = $region93
        $region92: #{_lambda_.13} parent=88 // pred_region
          %s435 = smul.u32 2, %s22
          %p436 = scmp.lt.s32.totalorder %s435, 3
          %s437 = scalar_select %p436, %s435, 3
          %p438 = scmp.lt.s32.totalorder %s23, 0
          %s439 = scalar_select %p438, %s23, 0
          %s440 = sadd.s32 %s439, %s437
          %s441 = smul.addr %s440, 4
          %s442 = scalar_lea.vmem %s3, %s441
        $region93: #{_lambda_.13} parent=88 // pred_fallthru
          _
      $region89: #{_lambda_.13} parent=5 // pred_fallthru
        _
    $region6: #{_lambda_.13} parent=1 // loop_footer
      %s13 = sadd.s32 1, %s9
    $region7: #{_lambda_.13} parent=1 // loop_footer_branch
      %8 = sbr.rel target = $region3
    $region8: #{_lambda_.13} parent=1 // loop_exit
      _

// kernel: _lambda_.14
$region0: #{_lambda_.14}
  #allocation0 [shape = 'u32[]', space=smem, size = 0x4, offset = 0x4, fixed_abs, tag = 'smem constant byte address 0x4 - core index']
  #allocation1 [shape = 'u32[72,128]{1,0:T(1,128)}', space=vmem, size = 0x9000, scoped, tag = 'internal scratch']
  %s0 = inlined_call_operand.vmem [shape: bf16[32,288], index: 0, kind: input, shape index: {}]
  %s1 = inlined_call_operand.vmem [shape: bf16[288,128], index: 1, kind: input, shape index: {}]
  %s2 = inlined_call_operand.vmem [shape: f32[1,128], index: 2, kind: input, shape index: {}]
  %s3 = inlined_call_operand.vmem [shape: bf16[32,128], index: 3, kind: output, shape index: {}]
  %s4 = sld [smem:[#allocation0]]
  $region45: #{_lambda_.14} parent=0
    _
  %s6 = ssub.s32 1, %s4
  %s7 = scalar_select 0, %s6, %s4
  loop: start=0, step=1, limit=4
  $region2: #{_lambda_.14} parent=0 // loop_pre_header
    _
  $region3: #{_lambda_.14} parent=0 // loop_header
    %s9 = sphi 0, %s13
    %p10 = scmp.ge.s32.totalorder %s9, 4
    %s16 = sphi 0, %s28
    %s17 = sphi 0, %s24
    %s18 = sphi 0, %s16
    %s19 = sphi 0, %s17
    %s20 = sphi 0, %s18
    %s21 = sphi 0, %s19
    %s31 = sphi 0, %s33
    %s34 = sphi 0, %s31
    %s35 = sphi 0, %s34
    %s51 = sphi 0, %s35
    %s57 = sphi 0, %s59
    %s60 = sphi 0, %s57
    %s61 = sphi 0, %s60
    %s77 = sphi 0, %s61
    %s83 = sphi 0, %s85
    %s86 = sphi 0, %s83
    %s87 = sphi 0, %s86
    %s103 = sphi 0, %s87
    %s111 = sphi 0, %s113
    %s114 = sphi 0, %s111
    %s115 = sphi 0, %s114
    %s131 = sphi 0, %s115
  $region4: #{_lambda_.14} parent=0 // loop_header_branch
    %12 = sbr.rel (%p10) target = $region8
  $region5: #{_lambda_.14} parent=0 // loop_body
    %s14 = ssub.s32 %s9, 1
    %s15 = ssub.s32 %s9, 2
    %s22 = sadd.s32 1, %s17
    %p23 = scmp.ge.s32.totalorder %s22, 1
    %s24 = scalar_select %p23, 0, %s22
    %s25 = sadd.s32 1, %s16
    %s26 = scalar_select %p23, %s25, %s16
    %p27 = scmp.ge.s32.totalorder %s26, 2
    %s28 = scalar_select %p27, 0, %s26
    %s29 = ssub.s32 %s16, %s28
    %p30 = scmp.eq.s32.totalorder %s29, 0
    %s32 = sadd.s32 %s31, 1
    %s33 = scalar_select %p30, %s31, %s32
    %p36 = pneg %p30
    %p37 = scmp.eq.s32.totalorder %s9, 1
    %p38 = por %p36, %p37
    %p39 = scmp.ne.s32.totalorder %s31, %s34
    %p40 = scmp.eq.s32.totalorder %s9, 0
    %p41 = por %p39, %p40
    %p42 = scmp.ne.s32.totalorder %s31, %s34
    %p43 = scmp.eq.s32.totalorder %s14, 1
    %p44 = por %p42, %p43
    %p45 = scmp.ne.s32.totalorder %s34, %s35
    %p46 = scmp.eq.s32.totalorder %s14, 0
    %p47 = por %p45, %p46
    %p48 = scmp.ne.s32.totalorder %s34, %s35
    %p49 = scmp.eq.s32.totalorder %s15, 1
    %p50 = por %p48, %p49
    %p52 = scmp.ne.s32.totalorder %s35, %s51
    %p53 = scmp.eq.s32.totalorder %s15, 0
    %p54 = por %p52, %p53
    %s55 = ssub.s32 %s17, %s24
    %p56 = scmp.eq.s32.totalorder %s55, 0
    %s58 = sadd.s32 %s57, 1
    %s59 = scalar_select %p56, %s57, %s58
    %p62 = pneg %p56
    %p63 = scmp.eq.s32.totalorder %s9, 1
    %p64 = por %p62, %p63
    %p65 = scmp.ne.s32.totalorder %s57, %s60
    %p66 = scmp.eq.s32.totalorder %s9, 0
    %p67 = por %p65, %p66
    %p68 = scmp.ne.s32.totalorder %s57, %s60
    %p69 = scmp.eq.s32.totalorder %s14, 1
    %p70 = por %p68, %p69
    %p71 = scmp.ne.s32.totalorder %s60, %s61
    %p72 = scmp.eq.s32.totalorder %s14, 0
    %p73 = por %p71, %p72
    %p74 = scmp.ne.s32.totalorder %s60, %s61
    %p75 = scmp.eq.s32.totalorder %s15, 1
    %p76 = por %p74, %p75
    %p78 = scmp.ne.s32.totalorder %s61, %s77
    %p79 = scmp.eq.s32.totalorder %s15, 0
    %p80 = por %p78, %p79
    %s81 = ssub.s32 %s17, %s24
    %p82 = scmp.eq.s32.totalorder %s81, 0
    %s84 = sadd.s32 %s83, 1
    %s85 = scalar_select %p82, %s83, %s84
    %p88 = pneg %p82
    %p89 = scmp.eq.s32.totalorder %s9, 1
    %p90 = por %p88, %p89
    %p91 = scmp.ne.s32.totalorder %s83, %s86
    %p92 = scmp.eq.s32.totalorder %s9, 0
    %p93 = por %p91, %p92
    %p94 = scmp.ne.s32.totalorder %s83, %s86
    %p95 = scmp.eq.s32.totalorder %s14, 1
    %p96 = por %p94, %p95
    %p97 = scmp.ne.s32.totalorder %s86, %s87
    %p98 = scmp.eq.s32.totalorder %s14, 0
    %p99 = por %p97, %p98
    %p100 = scmp.ne.s32.totalorder %s86, %s87
    %p101 = scmp.eq.s32.totalorder %s15, 1
    %p102 = por %p100, %p101
    %p104 = scmp.ne.s32.totalorder %s87, %s103
    %p105 = scmp.eq.s32.totalorder %s15, 0
    %p106 = por %p104, %p105
    %s107 = ssub.s32 %s16, %s28
    %s108 = ssub.s32 %s17, %s24
    %s109 = sor.u32 %s107, %s108
    %p110 = scmp.eq.s32.totalorder %s109, 0
    %s112 = sadd.s32 %s111, 1
    %s113 = scalar_select %p110, %s111, %s112
    %p116 = pneg %p110
    %p117 = scmp.eq.s32.totalorder %s9, 1
    %p118 = por %p116, %p117
    %p119 = scmp.ne.s32.totalorder %s111, %s114
    %p120 = scmp.eq.s32.totalorder %s9, 0
    %p121 = por %p119, %p120
    %p122 = scmp.ne.s32.totalorder %s111, %s114
    %p123 = scmp.eq.s32.totalorder %s14, 1
    %p124 = por %p122, %p123
    %p125 = scmp.ne.s32.totalorder %s114, %s115
    %p126 = scmp.eq.s32.totalorder %s14, 0
    %p127 = por %p125, %p126
    %p128 = scmp.ne.s32.totalorder %s114, %s115
    %p129 = scmp.eq.s32.totalorder %s15, 1
    %p130 = por %p128, %p129
    %p132 = scmp.ne.s32.totalorder %s115, %s131
    %p133 = scmp.eq.s32.totalorder %s15, 0
    %p134 = por %p132, %p133
    %p135 = scmp.le.s32.totalorder 1, %s9
    %p136 = scmp.lt.s32.totalorder %s9, 3
    %p137 = pnand %p135, %p136
    %p138 = pneg %p137
    // Predicated region
    $region9: #{_lambda_.14} parent=5 // pred_check
      _
    $region10: #{_lambda_.14} parent=5 // pred_check_branch
      %140 = sbr.rel (%p137) target = $region12
    $region11: #{_lambda_.14} parent=5 // pred_region
      %s141 = ssub.s32 %s9, 1
      // Predicated region
      $region13: #{_lambda_.14} parent=11 // pred_check
        %p142 = pneg %p73
      $region14: #{_lambda_.14} parent=11 // pred_check_branch
        %144 = sbr.rel (%p142) target = $region16
      $region15: #{_lambda_.14} parent=11 // pred_region
        %p145 = scmp.lt.s32.totalorder %s19, 0
        %s146 = scalar_select %p145, %s19, 0
        %s147 = smul.addr %s146, 4
        %s148 = scalar_lea.vmem %s1, %s147
      $region16: #{_lambda_.14} parent=11 // pred_fallthru
        _
      // Predicated region
      $region17: #{_lambda_.14} parent=11 // pred_check
        %p149 = pneg %p99
      $region18: #{_lambda_.14} parent=11 // pred_check_branch
        %151 = sbr.rel (%p149) target = $region20
      $region19: #{_lambda_.14} parent=11 // pred_region
        %p152 = scmp.lt.s32.totalorder %s19, 0
        %s153 = scalar_select %p152, %s19, 0
        %s154 = scalar_lea.vmem %s2, %s153
      $region20: #{_lambda_.14} parent=11 // pred_fallthru
        _
    $region12: #{_lambda_.14} parent=5 // pred_fallthru
      _
    %p155 = scmp.lt.s32.totalorder %s9, 2
    // Predicated region
    $region21: #{_lambda_.14} parent=5 // pred_check
      %p156 = pneg %p155
    $region22: #{_lambda_.14} parent=5 // pred_check_branch
      %158 = sbr.rel (%p156) target = $region24
    $region23: #{_lambda_.14} parent=5 // pred_region
      // Predicated region
      $region25: #{_lambda_.14} parent=23 // pred_check
        %p159 = pneg %p41
      $region26: #{_lambda_.14} parent=23 // pred_check_branch
        %161 = sbr.rel (%p159) target = $region28
      $region27: #{_lambda_.14} parent=23 // pred_region
        %s162 = smul.u32 2, %s16
        %p163 = scmp.lt.s32.totalorder %s162, 3
        %s164 = scalar_select %p163, %s162, 3
        %s165 = smul.addr %s164, 3
        %s166 = smul.addr %s165, 4
        %s167 = scalar_lea.vmem %s0, %s166
        %s168 = smul.u32 2, %s16
      $region28: #{_lambda_.14} parent=23 // pred_fallthru
        _
    $region24: #{_lambda_.14} parent=5 // pred_fallthru
      _
    %p169 = scmp.le.s32.totalorder 1, %s9
    %p170 = scmp.lt.s32.totalorder %s9, 3
    %p171 = pnand %p169, %p170
    %p172 = pneg %p171
    // Predicated region
    $region29: #{_lambda_.14} parent=5 // pred_check
      _
    $region30: #{_lambda_.14} parent=5 // pred_check_branch
      %174 = sbr.rel (%p171) target = $region32
    $region31: #{_lambda_.14} parent=5 // pred_region
      %s175 = ssub.s32 %s9, 1
      %s176 = smul.u32 2, %s18
      %p177 = scmp.lt.s32.totalorder %s176, 3
      %s178 = scalar_select %p177, %s176, 3
      %s179 = smul.addr %s178, 3
      %s180 = smul.addr %s179, 4
      %s181 = scalar_lea.vmem %s0, %s180
      %p182 = pneg %p47
      %p183 = pneg %p44
      %p184 = scmp.lt.s32.totalorder %s19, 0
      %s185 = scalar_select %p184, %s19, 0
      %s186 = smul.addr %s185, 4
      %s187 = scalar_lea.vmem %s1, %s186
      %p188 = pneg %p73
      %p189 = pneg %p70
      %p190 = scmp.lt.s32.totalorder %s19, 0
      %s191 = scalar_select %p190, %s19, 0
      %s192 = scalar_lea.vmem %s2, %s191
      %p193 = pneg %p99
      %p194 = pneg %p96
      %p195 = pneg %p127
      %p196 = pneg %p124
      %s197 = smul.u32 2, %s18
      %p198 = scmp.lt.s32.totalorder %s197, 3
      %s199 = scalar_select %p198, %s197, 3
      %p200 = scmp.lt.s32.totalorder %s19, 0
      %s201 = scalar_select %p200, %s19, 0
      %s202 = sadd.s32 %s201, %s199
      %s203 = smul.addr %s202, 4
      %s204 = scalar_lea.vmem %s3, %s203
      %s205 = smul.u32 2, %s18
      %p206 = scmp.lt.s32.totalorder %s205, 3
      %s207 = scalar_select %p206, %s205, 3
      %s208 = smul.addr %s207, 3
      %s209 = smul.addr %s208, 4
      %s210 = scalar_lea.vmem %s0, %s209
      %s211 = smul.u32 2, %s18
      %p212 = scmp.lt.s32.totalorder %s19, 0
      %s213 = scalar_select %p212, %s19, 0
      %s214 = smul.addr %s213, 4
      %s215 = scalar_lea.vmem %s1, %s214
      %p216 = scmp.lt.s32.totalorder %s19, 0
      %s217 = scalar_select %p216, %s19, 0
      %s218 = scalar_lea.vmem %s2, %s217
      %s219 = smul.u32 2, %s18
      %p220 = scmp.lt.s32.totalorder %s219, 3
      %s221 = scalar_select %p220, %s219, 3
      %p222 = scmp.lt.s32.totalorder %s19, 0
      %s223 = scalar_select %p222, %s19, 0
      %s224 = sadd.s32 %s223, %s221
      %s225 = smul.addr %s224, 4
      %s226 = scalar_lea.vmem %s3, %s225
      %s227 = smul.u32 2, %s18
      %v229 = vld [vmem:[%s210] sm:$0xff]
      %v230 = vld [vmem:[%s210 + $0x8] sm:$0xf]
      %v231 = vld [vmem:[%s210 + $0xc] sm:$0xff]
      %v232 = vld [vmem:[%s210 + $0x14] sm:$0xf]
      %v233 = vld [vmem:[%s215] sm:$0xf]
      %v234 = vld [vmem:[%s215 + $0x4] sm:$0xf]
      %v235 = vld [vmem:[%s215 + $0x8] sm:$0xf]
      %v236 = vld [vmem:[%s215 + $0xc] sm:$0xf]
      %v237 = vld [vmem:[%s215 + $0x10] sm:$0xf]
      %v238 = vld [vmem:[%s215 + $0x14] sm:$0xf]
      %v239 = vld [vmem:[%s215 + $0x18] sm:$0xf]
      %v240 = vld [vmem:[%s215 + $0x1c] sm:$0xf]
      %v241 = vld [vmem:[%s215 + $0x20] sm:$0xf]
      %v242 = vld [vmem:[%s215 + $0x24] sm:$0xf]
      %v243 = vld [vmem:[%s215 + $0x28] sm:$0xf]
      %v244 = vld [vmem:[%s215 + $0x2c] sm:$0xf]
      %v245 = vld [vmem:[%s215 + $0x30] sm:$0xf]
      %v246 = vld [vmem:[%s215 + $0x34] sm:$0xf]
      %v247 = vld [vmem:[%s215 + $0x38] sm:$0xf]
      %v248 = vld [vmem:[%s215 + $0x3c] sm:$0xf]
      %v249 = vld [vmem:[%s215 + $0x40] sm:$0xf]
      %v250 = vld [vmem:[%s215 + $0x44] sm:$0xf]
      %v251 = vld [vmem:[%s215 + $0x48] sm:$0xf]
      %v252 = vld [vmem:[%s215 + $0x4c] sm:$0xf]
      %v253 = vld [vmem:[%s215 + $0x50] sm:$0xf]
      %v254 = vld [vmem:[%s215 + $0x54] sm:$0xf]
      %v255 = vld [vmem:[%s215 + $0x58] sm:$0xf]
      %v256 = vld [vmem:[%s215 + $0x5c] sm:$0xf]
      %v257 = vld [vmem:[%s215 + $0x60] sm:$0xf]
      %v258 = vld [vmem:[%s215 + $0x64] sm:$0xf]
      %v259 = vld [vmem:[%s215 + $0x68] sm:$0xf]
      %v260 = vld [vmem:[%s215 + $0x6c] sm:$0xf]
      %v261 = vld [vmem:[%s215 + $0x70] sm:$0xf]
      %v262 = vld [vmem:[%s215 + $0x74] sm:$0xf]
      %v263 = vld [vmem:[%s215 + $0x78] sm:$0xf]
      %v264 = vld [vmem:[%s215 + $0x7c] sm:$0xf]
      %v265 = vld [vmem:[%s215 + $0x80] sm:$0xf]
      %v266 = vld [vmem:[%s215 + $0x84] sm:$0xf]
      %v267 = vld [vmem:[%s215 + $0x88] sm:$0xf]
      %v268 = vld [vmem:[%s215 + $0x8c] sm:$0xf]
      %v269 = vld [vmem:[%s218] sm:$0x1]
      %v271 = vperm.slane %v269, 0
      %v277 = vunpack.c.l.b16 %v229
      %v278 = vunpack.c.h.b16 %v229
      %v279 = vunpack.c.l.b16 %v230
      %v280 = vunpack.c.l.b16 %v231
      %v281 = vunpack.c.h.b16 %v231
      %v282 = vunpack.c.l.b16 %v232
      %v283 = vpack.c.b16 %v280, %v277
      %v284 = vpack.c.b16 %v281, %v278
      %v285 = vpack.c.b16 %v282, %v279
      %v324 = vunpack.c.l.b16 %v233
      %v325 = vunpack.c.l.b16 %v234
      %v326 = vunpack.c.l.b16 %v235
      %v327 = vunpack.c.l.b16 %v236
      %v328 = vunpack.c.l.b16 %v237
      %v329 = vunpack.c.l.b16 %v238
      %v330 = vunpack.c.l.b16 %v239
      %v331 = vunpack.c.l.b16 %v240
      %v332 = vunpack.c.l.b16 %v241
      %v333 = vunpack.c.l.b16 %v242
      %v334 = vunpack.c.l.b16 %v243
      %v335 = vunpack.c.l.b16 %v244
      %v336 = vunpack.c.l.b16 %v245
      %v337 = vunpack.c.l.b16 %v246
      %v338 = vunpack.c.l.b16 %v247
      %v339 = vunpack.c.l.b16 %v248
      %v340 = vunpack.c.l.b16 %v249
      %v341 = vunpack.c.l.b16 %v250
      %v342 = vunpack.c.l.b16 %v251
      %v343 = vunpack.c.l.b16 %v252
      %v344 = vunpack.c.l.b16 %v253
      %v345 = vunpack.c.l.b16 %v254
      %v346 = vunpack.c.l.b16 %v255
      %v347 = vunpack.c.l.b16 %v256
      %v348 = vunpack.c.l.b16 %v257
      %v349 = vunpack.c.l.b16 %v258
      %v350 = vunpack.c.l.b16 %v259
      %v351 = vunpack.c.l.b16 %v260
      %v352 = vunpack.c.l.b16 %v261
      %v353 = vunpack.c.l.b16 %v262
      %v354 = vunpack.c.l.b16 %v263
      %v355 = vunpack.c.l.b16 %v264
      %v356 = vunpack.c.l.b16 %v265
      %v357 = vunpack.c.l.b16 %v266
      %v358 = vunpack.c.l.b16 %v267
      %v359 = vunpack.c.l.b16 %v268
      %v360 = vpack.c.b16 %v325, %v324
      %v361 = vpack.c.b16 %v327, %v326
      %v362 = vpack.c.b16 %v329, %v328
      %v363 = vpack.c.b16 %v331, %v330
      %v364 = vpack.c.b16 %v333, %v332
      %v365 = vpack.c.b16 %v335, %v334
      %v366 = vpack.c.b16 %v337, %v336
      %v367 = vpack.c.b16 %v339, %v338
      %v368 = vpack.c.b16 %v341, %v340
      %v369 = vpack.c.b16 %v343, %v342
      %v370 = vpack.c.b16 %v345, %v344
      %v371 = vpack.c.b16 %v347, %v346
      %v372 = vpack.c.b16 %v349, %v348
      %v373 = vpack.c.b16 %v351, %v350
      %v374 = vpack.c.b16 %v353, %v352
      %v375 = vpack.c.b16 %v355, %v354
      %v376 = vpack.c.b16 %v357, %v356
      %v377 = vpack.c.b16 %v359, %v358
      %vm396 = vcmask 261120
      %v398 = vsel %vm396, %v285, 0
      %400 = vmatpush.bf16.msra.mxu0 %v367
      %401 = vmatpush.bf16.msra.mxu0 %v366
      %402 = vmatpush.bf16.msra.mxu0 %v365
      %403 = vmatpush.bf16.msra.mxu0 %v364
      %404 = vmatpush.bf16.msra.mxu0 %v363
      %405 = vmatpush.bf16.msra.mxu0 %v362
      %406 = vmatpush.bf16.msra.mxu0 %v361
      %407 = vmatpush.bf16.msra.mxu0 %v360
      %408 = vmatmul.bf16.gmra.mxu0 %v283
      %v409 = vpop.f32.mrf.mxu0
      %v410 = vadd.f32 %v271, %v409
      %v411 = vpop.f32.mrf.mxu0
      %v412 = vadd.f32 %v271, %v411
      %413 = vdwg.mxu0
      %414 = vmatpush.bf16.msra.mxu0 %v375
      %415 = vmatpush.bf16.msra.mxu0 %v374
      %416 = vmatpush.bf16.msra.mxu0 %v373
      %417 = vmatpush.bf16.msra.mxu0 %v372
      %418 = vmatpush.bf16.msra.mxu0 %v371
      %419 = vmatpush.bf16.msra.mxu0 %v370
      %420 = vmatpush.bf16.msra.mxu0 %v369
      %421 = vmatpush.bf16.msra.mxu0 %v368
      %422 = vmatmul.bf16.gmra.mxu0 %v284
      %v423 = vpop.f32.mrf.mxu0
      %v424 = vadd.f32 %v410, %v423
      %v425 = vpop.f32.mrf.mxu0
      %v426 = vadd.f32 %v412, %v425
      %427 = vdwg.mxu0
      %428 = vmatpush.bf16.msra.mxu0 0
      %429 = vmatpush.bf16.msra.mxu0 0
      %430 = vmatpush.bf16.msra.mxu0 0
      %431 = vmatpush.bf16.msra.mxu0 0
      %432 = vmatpush.bf16.msra.mxu0 0
      %433 = vmatpush.bf16.msra.mxu0 0
      %434 = vmatpush.bf16.msra.mxu0 %v377
      %435 = vmatpush.bf16.msra.mxu0 %v376
      %436 = vmatmul.bf16.gmra.mxu0 %v398
      %v437 = vpop.f32.mrf.mxu0
      %v438 = vadd.f32 %v424, %v437
      %v439 = vpop.f32.mrf.mxu0
      %v440 = vadd.f32 %v426, %v439
      %441 = vdwg.mxu0
      %v442 = vpack.c.bf16 %v438, %v438
      %v443 = vpack.c.bf16 %v440, %v440
      %444 = vst [vmem:[%s226] sm:$0xf] %v442
      %445 = vst [vmem:[%s226 + $0x4] sm:$0xf] %v443
      %s446 = smul.u32 2, %s18
      %p447 = scmp.lt.s32.totalorder %s446, 3
      %s448 = scalar_select %p447, %s446, 3
      %p449 = scmp.lt.s32.totalorder %s19, 0
      %s450 = scalar_select %p449, %s19, 0
      %s451 = sadd.s32 %s450, %s448
      %s452 = smul.addr %s451, 4
      %s453 = scalar_lea.vmem %s3, %s452
      // Predicated region
      $region33: #{_lambda_.14} parent=31 // pred_check
        %p454 = pneg %p124
      $region34: #{_lambda_.14} parent=31 // pred_check_branch
        %456 = sbr.rel (%p454) target = $region36
      $region35: #{_lambda_.14} parent=31 // pred_region
        %s457 = smul.u32 2, %s18
      $region36: #{_lambda_.14} parent=31 // pred_fallthru
        _
    $region32: #{_lambda_.14} parent=5 // pred_fallthru
      _
    %p458 = scmp.le.s32.totalorder 2, %s9
    // Predicated region
    $region37: #{_lambda_.14} parent=5 // pred_check
      %p459 = pneg %p458
    $region38: #{_lambda_.14} parent=5 // pred_check_branch
      %461 = sbr.rel (%p459) target = $region40
    $region39: #{_lambda_.14} parent=5 // pred_region
      %s462 = ssub.s32 %s9, 2
      // Predicated region
      $region41: #{_lambda_.14} parent=39 // pred_check
        %p463 = pneg %p130
      $region42: #{_lambda_.14} parent=39 // pred_check_branch
        %465 = sbr.rel (%p463) target = $region44
      $region43: #{_lambda_.14} parent=39 // pred_region
        %s466 = smul.u32 2, %s20
        %p467 = scmp.lt.s32.totalorder %s466, 3
        %s468 = scalar_select %p467, %s466, 3
        %p469 = scmp.lt.s32.totalorder %s21, 0
        %s470 = scalar_select %p469, %s21, 0
        %s471 = sadd.s32 %s470, %s468
        %s472 = smul.addr %s471, 4
        %s473 = scalar_lea.vmem %s3, %s472
      $region44: #{_lambda_.14} parent=39 // pred_fallthru
        _
    $region40: #{_lambda_.14} parent=5 // pred_fallthru
      _
  $region6: #{_lambda_.14} parent=0 // loop_footer
    %s13 = sadd.s32 1, %s9
  $region7: #{_lambda_.14} parent=0 // loop_footer_branch
    %8 = sbr.rel target = $region3
  $region8: #{_lambda_.14} parent=0 // loop_exit
    _

// kernel: _lambda_.15
$region0: #{_lambda_.15}
  #allocation0 [shape = 'u32[]', space=smem, size = 0x4, offset = 0x4, fixed_abs, tag = 'smem constant byte address 0x4 - core index']
  #allocation1 [shape = 'u32[72,128]{1,0:T(1,128)}', space=vmem, size = 0x9000, scoped, tag = 'internal scratch']
  %s0 = inlined_call_operand.vmem [shape: bf16[32,288], index: 0, kind: input, shape index: {}]
  %s1 = inlined_call_operand.vmem [shape: bf16[288,128], index: 1, kind: input, shape index: {}]
  %s2 = inlined_call_operand.vmem [shape: bf16[128,128], index: 2, kind: input, shape index: {}]
  %s3 = inlined_call_operand.vmem [shape: bf16[32,128], index: 3, kind: input, shape index: {}]
  %s4 = inlined_call_operand.vmem [shape: bf16[32,128], index: 4, kind: output, shape index: {}]
  %s5 = sld [smem:[#allocation0]]
  $region49: #{_lambda_.15} parent=0
    _
  %s7 = ssub.s32 1, %s5
  %s8 = scalar_select 0, %s7, %s5
  loop: start=0, step=1, limit=4
  $region2: #{_lambda_.15} parent=0 // loop_pre_header
    _
  $region3: #{_lambda_.15} parent=0 // loop_header
    %s10 = sphi 0, %s14
    %p11 = scmp.ge.s32.totalorder %s10, 4
    %s20 = sphi 0, %s22
    %s23 = sphi 0, %s20
    %s24 = sphi 0, %s23
    %s40 = sphi 0, %s24
    %s44 = sphi 0, %s44
    %s46 = sphi 0, %s44
    %s47 = sphi 0, %s46
    %s61 = sphi 0, %s47
    %s65 = sphi 0, %s65
    %s67 = sphi 0, %s65
    %s68 = sphi 0, %s67
    %s82 = sphi 0, %s68
    %s88 = sphi 0, %s90
    %s91 = sphi 0, %s88
    %s92 = sphi 0, %s91
    %s108 = sphi 0, %s92
    %s114 = sphi 0, %s116
    %s117 = sphi 0, %s114
    %s118 = sphi 0, %s117
    %s134 = sphi 0, %s118
  $region4: #{_lambda_.15} parent=0 // loop_header_branch
    %13 = sbr.rel (%p11) target = $region8
  $region5: #{_lambda_.15} parent=0 // loop_body
    %s15 = ssub.s32 %s10, 1
    %s16 = ssub.s32 %s10, 2
    %s17 = sadd.s32 %s10, 1
    %s18 = ssub.s32 %s10, %s17
    %p19 = scmp.eq.s32.totalorder %s18, 0
    %s21 = sadd.s32 %s20, 1
    %s22 = scalar_select %p19, %s20, %s21
    %p25 = pneg %p19
    %p26 = scmp.eq.s32.totalorder %s10, 1
    %p27 = por %p25, %p26
    %p28 = scmp.ne.s32.totalorder %s20, %s23
    %p29 = scmp.eq.s32.totalorder %s10, 0
    %p30 = por %p28, %p29
    %p31 = scmp.ne.s32.totalorder %s20, %s23
    %p32 = scmp.eq.s32.totalorder %s15, 1
    %p33 = por %p31, %p32
    %p34 = scmp.ne.s32.totalorder %s23, %s24
    %p35 = scmp.eq.s32.totalorder %s15, 0
    %p36 = por %p34, %p35
    %p37 = scmp.ne.s32.totalorder %s23, %s24
    %p38 = scmp.eq.s32.totalorder %s16, 1
    %p39 = por %p37, %p38
    %p41 = scmp.ne.s32.totalorder %s24, %s40
    %p42 = scmp.eq.s32.totalorder %s16, 0
    %p43 = por %p41, %p42
    %s45 = sadd.s32 %s44, 1
    %p48 = scmp.eq.s32.totalorder %s10, 1
    %p49 = scmp.ne.s32.totalorder %s44, %s46
    %p50 = scmp.eq.s32.totalorder %s10, 0
    %p51 = por %p49, %p50
    %p52 = scmp.ne.s32.totalorder %s44, %s46
    %p53 = scmp.eq.s32.totalorder %s15, 1
    %p54 = por %p52, %p53
    %p55 = scmp.ne.s32.totalorder %s46, %s47
    %p56 = scmp.eq.s32.totalorder %s15, 0
    %p57 = por %p55, %p56
    %p58 = scmp.ne.s32.totalorder %s46, %s47
    %p59 = scmp.eq.s32.totalorder %s16, 1
    %p60 = por %p58, %p59
    %p62 = scmp.ne.s32.totalorder %s47, %s61
    %p63 = scmp.eq.s32.totalorder %s16, 0
    %p64 = por %p62, %p63
    %s66 = sadd.s32 %s65, 1
    %p69 = scmp.eq.s32.totalorder %s10, 1
    %p70 = scmp.ne.s32.totalorder %s65, %s67
    %p71 = scmp.eq.s32.totalorder %s10, 0
    %p72 = por %p70, %p71
    %p73 = scmp.ne.s32.totalorder %s65, %s67
    %p74 = scmp.eq.s32.totalorder %s15, 1
    %p75 = por %p73, %p74
    %p76 = scmp.ne.s32.totalorder %s67, %s68
    %p77 = scmp.eq.s32.totalorder %s15, 0
    %p78 = por %p76, %p77
    %p79 = scmp.ne.s32.totalorder %s67, %s68
    %p80 = scmp.eq.s32.totalorder %s16, 1
    %p81 = por %p79, %p80
    %p83 = scmp.ne.s32.totalorder %s68, %s82
    %p84 = scmp.eq.s32.totalorder %s16, 0
    %p85 = por %p83, %p84
    %s86 = ssub.s32 %s10, %s17
    %p87 = scmp.eq.s32.totalorder %s86, 0
    %s89 = sadd.s32 %s88, 1
    %s90 = scalar_select %p87, %s88, %s89
    %p93 = pneg %p87
    %p94 = scmp.eq.s32.totalorder %s10, 1
    %p95 = por %p93, %p94
    %p96 = scmp.ne.s32.totalorder %s88, %s91
    %p97 = scmp.eq.s32.totalorder %s10, 0
    %p98 = por %p96, %p97
    %p99 = scmp.ne.s32.totalorder %s88, %s91
    %p100 = scmp.eq.s32.totalorder %s15, 1
    %p101 = por %p99, %p100
    %p102 = scmp.ne.s32.totalorder %s91, %s92
    %p103 = scmp.eq.s32.totalorder %s15, 0
    %p104 = por %p102, %p103
    %p105 = scmp.ne.s32.totalorder %s91, %s92
    %p106 = scmp.eq.s32.totalorder %s16, 1
    %p107 = por %p105, %p106
    %p109 = scmp.ne.s32.totalorder %s92, %s108
    %p110 = scmp.eq.s32.totalorder %s16, 0
    %p111 = por %p109, %p110
    %s112 = ssub.s32 %s10, %s17
    %p113 = scmp.eq.s32.totalorder %s112, 0
    %s115 = sadd.s32 %s114, 1
    %s116 = scalar_select %p113, %s114, %s115
    %p119 = pneg %p113
    %p120 = scmp.eq.s32.totalorder %s10, 1
    %p121 = por %p119, %p120
    %p122 = scmp.ne.s32.totalorder %s114, %s117
    %p123 = scmp.eq.s32.totalorder %s10, 0
    %p124 = por %p122, %p123
    %p125 = scmp.ne.s32.totalorder %s114, %s117
    %p126 = scmp.eq.s32.totalorder %s15, 1
    %p127 = por %p125, %p126
    %p128 = scmp.ne.s32.totalorder %s117, %s118
    %p129 = scmp.eq.s32.totalorder %s15, 0
    %p130 = por %p128, %p129
    %p131 = scmp.ne.s32.totalorder %s117, %s118
    %p132 = scmp.eq.s32.totalorder %s16, 1
    %p133 = por %p131, %p132
    %p135 = scmp.ne.s32.totalorder %s118, %s134
    %p136 = scmp.eq.s32.totalorder %s16, 0
    %p137 = por %p135, %p136
    %p138 = scmp.le.s32.totalorder 1, %s10
    %p139 = scmp.lt.s32.totalorder %s10, 3
    %p140 = pnand %p138, %p139
    %p141 = pneg %p140
    // Predicated region
    $region9: #{_lambda_.15} parent=5 // pred_check
      _
    $region10: #{_lambda_.15} parent=5 // pred_check_branch
      %143 = sbr.rel (%p140) target = $region12
    $region11: #{_lambda_.15} parent=5 // pred_region
      %s144 = ssub.s32 %s10, 1
      // Predicated region
      $region13: #{_lambda_.15} parent=11 // pred_check
        %p145 = pneg %p57
      $region14: #{_lambda_.15} parent=11 // pred_check_branch
        %147 = sbr.rel (%p145) target = $region16
      $region15: #{_lambda_.15} parent=11 // pred_region
        _
      $region16: #{_lambda_.15} parent=11 // pred_fallthru
        _
      // Predicated region
      $region17: #{_lambda_.15} parent=11 // pred_check
        %p148 = pneg %p78
      $region18: #{_lambda_.15} parent=11 // pred_check_branch
        %150 = sbr.rel (%p148) target = $region20
      $region19: #{_lambda_.15} parent=11 // pred_region
        _
      $region20: #{_lambda_.15} parent=11 // pred_fallthru
        _
    $region12: #{_lambda_.15} parent=5 // pred_fallthru
      _
    %p151 = scmp.lt.s32.totalorder %s10, 2
    // Predicated region
    $region21: #{_lambda_.15} parent=5 // pred_check
      %p152 = pneg %p151
    $region22: #{_lambda_.15} parent=5 // pred_check_branch
      %154 = sbr.rel (%p152) target = $region24
    $region23: #{_lambda_.15} parent=5 // pred_region
      // Predicated region
      $region25: #{_lambda_.15} parent=23 // pred_check
        %p155 = pneg %p30
      $region26: #{_lambda_.15} parent=23 // pred_check_branch
        %157 = sbr.rel (%p155) target = $region28
      $region27: #{_lambda_.15} parent=23 // pred_region
        %s158 = smul.u32 2, %s10
        %p159 = scmp.lt.s32.totalorder %s158, 3
        %s160 = scalar_select %p159, %s158, 3
        %s161 = smul.addr %s160, 3
        %s162 = smul.addr %s161, 4
        %s163 = scalar_lea.vmem %s0, %s162
        %s164 = smul.u32 2, %s10
      $region28: #{_lambda_.15} parent=23 // pred_fallthru
        _
      // Predicated region
      $region29: #{_lambda_.15} parent=23 // pred_check
        %p165 = pneg %p98
      $region30: #{_lambda_.15} parent=23 // pred_check_branch
        %167 = sbr.rel (%p165) target = $region32
      $region31: #{_lambda_.15} parent=23 // pred_region
        %s168 = smul.u32 2, %s10
        %p169 = scmp.lt.s32.totalorder %s168, 3
        %s170 = scalar_select %p169, %s168, 3
        %s171 = smul.addr %s170, 4
        %s172 = scalar_lea.vmem %s3, %s171
        %s173 = smul.u32 2, %s10
      $region32: #{_lambda_.15} parent=23 // pred_fallthru
        _
    $region24: #{_lambda_.15} parent=5 // pred_fallthru
      _
    %p174 = scmp.le.s32.totalorder 1, %s10
    %p175 = scmp.lt.s32.totalorder %s10, 3
    %p176 = pnand %p174, %p175
    %p177 = pneg %p176
    // Predicated region
    $region33: #{_lambda_.15} parent=5 // pred_check
      _
    $region34: #{_lambda_.15} parent=5 // pred_check_branch
      %179 = sbr.rel (%p176) target = $region36
    $region35: #{_lambda_.15} parent=5 // pred_region
      %s180 = ssub.s32 %s10, 1
      %s181 = smul.u32 2, %s15
      %p182 = scmp.lt.s32.totalorder %s181, 3
      %s183 = scalar_select %p182, %s181, 3
      %s184 = smul.addr %s183, 3
      %s185 = smul.addr %s184, 4
      %s186 = scalar_lea.vmem %s0, %s185
      %p187 = pneg %p36
      %p188 = pneg %p33
      %p189 = pneg %p57
      %p190 = pneg %p54
      %p191 = pneg %p78
      %p192 = pneg %p75
      %s193 = smul.u32 2, %s15
      %p194 = scmp.lt.s32.totalorder %s193, 3
      %s195 = scalar_select %p194, %s193, 3
      %s196 = smul.addr %s195, 4
      %s197 = scalar_lea.vmem %s3, %s196
      %p198 = pneg %p104
      %p199 = pneg %p101
      %p200 = pneg %p130
      %p201 = pneg %p127
      %s202 = smul.u32 2, %s15
      %p203 = scmp.lt.s32.totalorder %s202, 3
      %s204 = scalar_select %p203, %s202, 3
      %s205 = smul.addr %s204, 4
      %s206 = scalar_lea.vmem %s4, %s205
      %s207 = smul.u32 2, %s15
      %p208 = scmp.lt.s32.totalorder %s207, 3
      %s209 = scalar_select %p208, %s207, 3
      %s210 = smul.addr %s209, 3
      %s211 = smul.addr %s210, 4
      %s212 = scalar_lea.vmem %s0, %s211
      %s213 = smul.u32 2, %s15
      %s214 = smul.u32 2, %s15
      %p215 = scmp.lt.s32.totalorder %s214, 3
      %s216 = scalar_select %p215, %s214, 3
      %s217 = smul.addr %s216, 4
      %s218 = scalar_lea.vmem %s3, %s217
      %s219 = smul.u32 2, %s15
      %s220 = smul.u32 2, %s15
      %p221 = scmp.lt.s32.totalorder %s220, 3
      %s222 = scalar_select %p221, %s220, 3
      %s223 = smul.addr %s222, 4
      %s224 = scalar_lea.vmem %s4, %s223
      %s225 = smul.u32 2, %s15
      %v227 = vld [vmem:[%s212] sm:$0xff]
      %v228 = vld [vmem:[%s212 + $0x8] sm:$0xf]
      %v229 = vld [vmem:[%s212 + $0xc] sm:$0xff]
      %v230 = vld [vmem:[%s212 + $0x14] sm:$0xf]
      %v231 = vunpack.c.l.bf16 %v227
      %v232 = vunpack.c.h.bf16 %v227
      %v233 = vunpack.c.l.bf16 %v228
      %v234 = vunpack.c.l.bf16 %v229
      %v235 = vunpack.c.h.bf16 %v229
      %v236 = vunpack.c.l.bf16 %v230
      %v237 = vmax.f32 %v231, 0.0
      %v238 = vmax.f32 %v232, 0.0
      %v239 = vmax.f32 %v233, 0.0
      %v240 = vmax.f32 %v234, 0.0
      %v241 = vmax.f32 %v235, 0.0
      %v242 = vmax.f32 %v236, 0.0
      %v243 = vpack.c.bf16 %v240, %v237
      %v244 = vpack.c.bf16 %v241, %v238
      %v245 = vpack.c.bf16 %v242, %v239
      %v246 = vld [vmem:[%s1] sm:$0xf]
      %v247 = vld [vmem:[%s1 + $0x4] sm:$0xf]
      %v248 = vld [vmem:[%s1 + $0x8] sm:$0xf]
      %v249 = vld [vmem:[%s1 + $0xc] sm:$0xf]
      %v250 = vld [vmem:[%s1 + $0x10] sm:$0xf]
      %v251 = vld [vmem:[%s1 + $0x14] sm:$0xf]
      %v252 = vld [vmem:[%s1 + $0x18] sm:$0xf]
      %v253 = vld [vmem:[%s1 + $0x1c] sm:$0xf]
      %v254 = vld [vmem:[%s1 + $0x20] sm:$0xf]
      %v255 = vld [vmem:[%s1 + $0x24] sm:$0xf]
      %v256 = vld [vmem:[%s1 + $0x28] sm:$0xf]
      %v257 = vld [vmem:[%s1 + $0x2c] sm:$0xf]
      %v258 = vld [vmem:[%s1 + $0x30] sm:$0xf]
      %v259 = vld [vmem:[%s1 + $0x34] sm:$0xf]
      %v260 = vld [vmem:[%s1 + $0x38] sm:$0xf]
      %v261 = vld [vmem:[%s1 + $0x3c] sm:$0xf]
      %v262 = vld [vmem:[%s1 + $0x40] sm:$0xf]
      %v263 = vld [vmem:[%s1 + $0x44] sm:$0xf]
      %v264 = vld [vmem:[%s1 + $0x48] sm:$0xf]
      %v265 = vld [vmem:[%s1 + $0x4c] sm:$0xf]
      %v266 = vld [vmem:[%s1 + $0x50] sm:$0xf]
      %v267 = vld [vmem:[%s1 + $0x54] sm:$0xf]
      %v268 = vld [vmem:[%s1 + $0x58] sm:$0xf]
      %v269 = vld [vmem:[%s1 + $0x5c] sm:$0xf]
      %v270 = vld [vmem:[%s1 + $0x60] sm:$0xf]
      %v271 = vld [vmem:[%s1 + $0x64] sm:$0xf]
      %v272 = vld [vmem:[%s1 + $0x68] sm:$0xf]
      %v273 = vld [vmem:[%s1 + $0x6c] sm:$0xf]
      %v274 = vld [vmem:[%s1 + $0x70] sm:$0xf]
      %v275 = vld [vmem:[%s1 + $0x74] sm:$0xf]
      %v276 = vld [vmem:[%s1 + $0x78] sm:$0xf]
      %v277 = vld [vmem:[%s1 + $0x7c] sm:$0xf]
      %v278 = vld [vmem:[%s1 + $0x80] sm:$0xf]
      %v279 = vld [vmem:[%s1 + $0x84] sm:$0xf]
      %v280 = vld [vmem:[%s1 + $0x88] sm:$0xf]
      %v281 = vld [vmem:[%s1 + $0x8c] sm:$0xf]
      %v318 = vunpack.c.l.b16 %v246
      %v319 = vunpack.c.l.b16 %v247
      %v320 = vunpack.c.l.b16 %v248
      %v321 = vunpack.c.l.b16 %v249
      %v322 = vunpack.c.l.b16 %v250
      %v323 = vunpack.c.l.b16 %v251
      %v324 = vunpack.c.l.b16 %v252
      %v325 = vunpack.c.l.b16 %v253
      %v326 = vunpack.c.l.b16 %v254
      %v327 = vunpack.c.l.b16 %v255
      %v328 = vunpack.c.l.b16 %v256
      %v329 = vunpack.c.l.b16 %v257
      %v330 = vunpack.c.l.b16 %v258
      %v331 = vunpack.c.l.b16 %v259
      %v332 = vunpack.c.l.b16 %v260
      %v333 = vunpack.c.l.b16 %v261
      %v334 = vunpack.c.l.b16 %v262
      %v335 = vunpack.c.l.b16 %v263
      %v336 = vunpack.c.l.b16 %v264
      %v337 = vunpack.c.l.b16 %v265
      %v338 = vunpack.c.l.b16 %v266
      %v339 = vunpack.c.l.b16 %v267
      %v340 = vunpack.c.l.b16 %v268
      %v341 = vunpack.c.l.b16 %v269
      %v342 = vunpack.c.l.b16 %v270
      %v343 = vunpack.c.l.b16 %v271
      %v344 = vunpack.c.l.b16 %v272
      %v345 = vunpack.c.l.b16 %v273
      %v346 = vunpack.c.l.b16 %v274
      %v347 = vunpack.c.l.b16 %v275
      %v348 = vunpack.c.l.b16 %v276
      %v349 = vunpack.c.l.b16 %v277
      %v350 = vunpack.c.l.b16 %v278
      %v351 = vunpack.c.l.b16 %v279
      %v352 = vunpack.c.l.b16 %v280
      %v353 = vunpack.c.l.b16 %v281
      %v354 = vpack.c.b16 %v319, %v318
      %v355 = vpack.c.b16 %v321, %v320
      %v356 = vpack.c.b16 %v323, %v322
      %v357 = vpack.c.b16 %v325, %v324
      %v358 = vpack.c.b16 %v327, %v326
      %v359 = vpack.c.b16 %v329, %v328
      %v360 = vpack.c.b16 %v331, %v330
      %v361 = vpack.c.b16 %v333, %v332
      %v362 = vpack.c.b16 %v335, %v334
      %v363 = vpack.c.b16 %v337, %v336
      %v364 = vpack.c.b16 %v339, %v338
      %v365 = vpack.c.b16 %v341, %v340
      %v366 = vpack.c.b16 %v343, %v342
      %v367 = vpack.c.b16 %v345, %v344
      %v368 = vpack.c.b16 %v347, %v346
      %v369 = vpack.c.b16 %v349, %v348
      %v370 = vpack.c.b16 %v351, %v350
      %v371 = vpack.c.b16 %v353, %v352
      %vm390 = vcmask 261120
      %v392 = vsel %vm390, %v245, 0
      %394 = vmatpush.bf16.msra.mxu0 %v361
      %395 = vmatpush.bf16.msra.mxu0 %v360
      %396 = vmatpush.bf16.msra.mxu0 %v359
      %397 = vmatpush.bf16.msra.mxu0 %v358
      %398 = vmatpush.bf16.msra.mxu0 %v357
      %399 = vmatpush.bf16.msra.mxu0 %v356
      %400 = vmatpush.bf16.msra.mxu0 %v355
      %401 = vmatpush.bf16.msra.mxu0 %v354
      %402 = vmatmul.bf16.gmra.mxu0 %v243
      %v403 = vpop.f32.mrf.mxu0
      %v404 = vadd.f32 0.0, %v403
      %v405 = vpop.f32.mrf.mxu0
      %v406 = vadd.f32 0.0, %v405
      %407 = vdwg.mxu0
      %408 = vmatpush.bf16.msra.mxu0 %v369
      %409 = vmatpush.bf16.msra.mxu0 %v368
      %410 = vmatpush.bf16.msra.mxu0 %v367
      %411 = vmatpush.bf16.msra.mxu0 %v366
      %412 = vmatpush.bf16.msra.mxu0 %v365
      %413 = vmatpush.bf16.msra.mxu0 %v364
      %414 = vmatpush.bf16.msra.mxu0 %v363
      %415 = vmatpush.bf16.msra.mxu0 %v362
      %416 = vmatmul.bf16.gmra.mxu0 %v244
      %v417 = vpop.f32.mrf.mxu0
      %v418 = vadd.f32 %v404, %v417
      %v419 = vpop.f32.mrf.mxu0
      %v420 = vadd.f32 %v406, %v419
      %421 = vdwg.mxu0
      %422 = vmatpush.bf16.msra.mxu0 0
      %423 = vmatpush.bf16.msra.mxu0 0
      %424 = vmatpush.bf16.msra.mxu0 0
      %425 = vmatpush.bf16.msra.mxu0 0
      %426 = vmatpush.bf16.msra.mxu0 0
      %427 = vmatpush.bf16.msra.mxu0 0
      %428 = vmatpush.bf16.msra.mxu0 %v371
      %429 = vmatpush.bf16.msra.mxu0 %v370
      %430 = vmatmul.bf16.gmra.mxu0 %v392
      %v431 = vpop.f32.mrf.mxu0
      %v432 = vadd.f32 %v418, %v431
      %v433 = vpop.f32.mrf.mxu0
      %v434 = vadd.f32 %v420, %v433
      %435 = vdwg.mxu0
      %v436 = vmax.f32 %v432, 0.0
      %v437 = vmax.f32 %v434, 0.0
      %v438 = vpack.c.bf16 %v437, %v436
      %v439 = vld [vmem:[%s2] sm:$0xf]
      %v440 = vld [vmem:[%s2 + $0x4] sm:$0xf]
      %v441 = vld [vmem:[%s2 + $0x8] sm:$0xf]
      %v442 = vld [vmem:[%s2 + $0xc] sm:$0xf]
      %v443 = vld [vmem:[%s2 + $0x10] sm:$0xf]
      %v444 = vld [vmem:[%s2 + $0x14] sm:$0xf]
      %v445 = vld [vmem:[%s2 + $0x18] sm:$0xf]
      %v446 = vld [vmem:[%s2 + $0x1c] sm:$0xf]
      %v447 = vld [vmem:[%s2 + $0x20] sm:$0xf]
      %v448 = vld [vmem:[%s2 + $0x24] sm:$0xf]
      %v449 = vld [vmem:[%s2 + $0x28] sm:$0xf]
      %v450 = vld [vmem:[%s2 + $0x2c] sm:$0xf]
      %v451 = vld [vmem:[%s2 + $0x30] sm:$0xf]
      %v452 = vld [vmem:[%s2 + $0x34] sm:$0xf]
      %v453 = vld [vmem:[%s2 + $0x38] sm:$0xf]
      %v454 = vld [vmem:[%s2 + $0x3c] sm:$0xf]
      %v455 = vld [vmem:[%s218] sm:$0xf]
      %v456 = vld [vmem:[%s218 + $0x4] sm:$0xf]
      %v457 = vunpack.c.l.bf16 %v455
      %v458 = vunpack.c.l.bf16 %v456
      %v475 = vunpack.c.l.b16 %v439
      %v476 = vunpack.c.l.b16 %v440
      %v477 = vunpack.c.l.b16 %v441
      %v478 = vunpack.c.l.b16 %v442
      %v479 = vunpack.c.l.b16 %v443
      %v480 = vunpack.c.l.b16 %v444
      %v481 = vunpack.c.l.b16 %v445
      %v482 = vunpack.c.l.b16 %v446
      %v483 = vunpack.c.l.b16 %v447
      %v484 = vunpack.c.l.b16 %v448
      %v485 = vunpack.c.l.b16 %v449
      %v486 = vunpack.c.l.b16 %v450
      %v487 = vunpack.c.l.b16 %v451
      %v488 = vunpack.c.l.b16 %v452
      %v489 = vunpack.c.l.b16 %v453
      %v490 = vunpack.c.l.b16 %v454
      %v491 = vpack.c.b16 %v476, %v475
      %v492 = vpack.c.b16 %v478, %v477
      %v493 = vpack.c.b16 %v480, %v479
      %v494 = vpack.c.b16 %v482, %v481
      %v495 = vpack.c.b16 %v484, %v483
      %v496 = vpack.c.b16 %v486, %v485
      %v497 = vpack.c.b16 %v488, %v487
      %v498 = vpack.c.b16 %v490, %v489
      %507 = vmatpush.bf16.msra.mxu0 %v498
      %508 = vmatpush.bf16.msra.mxu0 %v497
      %509 = vmatpush.bf16.msra.mxu0 %v496
      %510 = vmatpush.bf16.msra.mxu0 %v495
      %511 = vmatpush.bf16.msra.mxu0 %v494
      %512 = vmatpush.bf16.msra.mxu0 %v493
      %513 = vmatpush.bf16.msra.mxu0 %v492
      %514 = vmatpush.bf16.msra.mxu0 %v491
      %515 = vmatmul.bf16.gmra.mxu0 %v438
      %v516 = vpop.f32.mrf.mxu0
      %v517 = vadd.f32 %v457, %v516
      %v518 = vpop.f32.mrf.mxu0
      %v519 = vadd.f32 %v458, %v518
      %520 = vdwg.mxu0
      %v521 = vpack.c.bf16 %v517, %v517
      %v522 = vpack.c.bf16 %v519, %v519
      %523 = vst [vmem:[%s224] sm:$0xf] %v521
      %524 = vst [vmem:[%s224 + $0x4] sm:$0xf] %v522
      %s525 = smul.u32 2, %s15
      %p526 = scmp.lt.s32.totalorder %s525, 3
      %s527 = scalar_select %p526, %s525, 3
      %s528 = smul.addr %s527, 4
      %s529 = scalar_lea.vmem %s4, %s528
      // Predicated region
      $region37: #{_lambda_.15} parent=35 // pred_check
        %p530 = pneg %p127
      $region38: #{_lambda_.15} parent=35 // pred_check_branch
        %532 = sbr.rel (%p530) target = $region40
      $region39: #{_lambda_.15} parent=35 // pred_region
        %s533 = smul.u32 2, %s15
      $region40: #{_lambda_.15} parent=35 // pred_fallthru
        _
    $region36: #{_lambda_.15} parent=5 // pred_fallthru
      _
    %p534 = scmp.le.s32.totalorder 2, %s10
    // Predicated region
    $region41: #{_lambda_.15} parent=5 // pred_check
      %p535 = pneg %p534
    $region42: #{_lambda_.15} parent=5 // pred_check_branch
      %537 = sbr.rel (%p535) target = $region44
    $region43: #{_lambda_.15} parent=5 // pred_region
      %s538 = ssub.s32 %s10, 2
      // Predicated region
      $region45: #{_lambda_.15} parent=43 // pred_check
        %p539 = pneg %p133
      $region46: #{_lambda_.15} parent=43 // pred_check_branch
        %541 = sbr.rel (%p539) target = $region48
      $region47: #{_lambda_.15} parent=43 // pred_region
        %s542 = smul.u32 2, %s16
        %p543 = scmp.lt.s32.totalorder %s542, 3
        %s544 = scalar_select %p543, %s542, 3
        %s545 = smul.addr %s544, 4
        %s546 = scalar_lea.vmem %s4, %s545
      $region48: #{_lambda_.15} parent=43 // pred_fallthru
        _
    $region44: #{_lambda_.15} parent=5 // pred_fallthru
      _
  $region6: #{_lambda_.15} parent=0 // loop_footer
    %s14 = sadd.s32 1, %s10
  $region7: #{_lambda_.15} parent=0 // loop_footer_branch
    %9 = sbr.rel target = $region3
  $region8: #{_lambda_.15} parent=0 // loop_exit
    _

// kernel: _lambda_.16
$region0: #{_lambda_.16}
  #allocation0 [shape = 'u32[]', space=smem, size = 0x4, offset = 0x4, fixed_abs, tag = 'smem constant byte address 0x4 - core index']
  #allocation1 [shape = 'u32[72,128]{1,0:T(1,128)}', space=vmem, size = 0x9000, scoped, tag = 'internal scratch']
  %s0 = inlined_call_operand.vmem [shape: bf16[32,288], index: 0, kind: input, shape index: {}]
  %s1 = inlined_call_operand.vmem [shape: bf16[288,128], index: 1, kind: input, shape index: {}]
  %s2 = inlined_call_operand.vmem [shape: bf16[128,128], index: 2, kind: input, shape index: {}]
  %s3 = inlined_call_operand.vmem [shape: bf16[32,128], index: 3, kind: input, shape index: {}]
  %s4 = inlined_call_operand.vmem [shape: bf16[32,128], index: 4, kind: output, shape index: {}]
  %s5 = sld [smem:[#allocation0]]
  $region49: #{_lambda_.16} parent=0
    _
  %s7 = ssub.s32 1, %s5
  %s8 = scalar_select 0, %s7, %s5
  loop: start=0, step=1, limit=4
  $region2: #{_lambda_.16} parent=0 // loop_pre_header
    _
  $region3: #{_lambda_.16} parent=0 // loop_header
    %s10 = sphi 0, %s14
    %p11 = scmp.ge.s32.totalorder %s10, 4
    %s20 = sphi 0, %s22
    %s23 = sphi 0, %s20
    %s24 = sphi 0, %s23
    %s40 = sphi 0, %s24
    %s44 = sphi 0, %s44
    %s46 = sphi 0, %s44
    %s47 = sphi 0, %s46
    %s61 = sphi 0, %s47
    %s65 = sphi 0, %s65
    %s67 = sphi 0, %s65
    %s68 = sphi 0, %s67
    %s82 = sphi 0, %s68
    %s88 = sphi 0, %s90
    %s91 = sphi 0, %s88
    %s92 = sphi 0, %s91
    %s108 = sphi 0, %s92
    %s114 = sphi 0, %s116
    %s117 = sphi 0, %s114
    %s118 = sphi 0, %s117
    %s134 = sphi 0, %s118
  $region4: #{_lambda_.16} parent=0 // loop_header_branch
    %13 = sbr.rel (%p11) target = $region8
  $region5: #{_lambda_.16} parent=0 // loop_body
    %s15 = ssub.s32 %s10, 1
    %s16 = ssub.s32 %s10, 2
    %s17 = sadd.s32 %s10, 1
    %s18 = ssub.s32 %s10, %s17
    %p19 = scmp.eq.s32.totalorder %s18, 0
    %s21 = sadd.s32 %s20, 1
    %s22 = scalar_select %p19, %s20, %s21
    %p25 = pneg %p19
    %p26 = scmp.eq.s32.totalorder %s10, 1
    %p27 = por %p25, %p26
    %p28 = scmp.ne.s32.totalorder %s20, %s23
    %p29 = scmp.eq.s32.totalorder %s10, 0
    %p30 = por %p28, %p29
    %p31 = scmp.ne.s32.totalorder %s20, %s23
    %p32 = scmp.eq.s32.totalorder %s15, 1
    %p33 = por %p31, %p32
    %p34 = scmp.ne.s32.totalorder %s23, %s24
    %p35 = scmp.eq.s32.totalorder %s15, 0
    %p36 = por %p34, %p35
    %p37 = scmp.ne.s32.totalorder %s23, %s24
    %p38 = scmp.eq.s32.totalorder %s16, 1
    %p39 = por %p37, %p38
    %p41 = scmp.ne.s32.totalorder %s24, %s40
    %p42 = scmp.eq.s32.totalorder %s16, 0
    %p43 = por %p41, %p42
    %s45 = sadd.s32 %s44, 1
    %p48 = scmp.eq.s32.totalorder %s10, 1
    %p49 = scmp.ne.s32.totalorder %s44, %s46
    %p50 = scmp.eq.s32.totalorder %s10, 0
    %p51 = por %p49, %p50
    %p52 = scmp.ne.s32.totalorder %s44, %s46
    %p53 = scmp.eq.s32.totalorder %s15, 1
    %p54 = por %p52, %p53
    %p55 = scmp.ne.s32.totalorder %s46, %s47
    %p56 = scmp.eq.s32.totalorder %s15, 0
    %p57 = por %p55, %p56
    %p58 = scmp.ne.s32.totalorder %s46, %s47
    %p59 = scmp.eq.s32.totalorder %s16, 1
    %p60 = por %p58, %p59
    %p62 = scmp.ne.s32.totalorder %s47, %s61
    %p63 = scmp.eq.s32.totalorder %s16, 0
    %p64 = por %p62, %p63
    %s66 = sadd.s32 %s65, 1
    %p69 = scmp.eq.s32.totalorder %s10, 1
    %p70 = scmp.ne.s32.totalorder %s65, %s67
    %p71 = scmp.eq.s32.totalorder %s10, 0
    %p72 = por %p70, %p71
    %p73 = scmp.ne.s32.totalorder %s65, %s67
    %p74 = scmp.eq.s32.totalorder %s15, 1
    %p75 = por %p73, %p74
    %p76 = scmp.ne.s32.totalorder %s67, %s68
    %p77 = scmp.eq.s32.totalorder %s15, 0
    %p78 = por %p76, %p77
    %p79 = scmp.ne.s32.totalorder %s67, %s68
    %p80 = scmp.eq.s32.totalorder %s16, 1
    %p81 = por %p79, %p80
    %p83 = scmp.ne.s32.totalorder %s68, %s82
    %p84 = scmp.eq.s32.totalorder %s16, 0
    %p85 = por %p83, %p84
    %s86 = ssub.s32 %s10, %s17
    %p87 = scmp.eq.s32.totalorder %s86, 0
    %s89 = sadd.s32 %s88, 1
    %s90 = scalar_select %p87, %s88, %s89
    %p93 = pneg %p87
    %p94 = scmp.eq.s32.totalorder %s10, 1
    %p95 = por %p93, %p94
    %p96 = scmp.ne.s32.totalorder %s88, %s91
    %p97 = scmp.eq.s32.totalorder %s10, 0
    %p98 = por %p96, %p97
    %p99 = scmp.ne.s32.totalorder %s88, %s91
    %p100 = scmp.eq.s32.totalorder %s15, 1
    %p101 = por %p99, %p100
    %p102 = scmp.ne.s32.totalorder %s91, %s92
    %p103 = scmp.eq.s32.totalorder %s15, 0
    %p104 = por %p102, %p103
    %p105 = scmp.ne.s32.totalorder %s91, %s92
    %p106 = scmp.eq.s32.totalorder %s16, 1
    %p107 = por %p105, %p106
    %p109 = scmp.ne.s32.totalorder %s92, %s108
    %p110 = scmp.eq.s32.totalorder %s16, 0
    %p111 = por %p109, %p110
    %s112 = ssub.s32 %s10, %s17
    %p113 = scmp.eq.s32.totalorder %s112, 0
    %s115 = sadd.s32 %s114, 1
    %s116 = scalar_select %p113, %s114, %s115
    %p119 = pneg %p113
    %p120 = scmp.eq.s32.totalorder %s10, 1
    %p121 = por %p119, %p120
    %p122 = scmp.ne.s32.totalorder %s114, %s117
    %p123 = scmp.eq.s32.totalorder %s10, 0
    %p124 = por %p122, %p123
    %p125 = scmp.ne.s32.totalorder %s114, %s117
    %p126 = scmp.eq.s32.totalorder %s15, 1
    %p127 = por %p125, %p126
    %p128 = scmp.ne.s32.totalorder %s117, %s118
    %p129 = scmp.eq.s32.totalorder %s15, 0
    %p130 = por %p128, %p129
    %p131 = scmp.ne.s32.totalorder %s117, %s118
    %p132 = scmp.eq.s32.totalorder %s16, 1
    %p133 = por %p131, %p132
    %p135 = scmp.ne.s32.totalorder %s118, %s134
    %p136 = scmp.eq.s32.totalorder %s16, 0
    %p137 = por %p135, %p136
    %p138 = scmp.le.s32.totalorder 1, %s10
    %p139 = scmp.lt.s32.totalorder %s10, 3
    %p140 = pnand %p138, %p139
    %p141 = pneg %p140
    // Predicated region
    $region9: #{_lambda_.16} parent=5 // pred_check
      _
    $region10: #{_lambda_.16} parent=5 // pred_check_branch
      %143 = sbr.rel (%p140) target = $region12
    $region11: #{_lambda_.16} parent=5 // pred_region
      %s144 = ssub.s32 %s10, 1
      // Predicated region
      $region13: #{_lambda_.16} parent=11 // pred_check
        %p145 = pneg %p57
      $region14: #{_lambda_.16} parent=11 // pred_check_branch
        %147 = sbr.rel (%p145) target = $region16
      $region15: #{_lambda_.16} parent=11 // pred_region
        _
      $region16: #{_lambda_.16} parent=11 // pred_fallthru
        _
      // Predicated region
      $region17: #{_lambda_.16} parent=11 // pred_check
        %p148 = pneg %p78
      $region18: #{_lambda_.16} parent=11 // pred_check_branch
        %150 = sbr.rel (%p148) target = $region20
      $region19: #{_lambda_.16} parent=11 // pred_region
        _
      $region20: #{_lambda_.16} parent=11 // pred_fallthru
        _
    $region12: #{_lambda_.16} parent=5 // pred_fallthru
      _
    %p151 = scmp.lt.s32.totalorder %s10, 2
    // Predicated region
    $region21: #{_lambda_.16} parent=5 // pred_check
      %p152 = pneg %p151
    $region22: #{_lambda_.16} parent=5 // pred_check_branch
      %154 = sbr.rel (%p152) target = $region24
    $region23: #{_lambda_.16} parent=5 // pred_region
      // Predicated region
      $region25: #{_lambda_.16} parent=23 // pred_check
        %p155 = pneg %p30
      $region26: #{_lambda_.16} parent=23 // pred_check_branch
        %157 = sbr.rel (%p155) target = $region28
      $region27: #{_lambda_.16} parent=23 // pred_region
        %s158 = smul.u32 2, %s10
        %p159 = scmp.lt.s32.totalorder %s158, 3
        %s160 = scalar_select %p159, %s158, 3
        %s161 = smul.addr %s160, 3
        %s162 = smul.addr %s161, 4
        %s163 = scalar_lea.vmem %s0, %s162
        %s164 = smul.u32 2, %s10
      $region28: #{_lambda_.16} parent=23 // pred_fallthru
        _
      // Predicated region
      $region29: #{_lambda_.16} parent=23 // pred_check
        %p165 = pneg %p98
      $region30: #{_lambda_.16} parent=23 // pred_check_branch
        %167 = sbr.rel (%p165) target = $region32
      $region31: #{_lambda_.16} parent=23 // pred_region
        %s168 = smul.u32 2, %s10
        %p169 = scmp.lt.s32.totalorder %s168, 3
        %s170 = scalar_select %p169, %s168, 3
        %s171 = smul.addr %s170, 4
        %s172 = scalar_lea.vmem %s3, %s171
        %s173 = smul.u32 2, %s10
      $region32: #{_lambda_.16} parent=23 // pred_fallthru
        _
    $region24: #{_lambda_.16} parent=5 // pred_fallthru
      _
    %p174 = scmp.le.s32.totalorder 1, %s10
    %p175 = scmp.lt.s32.totalorder %s10, 3
    %p176 = pnand %p174, %p175
    %p177 = pneg %p176
    // Predicated region
    $region33: #{_lambda_.16} parent=5 // pred_check
      _
    $region34: #{_lambda_.16} parent=5 // pred_check_branch
      %179 = sbr.rel (%p176) target = $region36
    $region35: #{_lambda_.16} parent=5 // pred_region
      %s180 = ssub.s32 %s10, 1
      %s181 = smul.u32 2, %s15
      %p182 = scmp.lt.s32.totalorder %s181, 3
      %s183 = scalar_select %p182, %s181, 3
      %s184 = smul.addr %s183, 3
      %s185 = smul.addr %s184, 4
      %s186 = scalar_lea.vmem %s0, %s185
      %p187 = pneg %p36
      %p188 = pneg %p33
      %p189 = pneg %p57
      %p190 = pneg %p54
      %p191 = pneg %p78
      %p192 = pneg %p75
      %s193 = smul.u32 2, %s15
      %p194 = scmp.lt.s32.totalorder %s193, 3
      %s195 = scalar_select %p194, %s193, 3
      %s196 = smul.addr %s195, 4
      %s197 = scalar_lea.vmem %s3, %s196
      %p198 = pneg %p104
      %p199 = pneg %p101
      %p200 = pneg %p130
      %p201 = pneg %p127
      %s202 = smul.u32 2, %s15
      %p203 = scmp.lt.s32.totalorder %s202, 3
      %s204 = scalar_select %p203, %s202, 3
      %s205 = smul.addr %s204, 4
      %s206 = scalar_lea.vmem %s4, %s205
      %s207 = smul.u32 2, %s15
      %p208 = scmp.lt.s32.totalorder %s207, 3
      %s209 = scalar_select %p208, %s207, 3
      %s210 = smul.addr %s209, 3
      %s211 = smul.addr %s210, 4
      %s212 = scalar_lea.vmem %s0, %s211
      %s213 = smul.u32 2, %s15
      %s214 = smul.u32 2, %s15
      %p215 = scmp.lt.s32.totalorder %s214, 3
      %s216 = scalar_select %p215, %s214, 3
      %s217 = smul.addr %s216, 4
      %s218 = scalar_lea.vmem %s3, %s217
      %s219 = smul.u32 2, %s15
      %s220 = smul.u32 2, %s15
      %p221 = scmp.lt.s32.totalorder %s220, 3
      %s222 = scalar_select %p221, %s220, 3
      %s223 = smul.addr %s222, 4
      %s224 = scalar_lea.vmem %s4, %s223
      %s225 = smul.u32 2, %s15
      %v227 = vld [vmem:[%s212] sm:$0xff]
      %v228 = vld [vmem:[%s212 + $0x8] sm:$0xf]
      %v229 = vld [vmem:[%s212 + $0xc] sm:$0xff]
      %v230 = vld [vmem:[%s212 + $0x14] sm:$0xf]
      %v231 = vunpack.c.l.bf16 %v227
      %v232 = vunpack.c.h.bf16 %v227
      %v233 = vunpack.c.l.bf16 %v228
      %v234 = vunpack.c.l.bf16 %v229
      %v235 = vunpack.c.h.bf16 %v229
      %v236 = vunpack.c.l.bf16 %v230
      %v237 = vmax.f32 %v231, 0.0
      %v238 = vmax.f32 %v232, 0.0
      %v239 = vmax.f32 %v233, 0.0
      %v240 = vmax.f32 %v234, 0.0
      %v241 = vmax.f32 %v235, 0.0
      %v242 = vmax.f32 %v236, 0.0
      %v243 = vpack.c.bf16 %v240, %v237
      %v244 = vpack.c.bf16 %v241, %v238
      %v245 = vpack.c.bf16 %v242, %v239
      %v246 = vld [vmem:[%s1] sm:$0xf]
      %v247 = vld [vmem:[%s1 + $0x4] sm:$0xf]
      %v248 = vld [vmem:[%s1 + $0x8] sm:$0xf]
      %v249 = vld [vmem:[%s1 + $0xc] sm:$0xf]
      %v250 = vld [vmem:[%s1 + $0x10] sm:$0xf]
      %v251 = vld [vmem:[%s1 + $0x14] sm:$0xf]
      %v252 = vld [vmem:[%s1 + $0x18] sm:$0xf]
      %v253 = vld [vmem:[%s1 + $0x1c] sm:$0xf]
      %v254 = vld [vmem:[%s1 + $0x20] sm:$0xf]
      %v255 = vld [vmem:[%s1 + $0x24] sm:$0xf]
      %v256 = vld [vmem:[%s1 + $0x28] sm:$0xf]
      %v257 = vld [vmem:[%s1 + $0x2c] sm:$0xf]
      %v258 = vld [vmem:[%s1 + $0x30] sm:$0xf]
      %v259 = vld [vmem:[%s1 + $0x34] sm:$0xf]
      %v260 = vld [vmem:[%s1 + $0x38] sm:$0xf]
      %v261 = vld [vmem:[%s1 + $0x3c] sm:$0xf]
      %v262 = vld [vmem:[%s1 + $0x40] sm:$0xf]
      %v263 = vld [vmem:[%s1 + $0x44] sm:$0xf]
      %v264 = vld [vmem:[%s1 + $0x48] sm:$0xf]
      %v265 = vld [vmem:[%s1 + $0x4c] sm:$0xf]
      %v266 = vld [vmem:[%s1 + $0x50] sm:$0xf]
      %v267 = vld [vmem:[%s1 + $0x54] sm:$0xf]
      %v268 = vld [vmem:[%s1 + $0x58] sm:$0xf]
      %v269 = vld [vmem:[%s1 + $0x5c] sm:$0xf]
      %v270 = vld [vmem:[%s1 + $0x60] sm:$0xf]
      %v271 = vld [vmem:[%s1 + $0x64] sm:$0xf]
      %v272 = vld [vmem:[%s1 + $0x68] sm:$0xf]
      %v273 = vld [vmem:[%s1 + $0x6c] sm:$0xf]
      %v274 = vld [vmem:[%s1 + $0x70] sm:$0xf]
      %v275 = vld [vmem:[%s1 + $0x74] sm:$0xf]
      %v276 = vld [vmem:[%s1 + $0x78] sm:$0xf]
      %v277 = vld [vmem:[%s1 + $0x7c] sm:$0xf]
      %v278 = vld [vmem:[%s1 + $0x80] sm:$0xf]
      %v279 = vld [vmem:[%s1 + $0x84] sm:$0xf]
      %v280 = vld [vmem:[%s1 + $0x88] sm:$0xf]
      %v281 = vld [vmem:[%s1 + $0x8c] sm:$0xf]
      %v318 = vunpack.c.l.b16 %v246
      %v319 = vunpack.c.l.b16 %v247
      %v320 = vunpack.c.l.b16 %v248
      %v321 = vunpack.c.l.b16 %v249
      %v322 = vunpack.c.l.b16 %v250
      %v323 = vunpack.c.l.b16 %v251
      %v324 = vunpack.c.l.b16 %v252
      %v325 = vunpack.c.l.b16 %v253
      %v326 = vunpack.c.l.b16 %v254
      %v327 = vunpack.c.l.b16 %v255
      %v328 = vunpack.c.l.b16 %v256
      %v329 = vunpack.c.l.b16 %v257
      %v330 = vunpack.c.l.b16 %v258
      %v331 = vunpack.c.l.b16 %v259
      %v332 = vunpack.c.l.b16 %v260
      %v333 = vunpack.c.l.b16 %v261
      %v334 = vunpack.c.l.b16 %v262
      %v335 = vunpack.c.l.b16 %v263
      %v336 = vunpack.c.l.b16 %v264
      %v337 = vunpack.c.l.b16 %v265
      %v338 = vunpack.c.l.b16 %v266
      %v339 = vunpack.c.l.b16 %v267
      %v340 = vunpack.c.l.b16 %v268
      %v341 = vunpack.c.l.b16 %v269
      %v342 = vunpack.c.l.b16 %v270
      %v343 = vunpack.c.l.b16 %v271
      %v344 = vunpack.c.l.b16 %v272
      %v345 = vunpack.c.l.b16 %v273
      %v346 = vunpack.c.l.b16 %v274
      %v347 = vunpack.c.l.b16 %v275
      %v348 = vunpack.c.l.b16 %v276
      %v349 = vunpack.c.l.b16 %v277
      %v350 = vunpack.c.l.b16 %v278
      %v351 = vunpack.c.l.b16 %v279
      %v352 = vunpack.c.l.b16 %v280
      %v353 = vunpack.c.l.b16 %v281
      %v354 = vpack.c.b16 %v319, %v318
      %v355 = vpack.c.b16 %v321, %v320
      %v356 = vpack.c.b16 %v323, %v322
      %v357 = vpack.c.b16 %v325, %v324
      %v358 = vpack.c.b16 %v327, %v326
      %v359 = vpack.c.b16 %v329, %v328
      %v360 = vpack.c.b16 %v331, %v330
      %v361 = vpack.c.b16 %v333, %v332
      %v362 = vpack.c.b16 %v335, %v334
      %v363 = vpack.c.b16 %v337, %v336
      %v364 = vpack.c.b16 %v339, %v338
      %v365 = vpack.c.b16 %v341, %v340
      %v366 = vpack.c.b16 %v343, %v342
      %v367 = vpack.c.b16 %v345, %v344
      %v368 = vpack.c.b16 %v347, %v346
      %v369 = vpack.c.b16 %v349, %v348
      %v370 = vpack.c.b16 %v351, %v350
      %v371 = vpack.c.b16 %v353, %v352
      %vm390 = vcmask 261120
      %v392 = vsel %vm390, %v245, 0
      %394 = vmatpush.bf16.msra.mxu0 %v361
      %395 = vmatpush.bf16.msra.mxu0 %v360
      %396 = vmatpush.bf16.msra.mxu0 %v359
      %397 = vmatpush.bf16.msra.mxu0 %v358
      %398 = vmatpush.bf16.msra.mxu0 %v357
      %399 = vmatpush.bf16.msra.mxu0 %v356
      %400 = vmatpush.bf16.msra.mxu0 %v355
      %401 = vmatpush.bf16.msra.mxu0 %v354
      %402 = vmatmul.bf16.gmra.mxu0 %v243
      %v403 = vpop.f32.mrf.mxu0
      %v404 = vadd.f32 0.0, %v403
      %v405 = vpop.f32.mrf.mxu0
      %v406 = vadd.f32 0.0, %v405
      %407 = vdwg.mxu0
      %408 = vmatpush.bf16.msra.mxu0 %v369
      %409 = vmatpush.bf16.msra.mxu0 %v368
      %410 = vmatpush.bf16.msra.mxu0 %v367
      %411 = vmatpush.bf16.msra.mxu0 %v366
      %412 = vmatpush.bf16.msra.mxu0 %v365
      %413 = vmatpush.bf16.msra.mxu0 %v364
      %414 = vmatpush.bf16.msra.mxu0 %v363
      %415 = vmatpush.bf16.msra.mxu0 %v362
      %416 = vmatmul.bf16.gmra.mxu0 %v244
      %v417 = vpop.f32.mrf.mxu0
      %v418 = vadd.f32 %v404, %v417
      %v419 = vpop.f32.mrf.mxu0
      %v420 = vadd.f32 %v406, %v419
      %421 = vdwg.mxu0
      %422 = vmatpush.bf16.msra.mxu0 0
      %423 = vmatpush.bf16.msra.mxu0 0
      %424 = vmatpush.bf16.msra.mxu0 0
      %425 = vmatpush.bf16.msra.mxu0 0
      %426 = vmatpush.bf16.msra.mxu0 0
      %427 = vmatpush.bf16.msra.mxu0 0
      %428 = vmatpush.bf16.msra.mxu0 %v371
      %429 = vmatpush.bf16.msra.mxu0 %v370
      %430 = vmatmul.bf16.gmra.mxu0 %v392
      %v431 = vpop.f32.mrf.mxu0
      %v432 = vadd.f32 %v418, %v431
      %v433 = vpop.f32.mrf.mxu0
      %v434 = vadd.f32 %v420, %v433
      %435 = vdwg.mxu0
      %v436 = vmax.f32 %v432, 0.0
      %v437 = vmax.f32 %v434, 0.0
      %v438 = vpack.c.bf16 %v437, %v436
      %v439 = vld [vmem:[%s2] sm:$0xf]
      %v440 = vld [vmem:[%s2 + $0x4] sm:$0xf]
      %v441 = vld [vmem:[%s2 + $0x8] sm:$0xf]
      %v442 = vld [vmem:[%s2 + $0xc] sm:$0xf]
      %v443 = vld [vmem:[%s2 + $0x10] sm:$0xf]
      %v444 = vld [vmem:[%s2 + $0x14] sm:$0xf]
      %v445 = vld [vmem:[%s2 + $0x18] sm:$0xf]
      %v446 = vld [vmem:[%s2 + $0x1c] sm:$0xf]
      %v447 = vld [vmem:[%s2 + $0x20] sm:$0xf]
      %v448 = vld [vmem:[%s2 + $0x24] sm:$0xf]
      %v449 = vld [vmem:[%s2 + $0x28] sm:$0xf]
      %v450 = vld [vmem:[%s2 + $0x2c] sm:$0xf]
      %v451 = vld [vmem:[%s2 + $0x30] sm:$0xf]
      %v452 = vld [vmem:[%s2 + $0x34] sm:$0xf]
      %v453 = vld [vmem:[%s2 + $0x38] sm:$0xf]
      %v454 = vld [vmem:[%s2 + $0x3c] sm:$0xf]
      %v455 = vld [vmem:[%s218] sm:$0xf]
      %v456 = vld [vmem:[%s218 + $0x4] sm:$0xf]
      %v457 = vunpack.c.l.bf16 %v455
      %v458 = vunpack.c.l.bf16 %v456
      %v475 = vunpack.c.l.b16 %v439
      %v476 = vunpack.c.l.b16 %v440
      %v477 = vunpack.c.l.b16 %v441
      %v478 = vunpack.c.l.b16 %v442
      %v479 = vunpack.c.l.b16 %v443
      %v480 = vunpack.c.l.b16 %v444
      %v481 = vunpack.c.l.b16 %v445
      %v482 = vunpack.c.l.b16 %v446
      %v483 = vunpack.c.l.b16 %v447
      %v484 = vunpack.c.l.b16 %v448
      %v485 = vunpack.c.l.b16 %v449
      %v486 = vunpack.c.l.b16 %v450
      %v487 = vunpack.c.l.b16 %v451
      %v488 = vunpack.c.l.b16 %v452
      %v489 = vunpack.c.l.b16 %v453
      %v490 = vunpack.c.l.b16 %v454
      %v491 = vpack.c.b16 %v476, %v475
      %v492 = vpack.c.b16 %v478, %v477
      %v493 = vpack.c.b16 %v480, %v479
      %v494 = vpack.c.b16 %v482, %v481
      %v495 = vpack.c.b16 %v484, %v483
      %v496 = vpack.c.b16 %v486, %v485
      %v497 = vpack.c.b16 %v488, %v487
      %v498 = vpack.c.b16 %v490, %v489
      %507 = vmatpush.bf16.msra.mxu0 %v498
      %508 = vmatpush.bf16.msra.mxu0 %v497
      %509 = vmatpush.bf16.msra.mxu0 %v496
      %510 = vmatpush.bf16.msra.mxu0 %v495
      %511 = vmatpush.bf16.msra.mxu0 %v494
      %512 = vmatpush.bf16.msra.mxu0 %v493
      %513 = vmatpush.bf16.msra.mxu0 %v492
      %514 = vmatpush.bf16.msra.mxu0 %v491
      %515 = vmatmul.bf16.gmra.mxu0 %v438
      %v516 = vpop.f32.mrf.mxu0
      %v517 = vadd.f32 %v457, %v516
      %v518 = vpop.f32.mrf.mxu0
      %v519 = vadd.f32 %v458, %v518
      %520 = vdwg.mxu0
      %v521 = vmax.f32 %v517, 0.0
      %v522 = vmax.f32 %v519, 0.0
      %v523 = vpack.c.bf16 %v521, %v521
      %v524 = vpack.c.bf16 %v522, %v522
      %525 = vst [vmem:[%s224] sm:$0xf] %v523
      %526 = vst [vmem:[%s224 + $0x4] sm:$0xf] %v524
      %s527 = smul.u32 2, %s15
      %p528 = scmp.lt.s32.totalorder %s527, 3
      %s529 = scalar_select %p528, %s527, 3
      %s530 = smul.addr %s529, 4
      %s531 = scalar_lea.vmem %s4, %s530
      // Predicated region
      $region37: #{_lambda_.16} parent=35 // pred_check
        %p532 = pneg %p127
      $region38: #{_lambda_.16} parent=35 // pred_check_branch
        %534 = sbr.rel (%p532) target = $region40
      $region39: #{_lambda_.16} parent=35 // pred_region
        %s535 = smul.u32 2, %s15
      $region40: #{_lambda_.16} parent=35 // pred_fallthru
        _
    $region36: #{_lambda_.16} parent=5 // pred_fallthru
      _
    %p536 = scmp.le.s32.totalorder 2, %s10
    // Predicated region
    $region41: #{_lambda_.16} parent=5 // pred_check
      %p537 = pneg %p536
    $region42: #{_lambda_.16} parent=5 // pred_check_branch
      %539 = sbr.rel (%p537) target = $region44
    $region43: #{_lambda_.16} parent=5 // pred_region
      %s540 = ssub.s32 %s10, 2
      // Predicated region
      $region45: #{_lambda_.16} parent=43 // pred_check
        %p541 = pneg %p133
      $region46: #{_lambda_.16} parent=43 // pred_check_branch
        %543 = sbr.rel (%p541) target = $region48
      $region47: #{_lambda_.16} parent=43 // pred_region
        %s544 = smul.u32 2, %s16
        %p545 = scmp.lt.s32.totalorder %s544, 3
        %s546 = scalar_select %p545, %s544, 3
        %s547 = smul.addr %s546, 4
        %s548 = scalar_lea.vmem %s4, %s547
      $region48: #{_lambda_.16} parent=43 // pred_fallthru
        _
    $region44: #{_lambda_.16} parent=5 // pred_fallthru
      _
  $region6: #{_lambda_.16} parent=0 // loop_footer
    %s14 = sadd.s32 1, %s10
  $region7: #{_lambda_.16} parent=0 // loop_footer_branch
    %9 = sbr.rel target = $region3
  $region8: #{_lambda_.16} parent=0 // loop_exit
    _

// kernel: _lambda_.17
$region0: #{_lambda_.17}
  #allocation0 [shape = 'u32[]', space=smem, size = 0x4, offset = 0x4, fixed_abs, tag = 'smem constant byte address 0x4 - core index']
  #allocation1 [shape = 'u32[72,128]{1,0:T(1,128)}', space=vmem, size = 0x9000, scoped, tag = 'internal scratch']
  %s0 = inlined_call_operand.vmem [shape: bf16[32,128], index: 0, kind: input, shape index: {}]
  %s1 = inlined_call_operand.vmem [shape: bf16[128,128], index: 1, kind: input, shape index: {}]
  %s2 = inlined_call_operand.vmem [shape: f32[1,128], index: 2, kind: input, shape index: {}]
  %s3 = inlined_call_operand.vmem [shape: f32[32,128], index: 3, kind: output, shape index: {}]
  %s4 = sld [smem:[#allocation0]]
  $region45: #{_lambda_.17} parent=0
    _
  %s6 = ssub.s32 1, %s4
  %s7 = scalar_select 0, %s6, %s4
  loop: start=0, step=1, limit=4
  $region2: #{_lambda_.17} parent=0 // loop_pre_header
    _
  $region3: #{_lambda_.17} parent=0 // loop_header
    %s9 = sphi 0, %s13
    %p10 = scmp.ge.s32.totalorder %s9, 4
    %s16 = sphi 0, %s28
    %s17 = sphi 0, %s24
    %s18 = sphi 0, %s16
    %s19 = sphi 0, %s17
    %s20 = sphi 0, %s18
    %s21 = sphi 0, %s19
    %s31 = sphi 0, %s33
    %s34 = sphi 0, %s31
    %s35 = sphi 0, %s34
    %s51 = sphi 0, %s35
    %s57 = sphi 0, %s59
    %s60 = sphi 0, %s57
    %s61 = sphi 0, %s60
    %s77 = sphi 0, %s61
    %s83 = sphi 0, %s85
    %s86 = sphi 0, %s83
    %s87 = sphi 0, %s86
    %s103 = sphi 0, %s87
    %s111 = sphi 0, %s113
    %s114 = sphi 0, %s111
    %s115 = sphi 0, %s114
    %s131 = sphi 0, %s115
  $region4: #{_lambda_.17} parent=0 // loop_header_branch
    %12 = sbr.rel (%p10) target = $region8
  $region5: #{_lambda_.17} parent=0 // loop_body
    %s14 = ssub.s32 %s9, 1
    %s15 = ssub.s32 %s9, 2
    %s22 = sadd.s32 1, %s17
    %p23 = scmp.ge.s32.totalorder %s22, 1
    %s24 = scalar_select %p23, 0, %s22
    %s25 = sadd.s32 1, %s16
    %s26 = scalar_select %p23, %s25, %s16
    %p27 = scmp.ge.s32.totalorder %s26, 2
    %s28 = scalar_select %p27, 0, %s26
    %s29 = ssub.s32 %s16, %s28
    %p30 = scmp.eq.s32.totalorder %s29, 0
    %s32 = sadd.s32 %s31, 1
    %s33 = scalar_select %p30, %s31, %s32
    %p36 = pneg %p30
    %p37 = scmp.eq.s32.totalorder %s9, 1
    %p38 = por %p36, %p37
    %p39 = scmp.ne.s32.totalorder %s31, %s34
    %p40 = scmp.eq.s32.totalorder %s9, 0
    %p41 = por %p39, %p40
    %p42 = scmp.ne.s32.totalorder %s31, %s34
    %p43 = scmp.eq.s32.totalorder %s14, 1
    %p44 = por %p42, %p43
    %p45 = scmp.ne.s32.totalorder %s34, %s35
    %p46 = scmp.eq.s32.totalorder %s14, 0
    %p47 = por %p45, %p46
    %p48 = scmp.ne.s32.totalorder %s34, %s35
    %p49 = scmp.eq.s32.totalorder %s15, 1
    %p50 = por %p48, %p49
    %p52 = scmp.ne.s32.totalorder %s35, %s51
    %p53 = scmp.eq.s32.totalorder %s15, 0
    %p54 = por %p52, %p53
    %s55 = ssub.s32 %s17, %s24
    %p56 = scmp.eq.s32.totalorder %s55, 0
    %s58 = sadd.s32 %s57, 1
    %s59 = scalar_select %p56, %s57, %s58
    %p62 = pneg %p56
    %p63 = scmp.eq.s32.totalorder %s9, 1
    %p64 = por %p62, %p63
    %p65 = scmp.ne.s32.totalorder %s57, %s60
    %p66 = scmp.eq.s32.totalorder %s9, 0
    %p67 = por %p65, %p66
    %p68 = scmp.ne.s32.totalorder %s57, %s60
    %p69 = scmp.eq.s32.totalorder %s14, 1
    %p70 = por %p68, %p69
    %p71 = scmp.ne.s32.totalorder %s60, %s61
    %p72 = scmp.eq.s32.totalorder %s14, 0
    %p73 = por %p71, %p72
    %p74 = scmp.ne.s32.totalorder %s60, %s61
    %p75 = scmp.eq.s32.totalorder %s15, 1
    %p76 = por %p74, %p75
    %p78 = scmp.ne.s32.totalorder %s61, %s77
    %p79 = scmp.eq.s32.totalorder %s15, 0
    %p80 = por %p78, %p79
    %s81 = ssub.s32 %s17, %s24
    %p82 = scmp.eq.s32.totalorder %s81, 0
    %s84 = sadd.s32 %s83, 1
    %s85 = scalar_select %p82, %s83, %s84
    %p88 = pneg %p82
    %p89 = scmp.eq.s32.totalorder %s9, 1
    %p90 = por %p88, %p89
    %p91 = scmp.ne.s32.totalorder %s83, %s86
    %p92 = scmp.eq.s32.totalorder %s9, 0
    %p93 = por %p91, %p92
    %p94 = scmp.ne.s32.totalorder %s83, %s86
    %p95 = scmp.eq.s32.totalorder %s14, 1
    %p96 = por %p94, %p95
    %p97 = scmp.ne.s32.totalorder %s86, %s87
    %p98 = scmp.eq.s32.totalorder %s14, 0
    %p99 = por %p97, %p98
    %p100 = scmp.ne.s32.totalorder %s86, %s87
    %p101 = scmp.eq.s32.totalorder %s15, 1
    %p102 = por %p100, %p101
    %p104 = scmp.ne.s32.totalorder %s87, %s103
    %p105 = scmp.eq.s32.totalorder %s15, 0
    %p106 = por %p104, %p105
    %s107 = ssub.s32 %s16, %s28
    %s108 = ssub.s32 %s17, %s24
    %s109 = sor.u32 %s107, %s108
    %p110 = scmp.eq.s32.totalorder %s109, 0
    %s112 = sadd.s32 %s111, 1
    %s113 = scalar_select %p110, %s111, %s112
    %p116 = pneg %p110
    %p117 = scmp.eq.s32.totalorder %s9, 1
    %p118 = por %p116, %p117
    %p119 = scmp.ne.s32.totalorder %s111, %s114
    %p120 = scmp.eq.s32.totalorder %s9, 0
    %p121 = por %p119, %p120
    %p122 = scmp.ne.s32.totalorder %s111, %s114
    %p123 = scmp.eq.s32.totalorder %s14, 1
    %p124 = por %p122, %p123
    %p125 = scmp.ne.s32.totalorder %s114, %s115
    %p126 = scmp.eq.s32.totalorder %s14, 0
    %p127 = por %p125, %p126
    %p128 = scmp.ne.s32.totalorder %s114, %s115
    %p129 = scmp.eq.s32.totalorder %s15, 1
    %p130 = por %p128, %p129
    %p132 = scmp.ne.s32.totalorder %s115, %s131
    %p133 = scmp.eq.s32.totalorder %s15, 0
    %p134 = por %p132, %p133
    %p135 = scmp.le.s32.totalorder 1, %s9
    %p136 = scmp.lt.s32.totalorder %s9, 3
    %p137 = pnand %p135, %p136
    %p138 = pneg %p137
    // Predicated region
    $region9: #{_lambda_.17} parent=5 // pred_check
      _
    $region10: #{_lambda_.17} parent=5 // pred_check_branch
      %140 = sbr.rel (%p137) target = $region12
    $region11: #{_lambda_.17} parent=5 // pred_region
      %s141 = ssub.s32 %s9, 1
      // Predicated region
      $region13: #{_lambda_.17} parent=11 // pred_check
        %p142 = pneg %p73
      $region14: #{_lambda_.17} parent=11 // pred_check_branch
        %144 = sbr.rel (%p142) target = $region16
      $region15: #{_lambda_.17} parent=11 // pred_region
        %p145 = scmp.lt.s32.totalorder %s19, 0
        %s146 = scalar_select %p145, %s19, 0
        %s147 = smul.addr %s146, 4
        %s148 = scalar_lea.vmem %s1, %s147
      $region16: #{_lambda_.17} parent=11 // pred_fallthru
        _
      // Predicated region
      $region17: #{_lambda_.17} parent=11 // pred_check
        %p149 = pneg %p99
      $region18: #{_lambda_.17} parent=11 // pred_check_branch
        %151 = sbr.rel (%p149) target = $region20
      $region19: #{_lambda_.17} parent=11 // pred_region
        %p152 = scmp.lt.s32.totalorder %s19, 0
        %s153 = scalar_select %p152, %s19, 0
        %s154 = scalar_lea.vmem %s2, %s153
      $region20: #{_lambda_.17} parent=11 // pred_fallthru
        _
    $region12: #{_lambda_.17} parent=5 // pred_fallthru
      _
    %p155 = scmp.lt.s32.totalorder %s9, 2
    // Predicated region
    $region21: #{_lambda_.17} parent=5 // pred_check
      %p156 = pneg %p155
    $region22: #{_lambda_.17} parent=5 // pred_check_branch
      %158 = sbr.rel (%p156) target = $region24
    $region23: #{_lambda_.17} parent=5 // pred_region
      // Predicated region
      $region25: #{_lambda_.17} parent=23 // pred_check
        %p159 = pneg %p41
      $region26: #{_lambda_.17} parent=23 // pred_check_branch
        %161 = sbr.rel (%p159) target = $region28
      $region27: #{_lambda_.17} parent=23 // pred_region
        %s162 = smul.u32 2, %s16
        %p163 = scmp.lt.s32.totalorder %s162, 3
        %s164 = scalar_select %p163, %s162, 3
        %s165 = smul.addr %s164, 4
        %s166 = scalar_lea.vmem %s0, %s165
        %s167 = smul.u32 2, %s16
      $region28: #{_lambda_.17} parent=23 // pred_fallthru
        _
    $region24: #{_lambda_.17} parent=5 // pred_fallthru
      _
    %p168 = scmp.le.s32.totalorder 1, %s9
    %p169 = scmp.lt.s32.totalorder %s9, 3
    %p170 = pnand %p168, %p169
    %p171 = pneg %p170
    // Predicated region
    $region29: #{_lambda_.17} parent=5 // pred_check
      _
    $region30: #{_lambda_.17} parent=5 // pred_check_branch
      %173 = sbr.rel (%p170) target = $region32
    $region31: #{_lambda_.17} parent=5 // pred_region
      %s174 = ssub.s32 %s9, 1
      %s175 = smul.u32 2, %s18
      %p176 = scmp.lt.s32.totalorder %s175, 3
      %s177 = scalar_select %p176, %s175, 3
      %s178 = smul.addr %s177, 4
      %s179 = scalar_lea.vmem %s0, %s178
      %p180 = pneg %p47
      %p181 = pneg %p44
      %p182 = scmp.lt.s32.totalorder %s19, 0
      %s183 = scalar_select %p182, %s19, 0
      %s184 = smul.addr %s183, 4
      %s185 = scalar_lea.vmem %s1, %s184
      %p186 = pneg %p73
      %p187 = pneg %p70
      %p188 = scmp.lt.s32.totalorder %s19, 0
      %s189 = scalar_select %p188, %s19, 0
      %s190 = scalar_lea.vmem %s2, %s189
      %p191 = pneg %p99
      %p192 = pneg %p96
      %p193 = pneg %p127
      %p194 = pneg %p124
      %s195 = smul.u32 2, %s18
      %p196 = scmp.lt.s32.totalorder %s195, 3
      %s197 = scalar_select %p196, %s195, 3
      %p198 = scmp.lt.s32.totalorder %s19, 0
      %s199 = scalar_select %p198, %s19, 0
      %s200 = sadd.s32 %s199, %s197
      %s201 = smul.addr %s200, 8
      %s202 = scalar_lea.vmem %s3, %s201
      %s203 = smul.u32 2, %s18
      %p204 = scmp.lt.s32.totalorder %s203, 3
      %s205 = scalar_select %p204, %s203, 3
      %s206 = smul.addr %s205, 4
      %s207 = scalar_lea.vmem %s0, %s206
      %s208 = smul.u32 2, %s18
      %p209 = scmp.lt.s32.totalorder %s19, 0
      %s210 = scalar_select %p209, %s19, 0
      %s211 = smul.addr %s210, 4
      %s212 = scalar_lea.vmem %s1, %s211
      %p213 = scmp.lt.s32.totalorder %s19, 0
      %s214 = scalar_select %p213, %s19, 0
      %s215 = scalar_lea.vmem %s2, %s214
      %s216 = smul.u32 2, %s18
      %p217 = scmp.lt.s32.totalorder %s216, 3
      %s218 = scalar_select %p217, %s216, 3
      %p219 = scmp.lt.s32.totalorder %s19, 0
      %s220 = scalar_select %p219, %s19, 0
      %s221 = sadd.s32 %s220, %s218
      %s222 = smul.addr %s221, 8
      %s223 = scalar_lea.vmem %s3, %s222
      %s224 = smul.u32 2, %s18
      %v225 = vld [vmem:[%s207] sm:$0xf]
      %v226 = vld [vmem:[%s207 + $0x4] sm:$0xf]
      %v227 = vld [vmem:[%s212] sm:$0xf]
      %v228 = vld [vmem:[%s212 + $0x4] sm:$0xf]
      %v229 = vld [vmem:[%s212 + $0x8] sm:$0xf]
      %v230 = vld [vmem:[%s212 + $0xc] sm:$0xf]
      %v231 = vld [vmem:[%s212 + $0x10] sm:$0xf]
      %v232 = vld [vmem:[%s212 + $0x14] sm:$0xf]
      %v233 = vld [vmem:[%s212 + $0x18] sm:$0xf]
      %v234 = vld [vmem:[%s212 + $0x1c] sm:$0xf]
      %v235 = vld [vmem:[%s212 + $0x20] sm:$0xf]
      %v236 = vld [vmem:[%s212 + $0x24] sm:$0xf]
      %v237 = vld [vmem:[%s212 + $0x28] sm:$0xf]
      %v238 = vld [vmem:[%s212 + $0x2c] sm:$0xf]
      %v239 = vld [vmem:[%s212 + $0x30] sm:$0xf]
      %v240 = vld [vmem:[%s212 + $0x34] sm:$0xf]
      %v241 = vld [vmem:[%s212 + $0x38] sm:$0xf]
      %v242 = vld [vmem:[%s212 + $0x3c] sm:$0xf]
      %v243 = vld [vmem:[%s215] sm:$0x1]
      %v245 = vperm.slane %v243, 0
      %v249 = vunpack.c.l.b16 %v225
      %v250 = vunpack.c.l.b16 %v226
      %v251 = vpack.c.b16 %v250, %v249
      %v269 = vunpack.c.l.b16 %v227
      %v270 = vunpack.c.l.b16 %v228
      %v271 = vunpack.c.l.b16 %v229
      %v272 = vunpack.c.l.b16 %v230
      %v273 = vunpack.c.l.b16 %v231
      %v274 = vunpack.c.l.b16 %v232
      %v275 = vunpack.c.l.b16 %v233
      %v276 = vunpack.c.l.b16 %v234
      %v277 = vunpack.c.l.b16 %v235
      %v278 = vunpack.c.l.b16 %v236
      %v279 = vunpack.c.l.b16 %v237
      %v280 = vunpack.c.l.b16 %v238
      %v281 = vunpack.c.l.b16 %v239
      %v282 = vunpack.c.l.b16 %v240
      %v283 = vunpack.c.l.b16 %v241
      %v284 = vunpack.c.l.b16 %v242
      %v285 = vpack.c.b16 %v270, %v269
      %v286 = vpack.c.b16 %v272, %v271
      %v287 = vpack.c.b16 %v274, %v273
      %v288 = vpack.c.b16 %v276, %v275
      %v289 = vpack.c.b16 %v278, %v277
      %v290 = vpack.c.b16 %v280, %v279
      %v291 = vpack.c.b16 %v282, %v281
      %v292 = vpack.c.b16 %v284, %v283
      %301 = vmatpush.bf16.msra.mxu0 %v292
      %302 = vmatpush.bf16.msra.mxu0 %v291
      %303 = vmatpush.bf16.msra.mxu0 %v290
      %304 = vmatpush.bf16.msra.mxu0 %v289
      %305 = vmatpush.bf16.msra.mxu0 %v288
      %306 = vmatpush.bf16.msra.mxu0 %v287
      %307 = vmatpush.bf16.msra.mxu0 %v286
      %308 = vmatpush.bf16.msra.mxu0 %v285
      %309 = vmatmul.bf16.gmra.mxu0 %v251
      %v310 = vpop.f32.mrf.mxu0
      %v311 = vadd.f32 %v245, %v310
      %v312 = vpop.f32.mrf.mxu0
      %v313 = vadd.f32 %v245, %v312
      %314 = vdwg.mxu0
      %315 = vst [vmem:[%s223] sm:$0xff] %v311
      %316 = vst [vmem:[%s223 + $0x8] sm:$0xff] %v313
      %s317 = smul.u32 2, %s18
      %p318 = scmp.lt.s32.totalorder %s317, 3
      %s319 = scalar_select %p318, %s317, 3
      %p320 = scmp.lt.s32.totalorder %s19, 0
      %s321 = scalar_select %p320, %s19, 0
      %s322 = sadd.s32 %s321, %s319
      %s323 = smul.addr %s322, 8
      %s324 = scalar_lea.vmem %s3, %s323
      // Predicated region
      $region33: #{_lambda_.17} parent=31 // pred_check
        %p325 = pneg %p124
      $region34: #{_lambda_.17} parent=31 // pred_check_branch
        %327 = sbr.rel (%p325) target = $region36
      $region35: #{_lambda_.17} parent=31 // pred_region
        %s328 = smul.u32 2, %s18
      $region36: #{_lambda_.17} parent=31 // pred_fallthru
        _
    $region32: #{_lambda_.17} parent=5 // pred_fallthru
      _
    %p329 = scmp.le.s32.totalorder 2, %s9
    // Predicated region
    $region37: #{_lambda_.17} parent=5 // pred_check
      %p330 = pneg %p329
    $region38: #{_lambda_.17} parent=5 // pred_check_branch
      %332 = sbr.rel (%p330) target = $region40
    $region39: #{_lambda_.17} parent=5 // pred_region
      %s333 = ssub.s32 %s9, 2
      // Predicated region
      $region41: #{_lambda_.17} parent=39 // pred_check
        %p334 = pneg %p130
      $region42: #{_lambda_.17} parent=39 // pred_check_branch
        %336 = sbr.rel (%p334) target = $region44
      $region43: #{_lambda_.17} parent=39 // pred_region
        %s337 = smul.u32 2, %s20
        %p338 = scmp.lt.s32.totalorder %s337, 3
        %s339 = scalar_select %p338, %s337, 3
        %p340 = scmp.lt.s32.totalorder %s21, 0
        %s341 = scalar_select %p340, %s21, 0
        %s342 = sadd.s32 %s341, %s339
        %s343 = smul.addr %s342, 8
        %s344 = scalar_lea.vmem %s3, %s343
      $region44: #{_lambda_.17} parent=39 // pred_fallthru
        _
    $region40: #{_lambda_.17} parent=5 // pred_fallthru
      _
  $region6: #{_lambda_.17} parent=0 // loop_footer
    %s13 = sadd.s32 1, %s9
  $region7: #{_lambda_.17} parent=0 // loop_footer_branch
    %8 = sbr.rel target = $region3
  $region8: #{_lambda_.17} parent=0 // loop_exit
    _

// kernel: _lambda_.18
$region0: #{_lambda_.18}
  #allocation0 [shape = 'u32[]', space=smem, size = 0x4, offset = 0x4, fixed_abs, tag = 'smem constant byte address 0x4 - core index']
  #allocation1 [shape = 'u32[72,128]{1,0:T(1,128)}', space=vmem, size = 0x9000, scoped, tag = 'internal scratch']
  %s0 = inlined_call_operand.vmem [shape: f32[32,128], index: 0, kind: input, shape index: {}]
  %s1 = inlined_call_operand.vmem [shape: bf16[128,128], index: 1, kind: input, shape index: {}]
  %s2 = inlined_call_operand.vmem [shape: f32[1,128], index: 2, kind: input, shape index: {}]
  %s3 = inlined_call_operand.vmem [shape: s32[32,1], index: 3, kind: output, shape index: {}]
  %s4 = sld [smem:[#allocation0]]
  $region45: #{_lambda_.18} parent=0
    _
  %s6 = ssub.s32 1, %s4
  %s7 = scalar_select 0, %s6, %s4
  loop: start=0, step=1, limit=4
  $region2: #{_lambda_.18} parent=0 // loop_pre_header
    _
  $region3: #{_lambda_.18} parent=0 // loop_header
    %s9 = sphi 0, %s13
    %p10 = scmp.ge.s32.totalorder %s9, 4
    %s19 = sphi 0, %s21
    %s22 = sphi 0, %s19
    %s23 = sphi 0, %s22
    %s39 = sphi 0, %s23
    %s43 = sphi 0, %s43
    %s45 = sphi 0, %s43
    %s46 = sphi 0, %s45
    %s60 = sphi 0, %s46
    %s64 = sphi 0, %s64
    %s66 = sphi 0, %s64
    %s67 = sphi 0, %s66
    %s81 = sphi 0, %s67
    %s87 = sphi 0, %s89
    %s90 = sphi 0, %s87
    %s91 = sphi 0, %s90
    %s107 = sphi 0, %s91
  $region4: #{_lambda_.18} parent=0 // loop_header_branch
    %12 = sbr.rel (%p10) target = $region8
  $region5: #{_lambda_.18} parent=0 // loop_body
    %s14 = ssub.s32 %s9, 1
    %s15 = ssub.s32 %s9, 2
    %s16 = sadd.s32 %s9, 1
    %s17 = ssub.s32 %s9, %s16
    %p18 = scmp.eq.s32.totalorder %s17, 0
    %s20 = sadd.s32 %s19, 1
    %s21 = scalar_select %p18, %s19, %s20
    %p24 = pneg %p18
    %p25 = scmp.eq.s32.totalorder %s9, 1
    %p26 = por %p24, %p25
    %p27 = scmp.ne.s32.totalorder %s19, %s22
    %p28 = scmp.eq.s32.totalorder %s9, 0
    %p29 = por %p27, %p28
    %p30 = scmp.ne.s32.totalorder %s19, %s22
    %p31 = scmp.eq.s32.totalorder %s14, 1
    %p32 = por %p30, %p31
    %p33 = scmp.ne.s32.totalorder %s22, %s23
    %p34 = scmp.eq.s32.totalorder %s14, 0
    %p35 = por %p33, %p34
    %p36 = scmp.ne.s32.totalorder %s22, %s23
    %p37 = scmp.eq.s32.totalorder %s15, 1
    %p38 = por %p36, %p37
    %p40 = scmp.ne.s32.totalorder %s23, %s39
    %p41 = scmp.eq.s32.totalorder %s15, 0
    %p42 = por %p40, %p41
    %s44 = sadd.s32 %s43, 1
    %p47 = scmp.eq.s32.totalorder %s9, 1
    %p48 = scmp.ne.s32.totalorder %s43, %s45
    %p49 = scmp.eq.s32.totalorder %s9, 0
    %p50 = por %p48, %p49
    %p51 = scmp.ne.s32.totalorder %s43, %s45
    %p52 = scmp.eq.s32.totalorder %s14, 1
    %p53 = por %p51, %p52
    %p54 = scmp.ne.s32.totalorder %s45, %s46
    %p55 = scmp.eq.s32.totalorder %s14, 0
    %p56 = por %p54, %p55
    %p57 = scmp.ne.s32.totalorder %s45, %s46
    %p58 = scmp.eq.s32.totalorder %s15, 1
    %p59 = por %p57, %p58
    %p61 = scmp.ne.s32.totalorder %s46, %s60
    %p62 = scmp.eq.s32.totalorder %s15, 0
    %p63 = por %p61, %p62
    %s65 = sadd.s32 %s64, 1
    %p68 = scmp.eq.s32.totalorder %s9, 1
    %p69 = scmp.ne.s32.totalorder %s64, %s66
    %p70 = scmp.eq.s32.totalorder %s9, 0
    %p71 = por %p69, %p70
    %p72 = scmp.ne.s32.totalorder %s64, %s66
    %p73 = scmp.eq.s32.totalorder %s14, 1
    %p74 = por %p72, %p73
    %p75 = scmp.ne.s32.totalorder %s66, %s67
    %p76 = scmp.eq.s32.totalorder %s14, 0
    %p77 = por %p75, %p76
    %p78 = scmp.ne.s32.totalorder %s66, %s67
    %p79 = scmp.eq.s32.totalorder %s15, 1
    %p80 = por %p78, %p79
    %p82 = scmp.ne.s32.totalorder %s67, %s81
    %p83 = scmp.eq.s32.totalorder %s15, 0
    %p84 = por %p82, %p83
    %s85 = ssub.s32 %s9, %s16
    %p86 = scmp.eq.s32.totalorder %s85, 0
    %s88 = sadd.s32 %s87, 1
    %s89 = scalar_select %p86, %s87, %s88
    %p92 = pneg %p86
    %p93 = scmp.eq.s32.totalorder %s9, 1
    %p94 = por %p92, %p93
    %p95 = scmp.ne.s32.totalorder %s87, %s90
    %p96 = scmp.eq.s32.totalorder %s9, 0
    %p97 = por %p95, %p96
    %p98 = scmp.ne.s32.totalorder %s87, %s90
    %p99 = scmp.eq.s32.totalorder %s14, 1
    %p100 = por %p98, %p99
    %p101 = scmp.ne.s32.totalorder %s90, %s91
    %p102 = scmp.eq.s32.totalorder %s14, 0
    %p103 = por %p101, %p102
    %p104 = scmp.ne.s32.totalorder %s90, %s91
    %p105 = scmp.eq.s32.totalorder %s15, 1
    %p106 = por %p104, %p105
    %p108 = scmp.ne.s32.totalorder %s91, %s107
    %p109 = scmp.eq.s32.totalorder %s15, 0
    %p110 = por %p108, %p109
    %p111 = scmp.le.s32.totalorder 1, %s9
    %p112 = scmp.lt.s32.totalorder %s9, 3
    %p113 = pnand %p111, %p112
    %p114 = pneg %p113
    // Predicated region
    $region9: #{_lambda_.18} parent=5 // pred_check
      _
    $region10: #{_lambda_.18} parent=5 // pred_check_branch
      %116 = sbr.rel (%p113) target = $region12
    $region11: #{_lambda_.18} parent=5 // pred_region
      %s117 = ssub.s32 %s9, 1
      // Predicated region
      $region13: #{_lambda_.18} parent=11 // pred_check
        %p118 = pneg %p56
      $region14: #{_lambda_.18} parent=11 // pred_check_branch
        %120 = sbr.rel (%p118) target = $region16
      $region15: #{_lambda_.18} parent=11 // pred_region
        _
      $region16: #{_lambda_.18} parent=11 // pred_fallthru
        _
      // Predicated region
      $region17: #{_lambda_.18} parent=11 // pred_check
        %p121 = pneg %p77
      $region18: #{_lambda_.18} parent=11 // pred_check_branch
        %123 = sbr.rel (%p121) target = $region20
      $region19: #{_lambda_.18} parent=11 // pred_region
        _
      $region20: #{_lambda_.18} parent=11 // pred_fallthru
        _
    $region12: #{_lambda_.18} parent=5 // pred_fallthru
      _
    %p124 = scmp.lt.s32.totalorder %s9, 2
    // Predicated region
    $region21: #{_lambda_.18} parent=5 // pred_check
      %p125 = pneg %p124
    $region22: #{_lambda_.18} parent=5 // pred_check_branch
      %127 = sbr.rel (%p125) target = $region24
    $region23: #{_lambda_.18} parent=5 // pred_region
      // Predicated region
      $region25: #{_lambda_.18} parent=23 // pred_check
        %p128 = pneg %p29
      $region26: #{_lambda_.18} parent=23 // pred_check_branch
        %130 = sbr.rel (%p128) target = $region28
      $region27: #{_lambda_.18} parent=23 // pred_region
        %s131 = smul.u32 2, %s9
        %p132 = scmp.lt.s32.totalorder %s131, 3
        %s133 = scalar_select %p132, %s131, 3
        %s134 = smul.addr %s133, 8
        %s135 = scalar_lea.vmem %s0, %s134
        %s136 = smul.u32 2, %s9
      $region28: #{_lambda_.18} parent=23 // pred_fallthru
        _
    $region24: #{_lambda_.18} parent=5 // pred_fallthru
      _
    %p137 = scmp.le.s32.totalorder 1, %s9
    %p138 = scmp.lt.s32.totalorder %s9, 3
    %p139 = pnand %p137, %p138
    %p140 = pneg %p139
    // Predicated region
    $region29: #{_lambda_.18} parent=5 // pred_check
      _
    $region30: #{_lambda_.18} parent=5 // pred_check_branch
      %142 = sbr.rel (%p139) target = $region32
    $region31: #{_lambda_.18} parent=5 // pred_region
      %s143 = ssub.s32 %s9, 1
      %s144 = smul.u32 2, %s14
      %p145 = scmp.lt.s32.totalorder %s144, 3
      %s146 = scalar_select %p145, %s144, 3
      %s147 = smul.addr %s146, 8
      %s148 = scalar_lea.vmem %s0, %s147
      %p149 = pneg %p35
      %p150 = pneg %p32
      %p151 = pneg %p56
      %p152 = pneg %p53
      %p153 = pneg %p77
      %p154 = pneg %p74
      %p155 = pneg %p103
      %p156 = pneg %p100
      %s157 = smul.u32 2, %s14
      %p158 = scmp.lt.s32.totalorder %s157, 3
      %s159 = scalar_select %p158, %s157, 3
      %s160 = smul.addr %s159, 8
      %s161 = scalar_lea.vmem %s3, %s160
      %s162 = smul.u32 2, %s14
      %p163 = scmp.lt.s32.totalorder %s162, 3
      %s164 = scalar_select %p163, %s162, 3
      %s165 = smul.addr %s164, 8
      %s166 = scalar_lea.vmem %s0, %s165
      %s167 = smul.u32 2, %s14
      %s168 = smul.u32 2, %s14
      %p169 = scmp.lt.s32.totalorder %s168, 3
      %s170 = scalar_select %p169, %s168, 3
      %s171 = smul.addr %s170, 8
      %s172 = scalar_lea.vmem %s3, %s171
      %s173 = smul.u32 2, %s14
      %v174 = vld [vmem:[%s166] sm:$0xff]
      %v175 = vld [vmem:[%s166 + $0x8] sm:$0xff]
      %v176 = vpack.c.bf16 %v175, %v174
      %v177 = vld [vmem:[%s1] sm:$0xf]
      %v178 = vld [vmem:[%s1 + $0x4] sm:$0xf]
      %v179 = vld [vmem:[%s1 + $0x8] sm:$0xf]
      %v180 = vld [vmem:[%s1 + $0xc] sm:$0xf]
      %v181 = vld [vmem:[%s1 + $0x10] sm:$0xf]
      %v182 = vld [vmem:[%s1 + $0x14] sm:$0xf]
      %v183 = vld [vmem:[%s1 + $0x18] sm:$0xf]
      %v184 = vld [vmem:[%s1 + $0x1c] sm:$0xf]
      %v185 = vld [vmem:[%s1 + $0x20] sm:$0xf]
      %v186 = vld [vmem:[%s1 + $0x24] sm:$0xf]
      %v187 = vld [vmem:[%s1 + $0x28] sm:$0xf]
      %v188 = vld [vmem:[%s1 + $0x2c] sm:$0xf]
      %v189 = vld [vmem:[%s1 + $0x30] sm:$0xf]
      %v190 = vld [vmem:[%s1 + $0x34] sm:$0xf]
      %v191 = vld [vmem:[%s1 + $0x38] sm:$0xf]
      %v192 = vld [vmem:[%s1 + $0x3c] sm:$0xf]
      %v209 = vunpack.c.l.b16 %v177
      %v210 = vunpack.c.l.b16 %v178
      %v211 = vunpack.c.l.b16 %v179
      %v212 = vunpack.c.l.b16 %v180
      %v213 = vunpack.c.l.b16 %v181
      %v214 = vunpack.c.l.b16 %v182
      %v215 = vunpack.c.l.b16 %v183
      %v216 = vunpack.c.l.b16 %v184
      %v217 = vunpack.c.l.b16 %v185
      %v218 = vunpack.c.l.b16 %v186
      %v219 = vunpack.c.l.b16 %v187
      %v220 = vunpack.c.l.b16 %v188
      %v221 = vunpack.c.l.b16 %v189
      %v222 = vunpack.c.l.b16 %v190
      %v223 = vunpack.c.l.b16 %v191
      %v224 = vunpack.c.l.b16 %v192
      %v225 = vpack.c.b16 %v210, %v209
      %v226 = vpack.c.b16 %v212, %v211
      %v227 = vpack.c.b16 %v214, %v213
      %v228 = vpack.c.b16 %v216, %v215
      %v229 = vpack.c.b16 %v218, %v217
      %v230 = vpack.c.b16 %v220, %v219
      %v231 = vpack.c.b16 %v222, %v221
      %v232 = vpack.c.b16 %v224, %v223
      %241 = vmatpush.bf16.msra.mxu0 %v232
      %242 = vmatpush.bf16.msra.mxu0 %v231
      %243 = vmatpush.bf16.msra.mxu0 %v230
      %244 = vmatpush.bf16.msra.mxu0 %v229
      %245 = vmatpush.bf16.msra.mxu0 %v228
      %246 = vmatpush.bf16.msra.mxu0 %v227
      %247 = vmatpush.bf16.msra.mxu0 %v226
      %248 = vmatpush.bf16.msra.mxu0 %v225
      %249 = vmatmul.bf16.gmra.mxu0 %v176
      %v250 = vpop.f32.mrf.mxu0
      %v251 = vadd.f32 0.0, %v250
      %v252 = vpop.f32.mrf.mxu0
      %v253 = vadd.f32 0.0, %v252
      %254 = vdwg.mxu0
      %v255 = vld [vmem:[%s2] sm:$0x1]
      %v256 = vmul.f32 %v251, 2.0
      %v257 = vmul.f32 %v253, 2.0
      %v259 = vperm.slane %v255, 0
      %v261 = vsub.f32 %v259, %v256
      %v262 = vsub.f32 %v259, %v257
      %v263 = vlaneseq
      %v264 = vand.u32 %v263, 127
      %vm265 = vcmp.lt.s32.totalorder %v264, 32
      %v266 = vsel %vm265, %v261, 1e+30
      %v267 = vsel %vm265, %v262, 1e+30
      %268 = vmin.xlane.f32.xlu0 %v266
      %v269 = vpop.xlane.xlu0 %268
      %270 = vmin.xlane.f32.xlu0 %v267
      %v271 = vpop.xlane.xlu0 %270
      %vm272 = vcmp.eq.f32.partialorder %v266, %v269
      %vm273 = vcmp.eq.f32.partialorder %v267, %v271
      %v274 = vcvt.s32.f32 %v264
      %v275 = vsel %vm272, %v274, 1e+09
      %v276 = vsel %vm273, %v274, 1e+09
      %277 = vmin.xlane.f32.xlu0 %v275
      %v278 = vpop.xlane.xlu0 %277
      %279 = vmin.xlane.f32.xlu0 %v276
      %v280 = vpop.xlane.xlu0 %279
      %v281 = vcvt.f32.s32.to.zero.pseudo %v278
      %v282 = vcvt.f32.s32.to.zero.pseudo %v280
      %vm283 = vcmask 7168
      %284 = vst.msk [vmem:[%s172] sm:$0xff] %vm283, %v281
      %285 = vst.msk [vmem:[%s172 + $0x8] sm:$0xff] %vm283, %v282
      %s286 = smul.u32 2, %s14
      %p287 = scmp.lt.s32.totalorder %s286, 3
      %s288 = scalar_select %p287, %s286, 3
      %s289 = smul.addr %s288, 8
      %s290 = scalar_lea.vmem %s3, %s289
      // Predicated region
      $region33: #{_lambda_.18} parent=31 // pred_check
        %p291 = pneg %p100
      $region34: #{_lambda_.18} parent=31 // pred_check_branch
        %293 = sbr.rel (%p291) target = $region36
      $region35: #{_lambda_.18} parent=31 // pred_region
        %s294 = smul.u32 2, %s14
      $region36: #{_lambda_.18} parent=31 // pred_fallthru
        _
    $region32: #{_lambda_.18} parent=5 // pred_fallthru
      _
    %p295 = scmp.le.s32.totalorder 2, %s9
    // Predicated region
    $region37: #{_lambda_.18} parent=5 // pred_check
      %p296 = pneg %p295
    $region38: #{_lambda_.18} parent=5 // pred_check_branch
      %298 = sbr.rel (%p296) target = $region40
    $region39: #{_lambda_.18} parent=5 // pred_region
      %s299 = ssub.s32 %s9, 2
      // Predicated region
      $region41: #{_lambda_.18} parent=39 // pred_check
        %p300 = pneg %p106
      $region42: #{_lambda_.18} parent=39 // pred_check_branch
        %302 = sbr.rel (%p300) target = $region44
      $region43: #{_lambda_.18} parent=39 // pred_region
        %s303 = smul.u32 2, %s15
        %p304 = scmp.lt.s32.totalorder %s303, 3
        %s305 = scalar_select %p304, %s303, 3
        %s306 = smul.addr %s305, 8
        %s307 = scalar_lea.vmem %s3, %s306
      $region44: #{_lambda_.18} parent=39 // pred_fallthru
        _
    $region40: #{_lambda_.18} parent=5 // pred_fallthru
      _
  $region6: #{_lambda_.18} parent=0 // loop_footer
    %s13 = sadd.s32 1, %s9
  $region7: #{_lambda_.18} parent=0 // loop_footer_branch
    %8 = sbr.rel target = $region3
  $region8: #{_lambda_.18} parent=0 // loop_exit
    _

// kernel: _lambda_.19
$region0: #{_lambda_.19}
  #allocation0 [shape = 'u32[]', space=smem, size = 0x4, offset = 0x4, fixed_abs, tag = 'smem constant byte address 0x4 - core index']
  #allocation1 [shape = 'u32[72,128]{1,0:T(1,128)}', space=vmem, size = 0x9000, scoped, tag = 'internal scratch']
  %s0 = inlined_call_operand.vmem [shape: bf16[32,72], index: 0, kind: input, shape index: {}]
  %s1 = inlined_call_operand.vmem [shape: bf16[72,128], index: 1, kind: input, shape index: {}]
  %s2 = inlined_call_operand.vmem [shape: f32[1,128], index: 2, kind: input, shape index: {}]
  %s3 = inlined_call_operand.vmem [shape: bf16[32,128], index: 3, kind: output, shape index: {}]
  %s4 = sld [smem:[#allocation0]]
  $region45: #{_lambda_.19} parent=0
    _
  %s6 = ssub.s32 1, %s4
  %s7 = scalar_select 0, %s6, %s4
  loop: start=0, step=1, limit=4
  $region2: #{_lambda_.19} parent=0 // loop_pre_header
    _
  $region3: #{_lambda_.19} parent=0 // loop_header
    %s9 = sphi 0, %s13
    %p10 = scmp.ge.s32.totalorder %s9, 4
    %s16 = sphi 0, %s28
    %s17 = sphi 0, %s24
    %s18 = sphi 0, %s16
    %s19 = sphi 0, %s17
    %s20 = sphi 0, %s18
    %s21 = sphi 0, %s19
    %s31 = sphi 0, %s33
    %s34 = sphi 0, %s31
    %s35 = sphi 0, %s34
    %s51 = sphi 0, %s35
    %s57 = sphi 0, %s59
    %s60 = sphi 0, %s57
    %s61 = sphi 0, %s60
    %s77 = sphi 0, %s61
    %s83 = sphi 0, %s85
    %s86 = sphi 0, %s83
    %s87 = sphi 0, %s86
    %s103 = sphi 0, %s87
    %s111 = sphi 0, %s113
    %s114 = sphi 0, %s111
    %s115 = sphi 0, %s114
    %s131 = sphi 0, %s115
  $region4: #{_lambda_.19} parent=0 // loop_header_branch
    %12 = sbr.rel (%p10) target = $region8
  $region5: #{_lambda_.19} parent=0 // loop_body
    %s14 = ssub.s32 %s9, 1
    %s15 = ssub.s32 %s9, 2
    %s22 = sadd.s32 1, %s17
    %p23 = scmp.ge.s32.totalorder %s22, 1
    %s24 = scalar_select %p23, 0, %s22
    %s25 = sadd.s32 1, %s16
    %s26 = scalar_select %p23, %s25, %s16
    %p27 = scmp.ge.s32.totalorder %s26, 2
    %s28 = scalar_select %p27, 0, %s26
    %s29 = ssub.s32 %s16, %s28
    %p30 = scmp.eq.s32.totalorder %s29, 0
    %s32 = sadd.s32 %s31, 1
    %s33 = scalar_select %p30, %s31, %s32
    %p36 = pneg %p30
    %p37 = scmp.eq.s32.totalorder %s9, 1
    %p38 = por %p36, %p37
    %p39 = scmp.ne.s32.totalorder %s31, %s34
    %p40 = scmp.eq.s32.totalorder %s9, 0
    %p41 = por %p39, %p40
    %p42 = scmp.ne.s32.totalorder %s31, %s34
    %p43 = scmp.eq.s32.totalorder %s14, 1
    %p44 = por %p42, %p43
    %p45 = scmp.ne.s32.totalorder %s34, %s35
    %p46 = scmp.eq.s32.totalorder %s14, 0
    %p47 = por %p45, %p46
    %p48 = scmp.ne.s32.totalorder %s34, %s35
    %p49 = scmp.eq.s32.totalorder %s15, 1
    %p50 = por %p48, %p49
    %p52 = scmp.ne.s32.totalorder %s35, %s51
    %p53 = scmp.eq.s32.totalorder %s15, 0
    %p54 = por %p52, %p53
    %s55 = ssub.s32 %s17, %s24
    %p56 = scmp.eq.s32.totalorder %s55, 0
    %s58 = sadd.s32 %s57, 1
    %s59 = scalar_select %p56, %s57, %s58
    %p62 = pneg %p56
    %p63 = scmp.eq.s32.totalorder %s9, 1
    %p64 = por %p62, %p63
    %p65 = scmp.ne.s32.totalorder %s57, %s60
    %p66 = scmp.eq.s32.totalorder %s9, 0
    %p67 = por %p65, %p66
    %p68 = scmp.ne.s32.totalorder %s57, %s60
    %p69 = scmp.eq.s32.totalorder %s14, 1
    %p70 = por %p68, %p69
    %p71 = scmp.ne.s32.totalorder %s60, %s61
    %p72 = scmp.eq.s32.totalorder %s14, 0
    %p73 = por %p71, %p72
    %p74 = scmp.ne.s32.totalorder %s60, %s61
    %p75 = scmp.eq.s32.totalorder %s15, 1
    %p76 = por %p74, %p75
    %p78 = scmp.ne.s32.totalorder %s61, %s77
    %p79 = scmp.eq.s32.totalorder %s15, 0
    %p80 = por %p78, %p79
    %s81 = ssub.s32 %s17, %s24
    %p82 = scmp.eq.s32.totalorder %s81, 0
    %s84 = sadd.s32 %s83, 1
    %s85 = scalar_select %p82, %s83, %s84
    %p88 = pneg %p82
    %p89 = scmp.eq.s32.totalorder %s9, 1
    %p90 = por %p88, %p89
    %p91 = scmp.ne.s32.totalorder %s83, %s86
    %p92 = scmp.eq.s32.totalorder %s9, 0
    %p93 = por %p91, %p92
    %p94 = scmp.ne.s32.totalorder %s83, %s86
    %p95 = scmp.eq.s32.totalorder %s14, 1
    %p96 = por %p94, %p95
    %p97 = scmp.ne.s32.totalorder %s86, %s87
    %p98 = scmp.eq.s32.totalorder %s14, 0
    %p99 = por %p97, %p98
    %p100 = scmp.ne.s32.totalorder %s86, %s87
    %p101 = scmp.eq.s32.totalorder %s15, 1
    %p102 = por %p100, %p101
    %p104 = scmp.ne.s32.totalorder %s87, %s103
    %p105 = scmp.eq.s32.totalorder %s15, 0
    %p106 = por %p104, %p105
    %s107 = ssub.s32 %s16, %s28
    %s108 = ssub.s32 %s17, %s24
    %s109 = sor.u32 %s107, %s108
    %p110 = scmp.eq.s32.totalorder %s109, 0
    %s112 = sadd.s32 %s111, 1
    %s113 = scalar_select %p110, %s111, %s112
    %p116 = pneg %p110
    %p117 = scmp.eq.s32.totalorder %s9, 1
    %p118 = por %p116, %p117
    %p119 = scmp.ne.s32.totalorder %s111, %s114
    %p120 = scmp.eq.s32.totalorder %s9, 0
    %p121 = por %p119, %p120
    %p122 = scmp.ne.s32.totalorder %s111, %s114
    %p123 = scmp.eq.s32.totalorder %s14, 1
    %p124 = por %p122, %p123
    %p125 = scmp.ne.s32.totalorder %s114, %s115
    %p126 = scmp.eq.s32.totalorder %s14, 0
    %p127 = por %p125, %p126
    %p128 = scmp.ne.s32.totalorder %s114, %s115
    %p129 = scmp.eq.s32.totalorder %s15, 1
    %p130 = por %p128, %p129
    %p132 = scmp.ne.s32.totalorder %s115, %s131
    %p133 = scmp.eq.s32.totalorder %s15, 0
    %p134 = por %p132, %p133
    %p135 = scmp.le.s32.totalorder 1, %s9
    %p136 = scmp.lt.s32.totalorder %s9, 3
    %p137 = pnand %p135, %p136
    %p138 = pneg %p137
    // Predicated region
    $region9: #{_lambda_.19} parent=5 // pred_check
      _
    $region10: #{_lambda_.19} parent=5 // pred_check_branch
      %140 = sbr.rel (%p137) target = $region12
    $region11: #{_lambda_.19} parent=5 // pred_region
      %s141 = ssub.s32 %s9, 1
      // Predicated region
      $region13: #{_lambda_.19} parent=11 // pred_check
        %p142 = pneg %p73
      $region14: #{_lambda_.19} parent=11 // pred_check_branch
        %144 = sbr.rel (%p142) target = $region16
      $region15: #{_lambda_.19} parent=11 // pred_region
        %p145 = scmp.lt.s32.totalorder %s19, 0
        %s146 = scalar_select %p145, %s19, 0
        %s147 = smul.addr %s146, 4
        %s148 = scalar_lea.vmem %s1, %s147
      $region16: #{_lambda_.19} parent=11 // pred_fallthru
        _
      // Predicated region
      $region17: #{_lambda_.19} parent=11 // pred_check
        %p149 = pneg %p99
      $region18: #{_lambda_.19} parent=11 // pred_check_branch
        %151 = sbr.rel (%p149) target = $region20
      $region19: #{_lambda_.19} parent=11 // pred_region
        %p152 = scmp.lt.s32.totalorder %s19, 0
        %s153 = scalar_select %p152, %s19, 0
        %s154 = scalar_lea.vmem %s2, %s153
      $region20: #{_lambda_.19} parent=11 // pred_fallthru
        _
    $region12: #{_lambda_.19} parent=5 // pred_fallthru
      _
    %p155 = scmp.lt.s32.totalorder %s9, 2
    // Predicated region
    $region21: #{_lambda_.19} parent=5 // pred_check
      %p156 = pneg %p155
    $region22: #{_lambda_.19} parent=5 // pred_check_branch
      %158 = sbr.rel (%p156) target = $region24
    $region23: #{_lambda_.19} parent=5 // pred_region
      // Predicated region
      $region25: #{_lambda_.19} parent=23 // pred_check
        %p159 = pneg %p41
      $region26: #{_lambda_.19} parent=23 // pred_check_branch
        %161 = sbr.rel (%p159) target = $region28
      $region27: #{_lambda_.19} parent=23 // pred_region
        %s162 = smul.u32 2, %s16
        %p163 = scmp.lt.s32.totalorder %s162, 3
        %s164 = scalar_select %p163, %s162, 3
        %s165 = smul.addr %s164, 4
        %s166 = scalar_lea.vmem %s0, %s165
        %s167 = smul.u32 2, %s16
      $region28: #{_lambda_.19} parent=23 // pred_fallthru
        _
    $region24: #{_lambda_.19} parent=5 // pred_fallthru
      _
    %p168 = scmp.le.s32.totalorder 1, %s9
    %p169 = scmp.lt.s32.totalorder %s9, 3
    %p170 = pnand %p168, %p169
    %p171 = pneg %p170
    // Predicated region
    $region29: #{_lambda_.19} parent=5 // pred_check
      _
    $region30: #{_lambda_.19} parent=5 // pred_check_branch
      %173 = sbr.rel (%p170) target = $region32
    $region31: #{_lambda_.19} parent=5 // pred_region
      %s174 = ssub.s32 %s9, 1
      %s175 = smul.u32 2, %s18
      %p176 = scmp.lt.s32.totalorder %s175, 3
      %s177 = scalar_select %p176, %s175, 3
      %s178 = smul.addr %s177, 4
      %s179 = scalar_lea.vmem %s0, %s178
      %p180 = pneg %p47
      %p181 = pneg %p44
      %p182 = scmp.lt.s32.totalorder %s19, 0
      %s183 = scalar_select %p182, %s19, 0
      %s184 = smul.addr %s183, 4
      %s185 = scalar_lea.vmem %s1, %s184
      %p186 = pneg %p73
      %p187 = pneg %p70
      %p188 = scmp.lt.s32.totalorder %s19, 0
      %s189 = scalar_select %p188, %s19, 0
      %s190 = scalar_lea.vmem %s2, %s189
      %p191 = pneg %p99
      %p192 = pneg %p96
      %p193 = pneg %p127
      %p194 = pneg %p124
      %s195 = smul.u32 2, %s18
      %p196 = scmp.lt.s32.totalorder %s195, 3
      %s197 = scalar_select %p196, %s195, 3
      %p198 = scmp.lt.s32.totalorder %s19, 0
      %s199 = scalar_select %p198, %s19, 0
      %s200 = sadd.s32 %s199, %s197
      %s201 = smul.addr %s200, 4
      %s202 = scalar_lea.vmem %s3, %s201
      %s203 = smul.u32 2, %s18
      %p204 = scmp.lt.s32.totalorder %s203, 3
      %s205 = scalar_select %p204, %s203, 3
      %s206 = smul.addr %s205, 4
      %s207 = scalar_lea.vmem %s0, %s206
      %s208 = smul.u32 2, %s18
      %p209 = scmp.lt.s32.totalorder %s19, 0
      %s210 = scalar_select %p209, %s19, 0
      %s211 = smul.addr %s210, 4
      %s212 = scalar_lea.vmem %s1, %s211
      %p213 = scmp.lt.s32.totalorder %s19, 0
      %s214 = scalar_select %p213, %s19, 0
      %s215 = scalar_lea.vmem %s2, %s214
      %s216 = smul.u32 2, %s18
      %p217 = scmp.lt.s32.totalorder %s216, 3
      %s218 = scalar_select %p217, %s216, 3
      %p219 = scmp.lt.s32.totalorder %s19, 0
      %s220 = scalar_select %p219, %s19, 0
      %s221 = sadd.s32 %s220, %s218
      %s222 = smul.addr %s221, 4
      %s223 = scalar_lea.vmem %s3, %s222
      %s224 = smul.u32 2, %s18
      %v226 = vld [vmem:[%s207] sm:$0xf]
      %v227 = vld [vmem:[%s207 + $0x4] sm:$0xf]
      %v228 = vld [vmem:[%s212] sm:$0xf]
      %v229 = vld [vmem:[%s212 + $0x4] sm:$0xf]
      %v230 = vld [vmem:[%s212 + $0x8] sm:$0xf]
      %v231 = vld [vmem:[%s212 + $0xc] sm:$0xf]
      %v232 = vld [vmem:[%s212 + $0x10] sm:$0xf]
      %v233 = vld [vmem:[%s212 + $0x14] sm:$0xf]
      %v234 = vld [vmem:[%s212 + $0x18] sm:$0xf]
      %v235 = vld [vmem:[%s212 + $0x1c] sm:$0xf]
      %v236 = vld [vmem:[%s212 + $0x20] sm:$0xf]
      %v237 = vld [vmem:[%s215] sm:$0x1]
      %v239 = vperm.slane %v237, 0
      %v243 = vunpack.c.l.b16 %v226
      %v244 = vunpack.c.l.b16 %v227
      %v245 = vpack.c.b16 %v244, %v243
      %v255 = vunpack.c.l.b16 %v228
      %v256 = vunpack.c.l.b16 %v229
      %v257 = vunpack.c.l.b16 %v230
      %v258 = vunpack.c.l.b16 %v231
      %v259 = vunpack.c.l.b16 %v232
      %v260 = vunpack.c.l.b16 %v233
      %v261 = vunpack.c.l.b16 %v234
      %v262 = vunpack.c.l.b16 %v235
      %v263 = vunpack.c.l.b16 %v236
      %v264 = vpack.c.b16 %v256, %v255
      %v265 = vpack.c.b16 %v258, %v257
      %v266 = vpack.c.b16 %v260, %v259
      %v267 = vpack.c.b16 %v262, %v261
      %v268 = vpack.c.b16 %v263, %v263
      %vm273 = vcmask 588800
      %v275 = vsel %vm273, %v245, 0
      %vm277 = vcmask 1043456
      %v279 = vsel %vm277, %v268, 0
      %281 = vmatpush.bf16.msra.mxu0 0
      %282 = vmatpush.bf16.msra.mxu0 0
      %283 = vmatpush.bf16.msra.mxu0 0
      %284 = vmatpush.bf16.msra.mxu0 %v279
      %285 = vmatpush.bf16.msra.mxu0 %v267
      %286 = vmatpush.bf16.msra.mxu0 %v266
      %287 = vmatpush.bf16.msra.mxu0 %v265
      %288 = vmatpush.bf16.msra.mxu0 %v264
      %289 = vmatmul.bf16.gmra.mxu0 %v275
      %v290 = vpop.f32.mrf.mxu0
      %v291 = vadd.f32 %v239, %v290
      %v292 = vpop.f32.mrf.mxu0
      %v293 = vadd.f32 %v239, %v292
      %294 = vdwg.mxu0
      %v295 = vpack.c.bf16 %v291, %v291
      %v296 = vpack.c.bf16 %v293, %v293
      %297 = vst [vmem:[%s223] sm:$0xf] %v295
      %298 = vst [vmem:[%s223 + $0x4] sm:$0xf] %v296
      %s299 = smul.u32 2, %s18
      %p300 = scmp.lt.s32.totalorder %s299, 3
      %s301 = scalar_select %p300, %s299, 3
      %p302 = scmp.lt.s32.totalorder %s19, 0
      %s303 = scalar_select %p302, %s19, 0
      %s304 = sadd.s32 %s303, %s301
      %s305 = smul.addr %s304, 4
      %s306 = scalar_lea.vmem %s3, %s305
      // Predicated region
      $region33: #{_lambda_.19} parent=31 // pred_check
        %p307 = pneg %p124
      $region34: #{_lambda_.19} parent=31 // pred_check_branch
        %309 = sbr.rel (%p307) target = $region36
      $region35: #{_lambda_.19} parent=31 // pred_region
        %s310 = smul.u32 2, %s18
      $region36: #{_lambda_.19} parent=31 // pred_fallthru
        _
    $region32: #{_lambda_.19} parent=5 // pred_fallthru
      _
    %p311 = scmp.le.s32.totalorder 2, %s9
    // Predicated region
    $region37: #{_lambda_.19} parent=5 // pred_check
      %p312 = pneg %p311
    $region38: #{_lambda_.19} parent=5 // pred_check_branch
      %314 = sbr.rel (%p312) target = $region40
    $region39: #{_lambda_.19} parent=5 // pred_region
      %s315 = ssub.s32 %s9, 2
      // Predicated region
      $region41: #{_lambda_.19} parent=39 // pred_check
        %p316 = pneg %p130
      $region42: #{_lambda_.19} parent=39 // pred_check_branch
        %318 = sbr.rel (%p316) target = $region44
      $region43: #{_lambda_.19} parent=39 // pred_region
        %s319 = smul.u32 2, %s20
        %p320 = scmp.lt.s32.totalorder %s319, 3
        %s321 = scalar_select %p320, %s319, 3
        %p322 = scmp.lt.s32.totalorder %s21, 0
        %s323 = scalar_select %p322, %s21, 0
        %s324 = sadd.s32 %s323, %s321
        %s325 = smul.addr %s324, 4
        %s326 = scalar_lea.vmem %s3, %s325
      $region44: #{_lambda_.19} parent=39 // pred_fallthru
        _
    $region40: #{_lambda_.19} parent=5 // pred_fallthru
      _
  $region6: #{_lambda_.19} parent=0 // loop_footer
    %s13 = sadd.s32 1, %s9
  $region7: #{_lambda_.19} parent=0 // loop_footer_branch
    %8 = sbr.rel target = $region3
  $region8: #{_lambda_.19} parent=0 // loop_exit
    _

// kernel: _lambda_.22
$region0: #{_lambda_.22}
  #allocation0 [shape = 'u32[]', space=smem, size = 0x4, offset = 0x4, fixed_abs, tag = 'smem constant byte address 0x4 - core index']
  #allocation1 [shape = 'u32[72,128]{1,0:T(1,128)}', space=vmem, size = 0x9000, scoped, tag = 'internal scratch']
  %s0 = inlined_call_operand.vmem [shape: bf16[32,288], index: 0, kind: input, shape index: {}]
  %s1 = inlined_call_operand.vmem [shape: bf16[288,512], index: 1, kind: input, shape index: {}]
  %s2 = inlined_call_operand.vmem [shape: f32[1,512], index: 2, kind: input, shape index: {}]
  %s3 = inlined_call_operand.vmem [shape: bf16[32,512], index: 3, kind: output, shape index: {}]
  %s4 = sld [smem:[#allocation0]]
  $region117: #{_lambda_.22} parent=0
    _
  %s6 = ssub.s32 1, %s4
  %s7 = scalar_select 0, %s6, %s4
  $region1: #{_lambda_.22} parent=0
    #allocation2 [shape = 'u8[294912]{0}', space=vmem, size = 0x48000, scoped, tag = 'input window, operand 1']
    #allocation3 [shape = 'u8[32768]{0}', space=vmem, size = 0x8000, scoped, tag = 'output window, operand 0']
    loop: start=0, step=1, limit=4
    $region2: #{_lambda_.22} parent=1 // loop_pre_header
      _
    $region3: #{_lambda_.22} parent=1 // loop_header
      %s9 = sphi 0, %s13
      %p10 = scmp.ge.s32.totalorder %s9, 4
      %s16 = sphi 0, %s28
      %s17 = sphi 0, %s24
      %s18 = sphi 0, %s16
      %s19 = sphi 0, %s17
      %s20 = sphi 0, %s18
      %s21 = sphi 0, %s19
      %s31 = sphi 0, %s33
      %s34 = sphi 0, %s31
      %s35 = sphi 0, %s34
      %s51 = sphi 0, %s35
      %s57 = sphi 0, %s59
      %s60 = sphi 0, %s57
      %s61 = sphi 0, %s60
      %s77 = sphi 0, %s61
      %s83 = sphi 0, %s85
      %s86 = sphi 0, %s83
      %s87 = sphi 0, %s86
      %s103 = sphi 0, %s87
      %s111 = sphi 0, %s113
      %s114 = sphi 0, %s111
      %s115 = sphi 0, %s114
      %s131 = sphi 0, %s115
    $region4: #{_lambda_.22} parent=1 // loop_header_branch
      %12 = sbr.rel (%p10) target = $region8
    $region5: #{_lambda_.22} parent=1 // loop_body
      %s14 = ssub.s32 %s9, 1
      %s15 = ssub.s32 %s9, 2
      %s22 = sadd.s32 1, %s17
      %p23 = scmp.ge.s32.totalorder %s22, 2
      %s24 = scalar_select %p23, 0, %s22
      %s25 = sadd.s32 1, %s16
      %s26 = scalar_select %p23, %s25, %s16
      %p27 = scmp.ge.s32.totalorder %s26, 1
      %s28 = scalar_select %p27, 0, %s26
      %s29 = ssub.s32 %s16, %s28
      %p30 = scmp.eq.s32.totalorder %s29, 0
      %s32 = sadd.s32 %s31, 1
      %s33 = scalar_select %p30, %s31, %s32
      %p36 = pneg %p30
      %p37 = scmp.eq.s32.totalorder %s9, 1
      %p38 = por %p36, %p37
      %p39 = scmp.ne.s32.totalorder %s31, %s34
      %p40 = scmp.eq.s32.totalorder %s9, 0
      %p41 = por %p39, %p40
      %p42 = scmp.ne.s32.totalorder %s31, %s34
      %p43 = scmp.eq.s32.totalorder %s14, 1
      %p44 = por %p42, %p43
      %p45 = scmp.ne.s32.totalorder %s34, %s35
      %p46 = scmp.eq.s32.totalorder %s14, 0
      %p47 = por %p45, %p46
      %p48 = scmp.ne.s32.totalorder %s34, %s35
      %p49 = scmp.eq.s32.totalorder %s15, 1
      %p50 = por %p48, %p49
      %p52 = scmp.ne.s32.totalorder %s35, %s51
      %p53 = scmp.eq.s32.totalorder %s15, 0
      %p54 = por %p52, %p53
      %s55 = ssub.s32 %s17, %s24
      %p56 = scmp.eq.s32.totalorder %s55, 0
      %s58 = sadd.s32 %s57, 1
      %s59 = scalar_select %p56, %s57, %s58
      %p62 = pneg %p56
      %p63 = scmp.eq.s32.totalorder %s9, 1
      %p64 = por %p62, %p63
      %p65 = scmp.ne.s32.totalorder %s57, %s60
      %p66 = scmp.eq.s32.totalorder %s9, 0
      %p67 = por %p65, %p66
      %p68 = scmp.ne.s32.totalorder %s57, %s60
      %p69 = scmp.eq.s32.totalorder %s14, 1
      %p70 = por %p68, %p69
      %p71 = scmp.ne.s32.totalorder %s60, %s61
      %p72 = scmp.eq.s32.totalorder %s14, 0
      %p73 = por %p71, %p72
      %p74 = scmp.ne.s32.totalorder %s60, %s61
      %p75 = scmp.eq.s32.totalorder %s15, 1
      %p76 = por %p74, %p75
      %p78 = scmp.ne.s32.totalorder %s61, %s77
      %p79 = scmp.eq.s32.totalorder %s15, 0
      %p80 = por %p78, %p79
      %s81 = ssub.s32 %s17, %s24
      %p82 = scmp.eq.s32.totalorder %s81, 0
      %s84 = sadd.s32 %s83, 1
      %s85 = scalar_select %p82, %s83, %s84
      %p88 = pneg %p82
      %p89 = scmp.eq.s32.totalorder %s9, 1
      %p90 = por %p88, %p89
      %p91 = scmp.ne.s32.totalorder %s83, %s86
      %p92 = scmp.eq.s32.totalorder %s9, 0
      %p93 = por %p91, %p92
      %p94 = scmp.ne.s32.totalorder %s83, %s86
      %p95 = scmp.eq.s32.totalorder %s14, 1
      %p96 = por %p94, %p95
      %p97 = scmp.ne.s32.totalorder %s86, %s87
      %p98 = scmp.eq.s32.totalorder %s14, 0
      %p99 = por %p97, %p98
      %p100 = scmp.ne.s32.totalorder %s86, %s87
      %p101 = scmp.eq.s32.totalorder %s15, 1
      %p102 = por %p100, %p101
      %p104 = scmp.ne.s32.totalorder %s87, %s103
      %p105 = scmp.eq.s32.totalorder %s15, 0
      %p106 = por %p104, %p105
      %s107 = ssub.s32 %s16, %s28
      %s108 = ssub.s32 %s17, %s24
      %s109 = sor.u32 %s107, %s108
      %p110 = scmp.eq.s32.totalorder %s109, 0
      %s112 = sadd.s32 %s111, 1
      %s113 = scalar_select %p110, %s111, %s112
      %p116 = pneg %p110
      %p117 = scmp.eq.s32.totalorder %s9, 1
      %p118 = por %p116, %p117
      %p119 = scmp.ne.s32.totalorder %s111, %s114
      %p120 = scmp.eq.s32.totalorder %s9, 0
      %p121 = por %p119, %p120
      %p122 = scmp.ne.s32.totalorder %s111, %s114
      %p123 = scmp.eq.s32.totalorder %s14, 1
      %p124 = por %p122, %p123
      %p125 = scmp.ne.s32.totalorder %s114, %s115
      %p126 = scmp.eq.s32.totalorder %s14, 0
      %p127 = por %p125, %p126
      %p128 = scmp.ne.s32.totalorder %s114, %s115
      %p129 = scmp.eq.s32.totalorder %s15, 1
      %p130 = por %p128, %p129
      %p132 = scmp.ne.s32.totalorder %s115, %s131
      %p133 = scmp.eq.s32.totalorder %s15, 0
      %p134 = por %p132, %p133
      %p135 = scmp.le.s32.totalorder 1, %s9
      %p136 = scmp.lt.s32.totalorder %s9, 3
      %p137 = pnand %p135, %p136
      %p138 = pneg %p137
      // Predicated region
      $region9: #{_lambda_.22} parent=5 // pred_check
        _
      $region10: #{_lambda_.22} parent=5 // pred_check_branch
        %140 = sbr.rel (%p137) target = $region12
      $region11: #{_lambda_.22} parent=5 // pred_region
        %s141 = ssub.s32 %s9, 1
        // Predicated region
        $region13: #{_lambda_.22} parent=11 // pred_check
          %p142 = pneg %p47
        $region14: #{_lambda_.22} parent=11 // pred_check_branch
          %144 = sbr.rel (%p142) target = $region16
        $region15: #{_lambda_.22} parent=11 // pred_region
          %s145 = smul.u32 4, %s18
          %p146 = scmp.lt.s32.totalorder %s145, 3
          %s147 = scalar_select %p146, %s145, 3
          %s148 = smul.addr %s147, 3
          %s149 = smul.addr %s148, 4
          %s150 = scalar_lea.vmem %s0, %s149
          %s151 = smul.u32 4, %s18
        $region16: #{_lambda_.22} parent=11 // pred_fallthru
          _
      $region12: #{_lambda_.22} parent=5 // pred_fallthru
        _
      %p152 = scmp.lt.s32.totalorder %s9, 2
      // Predicated region
      $region17: #{_lambda_.22} parent=5 // pred_check
        %p153 = pneg %p152
      $region18: #{_lambda_.22} parent=5 // pred_check_branch
        %155 = sbr.rel (%p153) target = $region20
      $region19: #{_lambda_.22} parent=5 // pred_region
        // Predicated region
        $region21: #{_lambda_.22} parent=19 // pred_check
          %p156 = pneg %p67
        $region22: #{_lambda_.22} parent=19 // pred_check_branch
          %158 = sbr.rel (%p156) target = $region24
        $region23: #{_lambda_.22} parent=19 // pred_region
          %s159 = sand.u32 %s57, 1
          %s160 = sand.u32 %s57, 1
          %s161 = smul.addr %s160, 288
          %s162 = scalar_lea.vmem [#allocation2], %s161
          %s163 = smul.u32 2, %s17
          %s164 = smul.addr %s163, 4
          %s165 = scalar_lea.vmem %s1, %s164
          // Predicated region
          $region25: #{_lambda_.22} parent=23 // pred_check
            _
          $region26: #{_lambda_.22} parent=23 // pred_check_branch
            %167 = sbr.rel (0) target = $region28
          $region27: #{_lambda_.22} parent=23 // pred_region
            // Predicated region
            $region29: #{_lambda_.22} parent=27 // pred_check
              _
            $region30: #{_lambda_.22} parent=27 // pred_check_branch
              %169 = sbr.rel (0) target = $region32
            $region31: #{_lambda_.22} parent=27 // pred_region
              // Predicated region
              $region44: #{_lambda_.22} parent=31 // pred_check
                _
              $region45: #{_lambda_.22} parent=31 // pred_check_branch
                %255 = sbr.rel (0) target = $region47
              $region46: #{_lambda_.22} parent=31 // pred_region
                loop: start=0, step=1, limit=1
                $region48: #{_lambda_.22} parent=46 // loop_pre_header
                  _
                $region49: #{_lambda_.22} parent=46 // loop_header
                  %s257 = sphi 0, %s261
                  %p258 = scmp.ge.s32.totalorder %s257, 1
                  %s262 = sphi %s165, %s165
                  %s263 = sphi %s162, %s162
                $region50: #{_lambda_.22} parent=46 // loop_header_branch
                  %260 = sbr.rel (%p258) target = $region54
                $region51: #{_lambda_.22} parent=46 // loop_body
                  %v264 = vld [vmem:[%s262] sm:$0xff]
                  %265 = vst [vmem:[%s263] sm:$0xff] %v264
                  %v266 = vld [vmem:[%s262 + $0x10] sm:$0xff]
                  %267 = vst [vmem:[%s263 + $0x8] sm:$0xff] %v266
                  %v268 = vld [vmem:[%s262 + $0x20] sm:$0xff]
                  %269 = vst [vmem:[%s263 + $0x10] sm:$0xff] %v268
                  %v270 = vld [vmem:[%s262 + $0x30] sm:$0xff]
                  %271 = vst [vmem:[%s263 + $0x18] sm:$0xff] %v270
                  %v272 = vld [vmem:[%s262 + $0x40] sm:$0xff]
                  %273 = vst [vmem:[%s263 + $0x20] sm:$0xff] %v272
                  %v274 = vld [vmem:[%s262 + $0x50] sm:$0xff]
                  %275 = vst [vmem:[%s263 + $0x28] sm:$0xff] %v274
                  %v276 = vld [vmem:[%s262 + $0x60] sm:$0xff]
                  %277 = vst [vmem:[%s263 + $0x30] sm:$0xff] %v276
                  %v278 = vld [vmem:[%s262 + $0x70] sm:$0xff]
                  %279 = vst [vmem:[%s263 + $0x38] sm:$0xff] %v278
                  %v280 = vld [vmem:[%s262 + $0x80] sm:$0xff]
                  %281 = vst [vmem:[%s263 + $0x40] sm:$0xff] %v280
                  %v282 = vld [vmem:[%s262 + $0x90] sm:$0xff]
                  %283 = vst [vmem:[%s263 + $0x48] sm:$0xff] %v282
                  %v284 = vld [vmem:[%s262 + $0xa0] sm:$0xff]
                  %285 = vst [vmem:[%s263 + $0x50] sm:$0xff] %v284
                  %v286 = vld [vmem:[%s262 + $0xb0] sm:$0xff]
                  %287 = vst [vmem:[%s263 + $0x58] sm:$0xff] %v286
                  %v288 = vld [vmem:[%s262 + $0xc0] sm:$0xff]
                  %289 = vst [vmem:[%s263 + $0x60] sm:$0xff] %v288
                  %v290 = vld [vmem:[%s262 + $0xd0] sm:$0xff]
                  %291 = vst [vmem:[%s263 + $0x68] sm:$0xff] %v290
                  %v292 = vld [vmem:[%s262 + $0xe0] sm:$0xff]
                  %293 = vst [vmem:[%s263 + $0x70] sm:$0xff] %v292
                  %v294 = vld [vmem:[%s262 + $0xf0] sm:$0xff]
                  %295 = vst [vmem:[%s263 + $0x78] sm:$0xff] %v294
                  %v296 = vld [vmem:[%s262 + $0x100] sm:$0xff]
                  %297 = vst [vmem:[%s263 + $0x80] sm:$0xff] %v296
                  %v298 = vld [vmem:[%s262 + $0x110] sm:$0xff]
                  %299 = vst [vmem:[%s263 + $0x88] sm:$0xff] %v298
                  %v300 = vld [vmem:[%s262 + $0x120] sm:$0xff]
                  %301 = vst [vmem:[%s263 + $0x90] sm:$0xff] %v300
                  %v302 = vld [vmem:[%s262 + $0x130] sm:$0xff]
                  %303 = vst [vmem:[%s263 + $0x98] sm:$0xff] %v302
                  %v304 = vld [vmem:[%s262 + $0x140] sm:$0xff]
                  %305 = vst [vmem:[%s263 + $0xa0] sm:$0xff] %v304
                  %v306 = vld [vmem:[%s262 + $0x150] sm:$0xff]
                  %307 = vst [vmem:[%s263 + $0xa8] sm:$0xff] %v306
                  %v308 = vld [vmem:[%s262 + $0x160] sm:$0xff]
                  %309 = vst [vmem:[%s263 + $0xb0] sm:$0xff] %v308
                  %v310 = vld [vmem:[%s262 + $0x170] sm:$0xff]
                  %311 = vst [vmem:[%s263 + $0xb8] sm:$0xff] %v310
                  %v312 = vld [vmem:[%s262 + $0x180] sm:$0xff]
                  %313 = vst [vmem:[%s263 + $0xc0] sm:$0xff] %v312
                  %v314 = vld [vmem:[%s262 + $0x190] sm:$0xff]
                  %315 = vst [vmem:[%s263 + $0xc8] sm:$0xff] %v314
                  %v316 = vld [vmem:[%s262 + $0x1a0] sm:$0xff]
                  %317 = vst [vmem:[%s263 + $0xd0] sm:$0xff] %v316
                  %v318 = vld [vmem:[%s262 + $0x1b0] sm:$0xff]
                  %319 = vst [vmem:[%s263 + $0xd8] sm:$0xff] %v318
                  %v320 = vld [vmem:[%s262 + $0x1c0] sm:$0xff]
                  %321 = vst [vmem:[%s263 + $0xe0] sm:$0xff] %v320
                  %v322 = vld [vmem:[%s262 + $0x1d0] sm:$0xff]
                  %323 = vst [vmem:[%s263 + $0xe8] sm:$0xff] %v322
                  %v324 = vld [vmem:[%s262 + $0x1e0] sm:$0xff]
                  %325 = vst [vmem:[%s263 + $0xf0] sm:$0xff] %v324
                  %v326 = vld [vmem:[%s262 + $0x1f0] sm:$0xff]
                  %327 = vst [vmem:[%s263 + $0xf8] sm:$0xff] %v326
                  %v328 = vld [vmem:[%s262 + $0x200] sm:$0xff]
                  %329 = vst [vmem:[%s263 + $0x100] sm:$0xff] %v328
                  %v330 = vld [vmem:[%s262 + $0x210] sm:$0xff]
                  %331 = vst [vmem:[%s263 + $0x108] sm:$0xff] %v330
                  %v332 = vld [vmem:[%s262 + $0x220] sm:$0xff]
                  %333 = vst [vmem:[%s263 + $0x110] sm:$0xff] %v332
                  %v334 = vld [vmem:[%s262 + $0x230] sm:$0xff]
                  %335 = vst [vmem:[%s263 + $0x118] sm:$0xff] %v334
                $region52: #{_lambda_.22} parent=46 // loop_footer
                  %s261 = sadd.s32 1, %s257
                $region53: #{_lambda_.22} parent=46 // loop_footer_branch
                  %256 = sbr.rel target = $region49
                $region54: #{_lambda_.22} parent=46 // loop_exit
                  _
              $region47: #{_lambda_.22} parent=31 // pred_fallthru
                _
              // Predicated region
              $region55: #{_lambda_.22} parent=31 // pred_check
                _
              $region56: #{_lambda_.22} parent=31 // pred_check_branch
                %337 = sbr.rel target = $region58
              $region57: #{_lambda_.22} parent=31 // pred_region
                _
              $region58: #{_lambda_.22} parent=31 // pred_fallthru
                _
            $region32: #{_lambda_.22} parent=27 // pred_fallthru
              _
            // Predicated region
            $region33: #{_lambda_.22} parent=27 // pred_check
              _
            $region34: #{_lambda_.22} parent=27 // pred_check_branch
              %171 = sbr.rel target = $region36
            $region35: #{_lambda_.22} parent=27 // pred_region
              %s173 = ssub.s32 256, 1
              loop: start=0, step=1, limit=1
              $region37: #{_lambda_.22} parent=35 // loop_pre_header
                _
              $region38: #{_lambda_.22} parent=35 // loop_header
                %s175 = sphi 0, %s179
                %p176 = scmp.ge.s32.totalorder %s175, 1
                %s180 = sphi %s165, %s165
                %s181 = sphi %s162, %s162
              $region39: #{_lambda_.22} parent=35 // loop_header_branch
                %178 = sbr.rel (%p176) target = $region43
              $region40: #{_lambda_.22} parent=35 // loop_body
                %v182 = vld [vmem:[%s180] sm:%s173]
                %183 = vst [vmem:[%s181] sm:%s173] %v182
                %v184 = vld [vmem:[%s180 + $0x10] sm:%s173]
                %185 = vst [vmem:[%s181 + $0x8] sm:%s173] %v184
                %v186 = vld [vmem:[%s180 + $0x20] sm:%s173]
                %187 = vst [vmem:[%s181 + $0x10] sm:%s173] %v186
                %v188 = vld [vmem:[%s180 + $0x30] sm:%s173]
                %189 = vst [vmem:[%s181 + $0x18] sm:%s173] %v188
                %v190 = vld [vmem:[%s180 + $0x40] sm:%s173]
                %191 = vst [vmem:[%s181 + $0x20] sm:%s173] %v190
                %v192 = vld [vmem:[%s180 + $0x50] sm:%s173]
                %193 = vst [vmem:[%s181 + $0x28] sm:%s173] %v192
                %v194 = vld [vmem:[%s180 + $0x60] sm:%s173]
                %195 = vst [vmem:[%s181 + $0x30] sm:%s173] %v194
                %v196 = vld [vmem:[%s180 + $0x70] sm:%s173]
                %197 = vst [vmem:[%s181 + $0x38] sm:%s173] %v196
                %v198 = vld [vmem:[%s180 + $0x80] sm:%s173]
                %199 = vst [vmem:[%s181 + $0x40] sm:%s173] %v198
                %v200 = vld [vmem:[%s180 + $0x90] sm:%s173]
                %201 = vst [vmem:[%s181 + $0x48] sm:%s173] %v200
                %v202 = vld [vmem:[%s180 + $0xa0] sm:%s173]
                %203 = vst [vmem:[%s181 + $0x50] sm:%s173] %v202
                %v204 = vld [vmem:[%s180 + $0xb0] sm:%s173]
                %205 = vst [vmem:[%s181 + $0x58] sm:%s173] %v204
                %v206 = vld [vmem:[%s180 + $0xc0] sm:%s173]
                %207 = vst [vmem:[%s181 + $0x60] sm:%s173] %v206
                %v208 = vld [vmem:[%s180 + $0xd0] sm:%s173]
                %209 = vst [vmem:[%s181 + $0x68] sm:%s173] %v208
                %v210 = vld [vmem:[%s180 + $0xe0] sm:%s173]
                %211 = vst [vmem:[%s181 + $0x70] sm:%s173] %v210
                %v212 = vld [vmem:[%s180 + $0xf0] sm:%s173]
                %213 = vst [vmem:[%s181 + $0x78] sm:%s173] %v212
                %v214 = vld [vmem:[%s180 + $0x100] sm:%s173]
                %215 = vst [vmem:[%s181 + $0x80] sm:%s173] %v214
                %v216 = vld [vmem:[%s180 + $0x110] sm:%s173]
                %217 = vst [vmem:[%s181 + $0x88] sm:%s173] %v216
                %v218 = vld [vmem:[%s180 + $0x120] sm:%s173]
                %219 = vst [vmem:[%s181 + $0x90] sm:%s173] %v218
                %v220 = vld [vmem:[%s180 + $0x130] sm:%s173]
                %221 = vst [vmem:[%s181 + $0x98] sm:%s173] %v220
                %v222 = vld [vmem:[%s180 + $0x140] sm:%s173]
                %223 = vst [vmem:[%s181 + $0xa0] sm:%s173] %v222
                %v224 = vld [vmem:[%s180 + $0x150] sm:%s173]
                %225 = vst [vmem:[%s181 + $0xa8] sm:%s173] %v224
                %v226 = vld [vmem:[%s180 + $0x160] sm:%s173]
                %227 = vst [vmem:[%s181 + $0xb0] sm:%s173] %v226
                %v228 = vld [vmem:[%s180 + $0x170] sm:%s173]
                %229 = vst [vmem:[%s181 + $0xb8] sm:%s173] %v228
                %v230 = vld [vmem:[%s180 + $0x180] sm:%s173]
                %231 = vst [vmem:[%s181 + $0xc0] sm:%s173] %v230
                %v232 = vld [vmem:[%s180 + $0x190] sm:%s173]
                %233 = vst [vmem:[%s181 + $0xc8] sm:%s173] %v232
                %v234 = vld [vmem:[%s180 + $0x1a0] sm:%s173]
                %235 = vst [vmem:[%s181 + $0xd0] sm:%s173] %v234
                %v236 = vld [vmem:[%s180 + $0x1b0] sm:%s173]
                %237 = vst [vmem:[%s181 + $0xd8] sm:%s173] %v236
                %v238 = vld [vmem:[%s180 + $0x1c0] sm:%s173]
                %239 = vst [vmem:[%s181 + $0xe0] sm:%s173] %v238
                %v240 = vld [vmem:[%s180 + $0x1d0] sm:%s173]
                %241 = vst [vmem:[%s181 + $0xe8] sm:%s173] %v240
                %v242 = vld [vmem:[%s180 + $0x1e0] sm:%s173]
                %243 = vst [vmem:[%s181 + $0xf0] sm:%s173] %v242
                %v244 = vld [vmem:[%s180 + $0x1f0] sm:%s173]
                %245 = vst [vmem:[%s181 + $0xf8] sm:%s173] %v244
                %v246 = vld [vmem:[%s180 + $0x200] sm:%s173]
                %247 = vst [vmem:[%s181 + $0x100] sm:%s173] %v246
                %v248 = vld [vmem:[%s180 + $0x210] sm:%s173]
                %249 = vst [vmem:[%s181 + $0x108] sm:%s173] %v248
                %v250 = vld [vmem:[%s180 + $0x220] sm:%s173]
                %251 = vst [vmem:[%s181 + $0x110] sm:%s173] %v250
                %v252 = vld [vmem:[%s180 + $0x230] sm:%s173]
                %253 = vst [vmem:[%s181 + $0x118] sm:%s173] %v252
              $region41: #{_lambda_.22} parent=35 // loop_footer
                %s179 = sadd.s32 1, %s175
              $region42: #{_lambda_.22} parent=35 // loop_footer_branch
                %174 = sbr.rel target = $region38
              $region43: #{_lambda_.22} parent=35 // loop_exit
                _
            $region36: #{_lambda_.22} parent=27 // pred_fallthru
              _
          $region28: #{_lambda_.22} parent=23 // pred_fallthru
            _
          %338 = vnop
        $region24: #{_lambda_.22} parent=19 // pred_fallthru
          _
        // Predicated region
        $region59: #{_lambda_.22} parent=19 // pred_check
          %p339 = pneg %p93
        $region60: #{_lambda_.22} parent=19 // pred_check_branch
          %341 = sbr.rel (%p339) target = $region62
        $region61: #{_lambda_.22} parent=19 // pred_region
          %s342 = smul.u32 2, %s17
          %p343 = scmp.lt.s32.totalorder %s342, 3
          %s344 = scalar_select %p343, %s342, 3
          %s345 = scalar_lea.vmem %s2, %s344
          %s346 = smul.u32 2, %s17
        $region62: #{_lambda_.22} parent=19 // pred_fallthru
          _
      $region20: #{_lambda_.22} parent=5 // pred_fallthru
        _
      %p347 = scmp.le.s32.totalorder 1, %s9
      %p348 = scmp.lt.s32.totalorder %s9, 3
      %p349 = pnand %p347, %p348
      %p350 = pneg %p349
      // Predicated region
      $region63: #{_lambda_.22} parent=5 // pred_check
        _
      $region64: #{_lambda_.22} parent=5 // pred_check_branch
        %352 = sbr.rel (%p349) target = $region66
      $region65: #{_lambda_.22} parent=5 // pred_region
        %s353 = ssub.s32 %s9, 1
        %s354 = sand.u32 %s60, 1
        %s355 = sand.u32 %s60, 1
        %s356 = smul.addr %s355, 288
        %s357 = scalar_lea.vmem [#allocation2], %s356
        // Predicated region
        $region67: #{_lambda_.22} parent=65 // pred_check
          %p358 = pneg %p73
        $region68: #{_lambda_.22} parent=65 // pred_check_branch
          %360 = sbr.rel (%p358) target = $region70
        $region69: #{_lambda_.22} parent=65 // pred_region
          _
        $region70: #{_lambda_.22} parent=65 // pred_fallthru
          _
        %s361 = smul.u32 4, %s18
        %p362 = scmp.lt.s32.totalorder %s361, 3
        %s363 = scalar_select %p362, %s361, 3
        %s364 = smul.addr %s363, 3
        %s365 = smul.addr %s364, 4
        %s366 = scalar_lea.vmem %s0, %s365
        %p367 = pneg %p47
        %p368 = pneg %p44
        %s369 = sand.u32 %s60, 1
        %s370 = sand.u32 %s60, 1
        %s371 = smul.addr %s370, 288
        %s372 = scalar_lea.vmem [#allocation2], %s371
        %p373 = pneg %p73
        %p374 = pneg %p70
        %s375 = smul.u32 2, %s19
        %p376 = scmp.lt.s32.totalorder %s375, 3
        %s377 = scalar_select %p376, %s375, 3
        %s378 = scalar_lea.vmem %s2, %s377
        %p379 = pneg %p99
        %p380 = pneg %p96
        %p381 = pneg %p127
        %p382 = pneg %p124
        %s383 = sand.u32 %s114, 1
        %s384 = sand.u32 %s114, 1
        %s385 = smul.addr %s384, 32
        %s386 = scalar_lea.vmem [#allocation3], %s385
        %s387 = smul.u32 4, %s18
        %p388 = scmp.lt.s32.totalorder %s387, 3
        %s389 = scalar_select %p388, %s387, 3
        %s390 = smul.addr %s389, 3
        %s391 = smul.addr %s390, 4
        %s392 = scalar_lea.vmem %s0, %s391
        %s393 = smul.u32 4, %s18
        %s394 = smul.u32 2, %s19
        %s395 = smul.u32 2, %s19
        %p396 = scmp.lt.s32.totalorder %s395, 3
        %s397 = scalar_select %p396, %s395, 3
        %s398 = scalar_lea.vmem %s2, %s397
        %s399 = smul.u32 2, %s19
        %s400 = smul.u32 4, %s18
        %s401 = smul.u32 2, %s19
        %v403 = vld [vmem:[%s392] sm:$0xff]
        %v404 = vld [vmem:[%s392 + $0x8] sm:$0xf]
        %v405 = vld [vmem:[%s392 + $0xc] sm:$0xff]
        %v406 = vld [vmem:[%s392 + $0x14] sm:$0xf]
        %v407 = vld [vmem:[%s392 + $0x18] sm:$0xff]
        %v408 = vld [vmem:[%s392 + $0x20] sm:$0xf]
        %v409 = vld [vmem:[%s392 + $0x24] sm:$0xff]
        %v410 = vld [vmem:[%s392 + $0x2c] sm:$0xf]
        %v411 = vld [vmem:[%s357] sm:$0xff]
        %v412 = vld [vmem:[%s357 + $0x8] sm:$0xff]
        %v413 = vld [vmem:[%s357 + $0x10] sm:$0xff]
        %v414 = vld [vmem:[%s357 + $0x18] sm:$0xff]
        %v415 = vld [vmem:[%s357 + $0x20] sm:$0xff]
        %v416 = vld [vmem:[%s357 + $0x28] sm:$0xff]
        %v417 = vld [vmem:[%s357 + $0x30] sm:$0xff]
        %v418 = vld [vmem:[%s357 + $0x38] sm:$0xff]
        %v419 = vld [vmem:[%s357 + $0x40] sm:$0xff]
        %v420 = vld [vmem:[%s357 + $0x48] sm:$0xff]
        %v421 = vld [vmem:[%s357 + $0x50] sm:$0xff]
        %v422 = vld [vmem:[%s357 + $0x58] sm:$0xff]
        %v423 = vld [vmem:[%s357 + $0x60] sm:$0xff]
        %v424 = vld [vmem:[%s357 + $0x68] sm:$0xff]
        %v425 = vld [vmem:[%s357 + $0x70] sm:$0xff]
        %v426 = vld [vmem:[%s357 + $0x78] sm:$0xff]
        %v427 = vld [vmem:[%s357 + $0x80] sm:$0xff]
        %v428 = vld [vmem:[%s357 + $0x88] sm:$0xff]
        %v429 = vld [vmem:[%s357 + $0x90] sm:$0xff]
        %v430 = vld [vmem:[%s357 + $0x98] sm:$0xff]
        %v431 = vld [vmem:[%s357 + $0xa0] sm:$0xff]
        %v432 = vld [vmem:[%s357 + $0xa8] sm:$0xff]
        %v433 = vld [vmem:[%s357 + $0xb0] sm:$0xff]
        %v434 = vld [vmem:[%s357 + $0xb8] sm:$0xff]
        %v435 = vld [vmem:[%s357 + $0xc0] sm:$0xff]
        %v436 = vld [vmem:[%s357 + $0xc8] sm:$0xff]
        %v437 = vld [vmem:[%s357 + $0xd0] sm:$0xff]
        %v438 = vld [vmem:[%s357 + $0xd8] sm:$0xff]
        %v439 = vld [vmem:[%s357 + $0xe0] sm:$0xff]
        %v440 = vld [vmem:[%s357 + $0xe8] sm:$0xff]
        %v441 = vld [vmem:[%s357 + $0xf0] sm:$0xff]
        %v442 = vld [vmem:[%s357 + $0xf8] sm:$0xff]
        %v443 = vld [vmem:[%s357 + $0x100] sm:$0xff]
        %v444 = vld [vmem:[%s357 + $0x108] sm:$0xff]
        %v445 = vld [vmem:[%s357 + $0x110] sm:$0xff]
        %v446 = vld [vmem:[%s357 + $0x118] sm:$0xff]
        %v447 = vld [vmem:[%s398] sm:$0x3]
        %v449 = vperm.slane %v447, 0
        %v450 = vperm.slane %v447, 1
        %v461 = vunpack.c.l.b16 %v403
        %v462 = vunpack.c.h.b16 %v403
        %v463 = vunpack.c.l.b16 %v404
        %v464 = vunpack.c.l.b16 %v405
        %v465 = vunpack.c.h.b16 %v405
        %v466 = vunpack.c.l.b16 %v406
        %v467 = vunpack.c.l.b16 %v407
        %v468 = vunpack.c.h.b16 %v407
        %v469 = vunpack.c.l.b16 %v408
        %v470 = vunpack.c.l.b16 %v409
        %v471 = vunpack.c.h.b16 %v409
        %v472 = vunpack.c.l.b16 %v410
        %v473 = vpack.c.b16 %v464, %v461
        %v474 = vpack.c.b16 %v465, %v462
        %v475 = vpack.c.b16 %v466, %v463
        %v476 = vpack.c.b16 %v470, %v467
        %v477 = vpack.c.b16 %v471, %v468
        %v478 = vpack.c.b16 %v472, %v469
        %v519 = vunpack.c.l.b16 %v411
        %v520 = vunpack.c.h.b16 %v411
        %v521 = vunpack.c.l.b16 %v412
        %v522 = vunpack.c.h.b16 %v412
        %v523 = vunpack.c.l.b16 %v413
        %v524 = vunpack.c.h.b16 %v413
        %v525 = vunpack.c.l.b16 %v414
        %v526 = vunpack.c.h.b16 %v414
        %v527 = vunpack.c.l.b16 %v415
        %v528 = vunpack.c.h.b16 %v415
        %v529 = vunpack.c.l.b16 %v416
        %v530 = vunpack.c.h.b16 %v416
        %v531 = vunpack.c.l.b16 %v417
        %v532 = vunpack.c.h.b16 %v417
        %v533 = vunpack.c.l.b16 %v418
        %v534 = vunpack.c.h.b16 %v418
        %v535 = vunpack.c.l.b16 %v419
        %v536 = vunpack.c.h.b16 %v419
        %v537 = vunpack.c.l.b16 %v420
        %v538 = vunpack.c.h.b16 %v420
        %v539 = vunpack.c.l.b16 %v421
        %v540 = vunpack.c.h.b16 %v421
        %v541 = vunpack.c.l.b16 %v422
        %v542 = vunpack.c.h.b16 %v422
        %v543 = vunpack.c.l.b16 %v423
        %v544 = vunpack.c.h.b16 %v423
        %v545 = vunpack.c.l.b16 %v424
        %v546 = vunpack.c.h.b16 %v424
        %v547 = vunpack.c.l.b16 %v425
        %v548 = vunpack.c.h.b16 %v425
        %v549 = vunpack.c.l.b16 %v426
        %v550 = vunpack.c.h.b16 %v426
        %v551 = vunpack.c.l.b16 %v427
        %v552 = vunpack.c.h.b16 %v427
        %v553 = vunpack.c.l.b16 %v428
        %v554 = vunpack.c.h.b16 %v428
        %v555 = vunpack.c.l.b16 %v429
        %v556 = vunpack.c.h.b16 %v429
        %v557 = vunpack.c.l.b16 %v430
        %v558 = vunpack.c.h.b16 %v430
        %v559 = vunpack.c.l.b16 %v431
        %v560 = vunpack.c.h.b16 %v431
        %v561 = vunpack.c.l.b16 %v432
        %v562 = vunpack.c.h.b16 %v432
        %v563 = vunpack.c.l.b16 %v433
        %v564 = vunpack.c.h.b16 %v433
        %v565 = vunpack.c.l.b16 %v434
        %v566 = vunpack.c.h.b16 %v434
        %v567 = vunpack.c.l.b16 %v435
        %v568 = vunpack.c.h.b16 %v435
        %v569 = vunpack.c.l.b16 %v436
        %v570 = vunpack.c.h.b16 %v436
        %v571 = vunpack.c.l.b16 %v437
        %v572 = vunpack.c.h.b16 %v437
        %v573 = vunpack.c.l.b16 %v438
        %v574 = vunpack.c.h.b16 %v438
        %v575 = vunpack.c.l.b16 %v439
        %v576 = vunpack.c.h.b16 %v439
        %v577 = vunpack.c.l.b16 %v440
        %v578 = vunpack.c.h.b16 %v440
        %v579 = vunpack.c.l.b16 %v441
        %v580 = vunpack.c.h.b16 %v441
        %v581 = vunpack.c.l.b16 %v442
        %v582 = vunpack.c.h.b16 %v442
        %v583 = vunpack.c.l.b16 %v443
        %v584 = vunpack.c.h.b16 %v443
        %v585 = vunpack.c.l.b16 %v444
        %v586 = vunpack.c.h.b16 %v444
        %v587 = vunpack.c.l.b16 %v445
        %v588 = vunpack.c.h.b16 %v445
        %v589 = vunpack.c.l.b16 %v446
        %v590 = vunpack.c.h.b16 %v446
        %v591 = vpack.c.b16 %v521, %v519
        %v592 = vpack.c.b16 %v522, %v520
        %v593 = vpack.c.b16 %v525, %v523
        %v594 = vpack.c.b16 %v526, %v524
        %v595 = vpack.c.b16 %v529, %v527
        %v596 = vpack.c.b16 %v530, %v528
        %v597 = vpack.c.b16 %v533, %v531
        %v598 = vpack.c.b16 %v534, %v532
        %v599 = vpack.c.b16 %v537, %v535
        %v600 = vpack.c.b16 %v538, %v536
        %v601 = vpack.c.b16 %v541, %v539
        %v602 = vpack.c.b16 %v542, %v540
        %v603 = vpack.c.b16 %v545, %v543
        %v604 = vpack.c.b16 %v546, %v544
        %v605 = vpack.c.b16 %v549, %v547
        %v606 = vpack.c.b16 %v550, %v548
        %v607 = vpack.c.b16 %v553, %v551
        %v608 = vpack.c.b16 %v554, %v552
        %v609 = vpack.c.b16 %v557, %v555
        %v610 = vpack.c.b16 %v558, %v556
        %v611 = vpack.c.b16 %v561, %v559
        %v612 = vpack.c.b16 %v562, %v560
        %v613 = vpack.c.b16 %v565, %v563
        %v614 = vpack.c.b16 %v566, %v564
        %v615 = vpack.c.b16 %v569, %v567
        %v616 = vpack.c.b16 %v570, %v568
        %v617 = vpack.c.b16 %v573, %v571
        %v618 = vpack.c.b16 %v574, %v572
        %v619 = vpack.c.b16 %v577, %v575
        %v620 = vpack.c.b16 %v578, %v576
        %v621 = vpack.c.b16 %v581, %v579
        %v622 = vpack.c.b16 %v582, %v580
        %v623 = vpack.c.b16 %v585, %v583
        %v624 = vpack.c.b16 %v586, %v584
        %v625 = vpack.c.b16 %v589, %v587
        %v626 = vpack.c.b16 %v590, %v588
        %vm663 = vcmask 261120
        %v665 = vsel %vm663, %v475, 0
        %v668 = vsel %vm663, %v478, 0
        %670 = vmatpush.bf16.msra.mxu0 %v605
        %671 = vmatpush.bf16.msra.mxu0 %v603
        %672 = vmatpush.bf16.msra.mxu0 %v601
        %673 = vmatpush.bf16.msra.mxu0 %v599
        %674 = vmatpush.bf16.msra.mxu0 %v597
        %675 = vmatpush.bf16.msra.mxu0 %v595
        %676 = vmatpush.bf16.msra.mxu0 %v593
        %677 = vmatpush.bf16.msra.mxu0 %v591
        %678 = vmatmul.bf16.gmra.mxu0 %v473
        %v679 = vpop.f32.mrf.mxu0
        %v680 = vadd.f32 %v449, %v679
        %v681 = vpop.f32.mrf.mxu0
        %v682 = vadd.f32 %v449, %v681
        %683 = vmatmul.bf16.gmra.mxu0 %v476
        %v684 = vpop.f32.mrf.mxu0
        %v685 = vadd.f32 %v449, %v684
        %v686 = vpop.f32.mrf.mxu0
        %v687 = vadd.f32 %v449, %v686
        %688 = vdwg.mxu0
        %689 = vmatpush.bf16.msra.mxu0 %v621
        %690 = vmatpush.bf16.msra.mxu0 %v619
        %691 = vmatpush.bf16.msra.mxu0 %v617
        %692 = vmatpush.bf16.msra.mxu0 %v615
        %693 = vmatpush.bf16.msra.mxu0 %v613
        %694 = vmatpush.bf16.msra.mxu0 %v611
        %695 = vmatpush.bf16.msra.mxu0 %v609
        %696 = vmatpush.bf16.msra.mxu0 %v607
        %697 = vmatmul.bf16.gmra.mxu0 %v474
        %v698 = vpop.f32.mrf.mxu0
        %v699 = vadd.f32 %v680, %v698
        %v700 = vpop.f32.mrf.mxu0
        %v701 = vadd.f32 %v682, %v700
        %702 = vmatmul.bf16.gmra.mxu0 %v477
        %v703 = vpop.f32.mrf.mxu0
        %v704 = vadd.f32 %v685, %v703
        %v705 = vpop.f32.mrf.mxu0
        %v706 = vadd.f32 %v687, %v705
        %707 = vdwg.mxu0
        %708 = vmatpush.bf16.msra.mxu0 0
        %709 = vmatpush.bf16.msra.mxu0 0
        %710 = vmatpush.bf16.msra.mxu0 0
        %711 = vmatpush.bf16.msra.mxu0 0
        %712 = vmatpush.bf16.msra.mxu0 0
        %713 = vmatpush.bf16.msra.mxu0 0
        %714 = vmatpush.bf16.msra.mxu0 %v625
        %715 = vmatpush.bf16.msra.mxu0 %v623
        %716 = vmatmul.bf16.gmra.mxu0 %v665
        %v717 = vpop.f32.mrf.mxu0
        %v718 = vadd.f32 %v699, %v717
        %v719 = vpop.f32.mrf.mxu0
        %v720 = vadd.f32 %v701, %v719
        %721 = vmatmul.bf16.gmra.mxu0 %v668
        %v722 = vpop.f32.mrf.mxu0
        %v723 = vadd.f32 %v704, %v722
        %v724 = vpop.f32.mrf.mxu0
        %v725 = vadd.f32 %v706, %v724
        %726 = vdwg.mxu0
        %727 = vmatpush.bf16.msra.mxu0 %v606
        %728 = vmatpush.bf16.msra.mxu0 %v604
        %729 = vmatpush.bf16.msra.mxu0 %v602
        %730 = vmatpush.bf16.msra.mxu0 %v600
        %731 = vmatpush.bf16.msra.mxu0 %v598
        %732 = vmatpush.bf16.msra.mxu0 %v596
        %733 = vmatpush.bf16.msra.mxu0 %v594
        %734 = vmatpush.bf16.msra.mxu0 %v592
        %735 = vmatmul.bf16.gmra.mxu0 %v473
        %v736 = vpop.f32.mrf.mxu0
        %v737 = vadd.f32 %v450, %v736
        %v738 = vpop.f32.mrf.mxu0
        %v739 = vadd.f32 %v450, %v738
        %740 = vmatmul.bf16.gmra.mxu0 %v476
        %v741 = vpop.f32.mrf.mxu0
        %v742 = vadd.f32 %v450, %v741
        %v743 = vpop.f32.mrf.mxu0
        %v744 = vadd.f32 %v450, %v743
        %745 = vdwg.mxu0
        %746 = vmatpush.bf16.msra.mxu0 %v622
        %747 = vmatpush.bf16.msra.mxu0 %v620
        %748 = vmatpush.bf16.msra.mxu0 %v618
        %749 = vmatpush.bf16.msra.mxu0 %v616
        %750 = vmatpush.bf16.msra.mxu0 %v614
        %751 = vmatpush.bf16.msra.mxu0 %v612
        %752 = vmatpush.bf16.msra.mxu0 %v610
        %753 = vmatpush.bf16.msra.mxu0 %v608
        %754 = vmatmul.bf16.gmra.mxu0 %v474
        %v755 = vpop.f32.mrf.mxu0
        %v756 = vadd.f32 %v737, %v755
        %v757 = vpop.f32.mrf.mxu0
        %v758 = vadd.f32 %v739, %v757
        %759 = vmatmul.bf16.gmra.mxu0 %v477
        %v760 = vpop.f32.mrf.mxu0
        %v761 = vadd.f32 %v742, %v760
        %v762 = vpop.f32.mrf.mxu0
        %v763 = vadd.f32 %v744, %v762
        %764 = vdwg.mxu0
        %765 = vmatpush.bf16.msra.mxu0 0
        %766 = vmatpush.bf16.msra.mxu0 0
        %767 = vmatpush.bf16.msra.mxu0 0
        %768 = vmatpush.bf16.msra.mxu0 0
        %769 = vmatpush.bf16.msra.mxu0 0
        %770 = vmatpush.bf16.msra.mxu0 0
        %771 = vmatpush.bf16.msra.mxu0 %v626
        %772 = vmatpush.bf16.msra.mxu0 %v624
        %773 = vmatmul.bf16.gmra.mxu0 %v665
        %v774 = vpop.f32.mrf.mxu0
        %v775 = vadd.f32 %v756, %v774
        %v776 = vpop.f32.mrf.mxu0
        %v777 = vadd.f32 %v758, %v776
        %778 = vmatmul.bf16.gmra.mxu0 %v668
        %v779 = vpop.f32.mrf.mxu0
        %v780 = vadd.f32 %v761, %v779
        %v781 = vpop.f32.mrf.mxu0
        %v782 = vadd.f32 %v763, %v781
        %783 = vdwg.mxu0
        %v784 = vmax.f32 %v718, 0.0
        %v785 = vmax.f32 %v775, 0.0
        %v786 = vmax.f32 %v720, 0.0
        %v787 = vmax.f32 %v777, 0.0
        %v788 = vmax.f32 %v723, 0.0
        %v789 = vmax.f32 %v780, 0.0
        %v790 = vmax.f32 %v725, 0.0
        %v791 = vmax.f32 %v782, 0.0
        %v792 = vpack.c.bf16 %v785, %v784
        %v793 = vpack.c.bf16 %v787, %v786
        %v794 = vpack.c.bf16 %v789, %v788
        %v795 = vpack.c.bf16 %v791, %v790
        %796 = vst [vmem:[%s386] sm:$0xff] %v792
        %797 = vst [vmem:[%s386 + $0x8] sm:$0xff] %v793
        %798 = vst [vmem:[%s386 + $0x10] sm:$0xff] %v794
        %799 = vst [vmem:[%s386 + $0x18] sm:$0xff] %v795
        %s800 = sand.u32 %s114, 1
        %s801 = sand.u32 %s114, 1
        %s802 = smul.addr %s801, 32
        %s803 = scalar_lea.vmem [#allocation3], %s802
        // Predicated region
        $region71: #{_lambda_.22} parent=65 // pred_check
          %p804 = pneg %p124
        $region72: #{_lambda_.22} parent=65 // pred_check_branch
          %806 = sbr.rel (%p804) target = $region74
        $region73: #{_lambda_.22} parent=65 // pred_region
          %s807 = smul.u32 4, %s18
          %s808 = smul.u32 2, %s19
          %s809 = smul.addr %s807, 4
          %s810 = sadd.s32 %s808, %s809
          %s811 = smul.addr %s810, 4
          %s812 = scalar_lea.vmem %s3, %s811
          // Predicated region
          $region75: #{_lambda_.22} parent=73 // pred_check
            _
          $region76: #{_lambda_.22} parent=73 // pred_check_branch
            %814 = sbr.rel (0) target = $region78
          $region77: #{_lambda_.22} parent=73 // pred_region
            // Predicated region
            $region79: #{_lambda_.22} parent=77 // pred_check
              _
            $region80: #{_lambda_.22} parent=77 // pred_check_branch
              %816 = sbr.rel (0) target = $region82
            $region81: #{_lambda_.22} parent=77 // pred_region
              // Predicated region
              $region94: #{_lambda_.22} parent=81 // pred_check
                _
              $region95: #{_lambda_.22} parent=81 // pred_check_branch
                %838 = sbr.rel (0) target = $region97
              $region96: #{_lambda_.22} parent=81 // pred_region
                loop: start=0, step=1, limit=1
                $region98: #{_lambda_.22} parent=96 // loop_pre_header
                  _
                $region99: #{_lambda_.22} parent=96 // loop_header
                  %s840 = sphi 0, %s844
                  %p841 = scmp.ge.s32.totalorder %s840, 1
                  %s845 = sphi %s803, %s803
                  %s846 = sphi %s812, %s812
                $region100: #{_lambda_.22} parent=96 // loop_header_branch
                  %843 = sbr.rel (%p841) target = $region104
                $region101: #{_lambda_.22} parent=96 // loop_body
                  %v847 = vld [vmem:[%s845] sm:$0xff]
                  %848 = vst [vmem:[%s846] sm:$0xff] %v847
                  %v849 = vld [vmem:[%s845 + $0x8] sm:$0xff]
                  %850 = vst [vmem:[%s846 + $0x10] sm:$0xff] %v849
                  %v851 = vld [vmem:[%s845 + $0x10] sm:$0xff]
                  %852 = vst [vmem:[%s846 + $0x20] sm:$0xff] %v851
                  %v853 = vld [vmem:[%s845 + $0x18] sm:$0xff]
                  %854 = vst [vmem:[%s846 + $0x30] sm:$0xff] %v853
                $region102: #{_lambda_.22} parent=96 // loop_footer
                  %s844 = sadd.s32 1, %s840
                $region103: #{_lambda_.22} parent=96 // loop_footer_branch
                  %839 = sbr.rel target = $region99
                $region104: #{_lambda_.22} parent=96 // loop_exit
                  _
              $region97: #{_lambda_.22} parent=81 // pred_fallthru
                _
              // Predicated region
              $region105: #{_lambda_.22} parent=81 // pred_check
                _
              $region106: #{_lambda_.22} parent=81 // pred_check_branch
                %856 = sbr.rel target = $region108
              $region107: #{_lambda_.22} parent=81 // pred_region
                _
              $region108: #{_lambda_.22} parent=81 // pred_fallthru
                _
            $region82: #{_lambda_.22} parent=77 // pred_fallthru
              _
            // Predicated region
            $region83: #{_lambda_.22} parent=77 // pred_check
              _
            $region84: #{_lambda_.22} parent=77 // pred_check_branch
              %818 = sbr.rel target = $region86
            $region85: #{_lambda_.22} parent=77 // pred_region
              %s820 = ssub.s32 256, 1
              loop: start=0, step=1, limit=1
              $region87: #{_lambda_.22} parent=85 // loop_pre_header
                _
              $region88: #{_lambda_.22} parent=85 // loop_header
                %s822 = sphi 0, %s826
                %p823 = scmp.ge.s32.totalorder %s822, 1
                %s827 = sphi %s803, %s803
                %s828 = sphi %s812, %s812
              $region89: #{_lambda_.22} parent=85 // loop_header_branch
                %825 = sbr.rel (%p823) target = $region93
              $region90: #{_lambda_.22} parent=85 // loop_body
                %v829 = vld [vmem:[%s827] sm:%s820]
                %830 = vst [vmem:[%s828] sm:%s820] %v829
                %v831 = vld [vmem:[%s827 + $0x8] sm:%s820]
                %832 = vst [vmem:[%s828 + $0x10] sm:%s820] %v831
                %v833 = vld [vmem:[%s827 + $0x10] sm:%s820]
                %834 = vst [vmem:[%s828 + $0x20] sm:%s820] %v833
                %v835 = vld [vmem:[%s827 + $0x18] sm:%s820]
                %836 = vst [vmem:[%s828 + $0x30] sm:%s820] %v835
              $region91: #{_lambda_.22} parent=85 // loop_footer
                %s826 = sadd.s32 1, %s822
              $region92: #{_lambda_.22} parent=85 // loop_footer_branch
                %821 = sbr.rel target = $region88
              $region93: #{_lambda_.22} parent=85 // loop_exit
                _
            $region86: #{_lambda_.22} parent=77 // pred_fallthru
              _
          $region78: #{_lambda_.22} parent=73 // pred_fallthru
            _
          %857 = vnop
        $region74: #{_lambda_.22} parent=65 // pred_fallthru
          _
      $region66: #{_lambda_.22} parent=5 // pred_fallthru
        _
      %p858 = scmp.le.s32.totalorder 2, %s9
      // Predicated region
      $region109: #{_lambda_.22} parent=5 // pred_check
        %p859 = pneg %p858
      $region110: #{_lambda_.22} parent=5 // pred_check_branch
        %861 = sbr.rel (%p859) target = $region112
      $region111: #{_lambda_.22} parent=5 // pred_region
        %s862 = ssub.s32 %s9, 2
        // Predicated region
        $region113: #{_lambda_.22} parent=111 // pred_check
          %p863 = pneg %p130
        $region114: #{_lambda_.22} parent=111 // pred_check_branch
          %865 = sbr.rel (%p863) target = $region116
        $region115: #{_lambda_.22} parent=111 // pred_region
          %s866 = sand.u32 %s115, 1
          %s867 = sand.u32 %s115, 1
          %s868 = smul.addr %s867, 32
          %s869 = scalar_lea.vmem [#allocation3], %s868
        $region116: #{_lambda_.22} parent=111 // pred_fallthru
          _
      $region112: #{_lambda_.22} parent=5 // pred_fallthru
        _
    $region6: #{_lambda_.22} parent=1 // loop_footer
      %s13 = sadd.s32 1, %s9
    $region7: #{_lambda_.22} parent=1 // loop_footer_branch
      %8 = sbr.rel target = $region3
    $region8: #{_lambda_.22} parent=1 // loop_exit
      _

// kernel: squeeze.3
$region0: #{squeeze.3}
  %s0 = inlined_call_operand.vmem [shape: s32[32], index: 0, kind: input, shape index: {}]
  %s1 = inlined_call_operand.hbm [shape: s32[2,4,4], index: 1, kind: output, shape index: {}]
  $region1: #{squeeze.3} parent=0
    #allocation0 [shape = 'u8[4096]{0}', space=vmem, size = 0x1000, scoped, tag = 'operand span for operand 1']
    #allocation1 [shape = 's32[1]{0}', space=sflag, size = 0x4, scoped, tag = 'scoped memory for squeeze.3']
    #allocation2 [shape = 'u8[8192]{0}', space=vmem, size = 0x2000, scoped, tag = 'scoped mem for output reshape']
    #allocation3 [shape = 'u8[4096]{0}', space=vmem, size = 0x1000, scoped, tag = 'scoped mem for input reshape']
    %2 = vsyncpa [#allocation1], 0
    %s4 = ssub.s32 2, 1
    %v5 = vld [vmem:[%s0] sm:%s4]
    %6 = vst [vmem:[#allocation3] sm:%s4] %v5
    %v7 = vld [vmem:[#allocation3] sm:$0x1]
    %vm8 = vcmask 31744
    %9 = vst.msk [vmem:[#allocation2] sm:$0x1] %vm8, %v7
    %v10 = vld [vmem:[#allocation3] sm:$0x1]
    %11 = vrot.lane.b32.xlu0 %v10, 124
    %v12 = vpop.permute.xlu0 %11
    %vm13 = vcmask 31744
    %s14 = scalar_lea.vmem [#allocation2], 1
    %15 = vst.msk [vmem:[%s14] sm:$0x1] %vm13, %v12
    %v16 = vld [vmem:[#allocation3] sm:$0x1]
    %17 = vrot.lane.b32.xlu0 %v16, 120
    %v18 = vpop.permute.xlu0 %17
    %vm19 = vcmask 31744
    %s20 = scalar_lea.vmem [#allocation2], 2
    %21 = vst.msk [vmem:[%s20] sm:$0x1] %vm19, %v18
    %v22 = vld [vmem:[#allocation3] sm:$0x1]
    %23 = vrot.lane.b32.xlu0 %v22, 116
    %v24 = vpop.permute.xlu0 %23
    %vm25 = vcmask 31744
    %s26 = scalar_lea.vmem [#allocation2], 3
    %27 = vst.msk [vmem:[%s26] sm:$0x1] %vm25, %v24
    %v28 = vld [vmem:[#allocation3] sm:$0x1]
    %29 = vrot.lane.b32.xlu0 %v28, 112
    %v30 = vpop.permute.xlu0 %29
    %vm31 = vcmask 31744
    %s32 = scalar_lea.vmem [#allocation2], 8
    %33 = vst.msk [vmem:[%s32] sm:$0x1] %vm31, %v30
    %v34 = vld [vmem:[#allocation3] sm:$0x1]
    %35 = vrot.lane.b32.xlu0 %v34, 108
    %v36 = vpop.permute.xlu0 %35
    %vm37 = vcmask 31744
    %s38 = scalar_lea.vmem [#allocation2], 9
    %39 = vst.msk [vmem:[%s38] sm:$0x1] %vm37, %v36
    %v40 = vld [vmem:[#allocation3] sm:$0x1]
    %41 = vrot.lane.b32.xlu0 %v40, 104
    %v42 = vpop.permute.xlu0 %41
    %vm43 = vcmask 31744
    %s44 = scalar_lea.vmem [#allocation2], 10
    %45 = vst.msk [vmem:[%s44] sm:$0x1] %vm43, %v42
    %v46 = vld [vmem:[#allocation3] sm:$0x1]
    %47 = vrot.lane.b32.xlu0 %v46, 100
    %v48 = vpop.permute.xlu0 %47
    %vm49 = vcmask 31744
    %s50 = scalar_lea.vmem [#allocation2], 11
    %51 = vst.msk [vmem:[%s50] sm:$0x1] %vm49, %v48
    %s53 = ssub.s32 16, 1
    %v54 = vld [vmem:[#allocation2] sm:%s53]
    %s56 = ssub.s32 16, 1
    %57 = vst [vmem:[#allocation0] sm:%s56] %v54
    %s58 = scalar_lea.vmem [#allocation2], 8
    %v59 = vld [vmem:[%s58] sm:%s53]
    %s61 = ssub.s32 16, 1
    %s62 = scalar_lea.vmem [#allocation0], 4
    %63 = vst [vmem:[%s62] sm:%s61] %v59
    %65 = vsyncadd [#allocation1], 0
    %s67 = sshll.u32 [#allocation0], 4
    %s68 = int_to_ptr.vmem [resolvable:$true] %s67
    %s69 = sshll.u32 %s1, 4
    %s70 = int_to_ptr.hbm [resolvable:$true] %s69
    %72 = dma.vmem_to_hbm [thread:$0]  %s68, 128, %s70, [#allocation1]
    %74 = dma.done [#allocation1], 128
    %75 = vsyncpa [#allocation1], 1

// kernel: _lambda_.23
$region0: #{_lambda_.23}
  #allocation0 [shape = 'u32[]', space=smem, size = 0x4, offset = 0x4, fixed_abs, tag = 'smem constant byte address 0x4 - core index']
  #allocation1 [shape = 'u32[72,128]{1,0:T(1,128)}', space=vmem, size = 0x9000, scoped, tag = 'internal scratch']
  %s0 = inlined_call_operand.vmem [shape: bf16[128,144], index: 0, kind: input, shape index: {}]
  %s1 = inlined_call_operand.vmem [shape: bf16[144,512], index: 1, kind: input, shape index: {}]
  %s2 = inlined_call_operand.vmem [shape: f32[1,512], index: 2, kind: input, shape index: {}]
  %s3 = inlined_call_operand.vmem [shape: bf16[128,512], index: 3, kind: output, shape index: {}]
  %s4 = sld [smem:[#allocation0]]
  $region117: #{_lambda_.23} parent=0
    _
  %s6 = ssub.s32 1, %s4
  %s7 = scalar_select 0, %s6, %s4
  $region1: #{_lambda_.23} parent=0
    #allocation2 [shape = 'u8[147456]{0}', space=vmem, size = 0x24000, scoped, tag = 'input window, operand 1']
    #allocation3 [shape = 'u8[131072]{0}', space=vmem, size = 0x20000, scoped, tag = 'output window, operand 0']
    loop: start=0, step=1, limit=4
    $region2: #{_lambda_.23} parent=1 // loop_pre_header
      _
    $region3: #{_lambda_.23} parent=1 // loop_header
      %s9 = sphi 0, %s13
      %p10 = scmp.ge.s32.totalorder %s9, 4
      %s16 = sphi 0, %s28
      %s17 = sphi 0, %s24
      %s18 = sphi 0, %s16
      %s19 = sphi 0, %s17
      %s20 = sphi 0, %s18
      %s21 = sphi 0, %s19
      %s31 = sphi 0, %s33
      %s34 = sphi 0, %s31
      %s35 = sphi 0, %s34
      %s51 = sphi 0, %s35
      %s57 = sphi 0, %s59
      %s60 = sphi 0, %s57
      %s61 = sphi 0, %s60
      %s77 = sphi 0, %s61
      %s83 = sphi 0, %s85
      %s86 = sphi 0, %s83
      %s87 = sphi 0, %s86
      %s103 = sphi 0, %s87
      %s111 = sphi 0, %s113
      %s114 = sphi 0, %s111
      %s115 = sphi 0, %s114
      %s131 = sphi 0, %s115
    $region4: #{_lambda_.23} parent=1 // loop_header_branch
      %12 = sbr.rel (%p10) target = $region8
    $region5: #{_lambda_.23} parent=1 // loop_body
      %s14 = ssub.s32 %s9, 1
      %s15 = ssub.s32 %s9, 2
      %s22 = sadd.s32 1, %s17
      %p23 = scmp.ge.s32.totalorder %s22, 2
      %s24 = scalar_select %p23, 0, %s22
      %s25 = sadd.s32 1, %s16
      %s26 = scalar_select %p23, %s25, %s16
      %p27 = scmp.ge.s32.totalorder %s26, 1
      %s28 = scalar_select %p27, 0, %s26
      %s29 = ssub.s32 %s16, %s28
      %p30 = scmp.eq.s32.totalorder %s29, 0
      %s32 = sadd.s32 %s31, 1
      %s33 = scalar_select %p30, %s31, %s32
      %p36 = pneg %p30
      %p37 = scmp.eq.s32.totalorder %s9, 1
      %p38 = por %p36, %p37
      %p39 = scmp.ne.s32.totalorder %s31, %s34
      %p40 = scmp.eq.s32.totalorder %s9, 0
      %p41 = por %p39, %p40
      %p42 = scmp.ne.s32.totalorder %s31, %s34
      %p43 = scmp.eq.s32.totalorder %s14, 1
      %p44 = por %p42, %p43
      %p45 = scmp.ne.s32.totalorder %s34, %s35
      %p46 = scmp.eq.s32.totalorder %s14, 0
      %p47 = por %p45, %p46
      %p48 = scmp.ne.s32.totalorder %s34, %s35
      %p49 = scmp.eq.s32.totalorder %s15, 1
      %p50 = por %p48, %p49
      %p52 = scmp.ne.s32.totalorder %s35, %s51
      %p53 = scmp.eq.s32.totalorder %s15, 0
      %p54 = por %p52, %p53
      %s55 = ssub.s32 %s17, %s24
      %p56 = scmp.eq.s32.totalorder %s55, 0
      %s58 = sadd.s32 %s57, 1
      %s59 = scalar_select %p56, %s57, %s58
      %p62 = pneg %p56
      %p63 = scmp.eq.s32.totalorder %s9, 1
      %p64 = por %p62, %p63
      %p65 = scmp.ne.s32.totalorder %s57, %s60
      %p66 = scmp.eq.s32.totalorder %s9, 0
      %p67 = por %p65, %p66
      %p68 = scmp.ne.s32.totalorder %s57, %s60
      %p69 = scmp.eq.s32.totalorder %s14, 1
      %p70 = por %p68, %p69
      %p71 = scmp.ne.s32.totalorder %s60, %s61
      %p72 = scmp.eq.s32.totalorder %s14, 0
      %p73 = por %p71, %p72
      %p74 = scmp.ne.s32.totalorder %s60, %s61
      %p75 = scmp.eq.s32.totalorder %s15, 1
      %p76 = por %p74, %p75
      %p78 = scmp.ne.s32.totalorder %s61, %s77
      %p79 = scmp.eq.s32.totalorder %s15, 0
      %p80 = por %p78, %p79
      %s81 = ssub.s32 %s17, %s24
      %p82 = scmp.eq.s32.totalorder %s81, 0
      %s84 = sadd.s32 %s83, 1
      %s85 = scalar_select %p82, %s83, %s84
      %p88 = pneg %p82
      %p89 = scmp.eq.s32.totalorder %s9, 1
      %p90 = por %p88, %p89
      %p91 = scmp.ne.s32.totalorder %s83, %s86
      %p92 = scmp.eq.s32.totalorder %s9, 0
      %p93 = por %p91, %p92
      %p94 = scmp.ne.s32.totalorder %s83, %s86
      %p95 = scmp.eq.s32.totalorder %s14, 1
      %p96 = por %p94, %p95
      %p97 = scmp.ne.s32.totalorder %s86, %s87
      %p98 = scmp.eq.s32.totalorder %s14, 0
      %p99 = por %p97, %p98
      %p100 = scmp.ne.s32.totalorder %s86, %s87
      %p101 = scmp.eq.s32.totalorder %s15, 1
      %p102 = por %p100, %p101
      %p104 = scmp.ne.s32.totalorder %s87, %s103
      %p105 = scmp.eq.s32.totalorder %s15, 0
      %p106 = por %p104, %p105
      %s107 = ssub.s32 %s16, %s28
      %s108 = ssub.s32 %s17, %s24
      %s109 = sor.u32 %s107, %s108
      %p110 = scmp.eq.s32.totalorder %s109, 0
      %s112 = sadd.s32 %s111, 1
      %s113 = scalar_select %p110, %s111, %s112
      %p116 = pneg %p110
      %p117 = scmp.eq.s32.totalorder %s9, 1
      %p118 = por %p116, %p117
      %p119 = scmp.ne.s32.totalorder %s111, %s114
      %p120 = scmp.eq.s32.totalorder %s9, 0
      %p121 = por %p119, %p120
      %p122 = scmp.ne.s32.totalorder %s111, %s114
      %p123 = scmp.eq.s32.totalorder %s14, 1
      %p124 = por %p122, %p123
      %p125 = scmp.ne.s32.totalorder %s114, %s115
      %p126 = scmp.eq.s32.totalorder %s14, 0
      %p127 = por %p125, %p126
      %p128 = scmp.ne.s32.totalorder %s114, %s115
      %p129 = scmp.eq.s32.totalorder %s15, 1
      %p130 = por %p128, %p129
      %p132 = scmp.ne.s32.totalorder %s115, %s131
      %p133 = scmp.eq.s32.totalorder %s15, 0
      %p134 = por %p132, %p133
      %p135 = scmp.le.s32.totalorder 1, %s9
      %p136 = scmp.lt.s32.totalorder %s9, 3
      %p137 = pnand %p135, %p136
      %p138 = pneg %p137
      // Predicated region
      $region9: #{_lambda_.23} parent=5 // pred_check
        _
      $region10: #{_lambda_.23} parent=5 // pred_check_branch
        %140 = sbr.rel (%p137) target = $region12
      $region11: #{_lambda_.23} parent=5 // pred_region
        %s141 = ssub.s32 %s9, 1
        // Predicated region
        $region13: #{_lambda_.23} parent=11 // pred_check
          %p142 = pneg %p47
        $region14: #{_lambda_.23} parent=11 // pred_check_branch
          %144 = sbr.rel (%p142) target = $region16
        $region15: #{_lambda_.23} parent=11 // pred_region
          %s145 = smul.u32 16, %s18
          %p146 = scmp.lt.s32.totalorder %s145, 15
          %s147 = scalar_select %p146, %s145, 15
          %s148 = smul.addr %s147, 2
          %s149 = smul.addr %s148, 4
          %s150 = scalar_lea.vmem %s0, %s149
          %s151 = smul.u32 16, %s18
        $region16: #{_lambda_.23} parent=11 // pred_fallthru
          _
      $region12: #{_lambda_.23} parent=5 // pred_fallthru
        _
      %p152 = scmp.lt.s32.totalorder %s9, 2
      // Predicated region
      $region17: #{_lambda_.23} parent=5 // pred_check
        %p153 = pneg %p152
      $region18: #{_lambda_.23} parent=5 // pred_check_branch
        %155 = sbr.rel (%p153) target = $region20
      $region19: #{_lambda_.23} parent=5 // pred_region
        // Predicated region
        $region21: #{_lambda_.23} parent=19 // pred_check
          %p156 = pneg %p67
        $region22: #{_lambda_.23} parent=19 // pred_check_branch
          %158 = sbr.rel (%p156) target = $region24
        $region23: #{_lambda_.23} parent=19 // pred_region
          %s159 = sand.u32 %s57, 1
          %s160 = sand.u32 %s57, 1
          %s161 = smul.addr %s160, 144
          %s162 = scalar_lea.vmem [#allocation2], %s161
          %s163 = smul.u32 2, %s17
          %s164 = smul.addr %s163, 4
          %s165 = scalar_lea.vmem %s1, %s164
          // Predicated region
          $region25: #{_lambda_.23} parent=23 // pred_check
            _
          $region26: #{_lambda_.23} parent=23 // pred_check_branch
            %167 = sbr.rel (0) target = $region28
          $region27: #{_lambda_.23} parent=23 // pred_region
            // Predicated region
            $region29: #{_lambda_.23} parent=27 // pred_check
              _
            $region30: #{_lambda_.23} parent=27 // pred_check_branch
              %169 = sbr.rel (0) target = $region32
            $region31: #{_lambda_.23} parent=27 // pred_region
              // Predicated region
              $region44: #{_lambda_.23} parent=31 // pred_check
                _
              $region45: #{_lambda_.23} parent=31 // pred_check_branch
                %219 = sbr.rel (0) target = $region47
              $region46: #{_lambda_.23} parent=31 // pred_region
                loop: start=0, step=1, limit=1
                $region48: #{_lambda_.23} parent=46 // loop_pre_header
                  _
                $region49: #{_lambda_.23} parent=46 // loop_header
                  %s221 = sphi 0, %s225
                  %p222 = scmp.ge.s32.totalorder %s221, 1
                  %s226 = sphi %s165, %s165
                  %s227 = sphi %s162, %s162
                $region50: #{_lambda_.23} parent=46 // loop_header_branch
                  %224 = sbr.rel (%p222) target = $region54
                $region51: #{_lambda_.23} parent=46 // loop_body
                  %v228 = vld [vmem:[%s226] sm:$0xff]
                  %229 = vst [vmem:[%s227] sm:$0xff] %v228
                  %v230 = vld [vmem:[%s226 + $0x10] sm:$0xff]
                  %231 = vst [vmem:[%s227 + $0x8] sm:$0xff] %v230
                  %v232 = vld [vmem:[%s226 + $0x20] sm:$0xff]
                  %233 = vst [vmem:[%s227 + $0x10] sm:$0xff] %v232
                  %v234 = vld [vmem:[%s226 + $0x30] sm:$0xff]
                  %235 = vst [vmem:[%s227 + $0x18] sm:$0xff] %v234
                  %v236 = vld [vmem:[%s226 + $0x40] sm:$0xff]
                  %237 = vst [vmem:[%s227 + $0x20] sm:$0xff] %v236
                  %v238 = vld [vmem:[%s226 + $0x50] sm:$0xff]
                  %239 = vst [vmem:[%s227 + $0x28] sm:$0xff] %v238
                  %v240 = vld [vmem:[%s226 + $0x60] sm:$0xff]
                  %241 = vst [vmem:[%s227 + $0x30] sm:$0xff] %v240
                  %v242 = vld [vmem:[%s226 + $0x70] sm:$0xff]
                  %243 = vst [vmem:[%s227 + $0x38] sm:$0xff] %v242
                  %v244 = vld [vmem:[%s226 + $0x80] sm:$0xff]
                  %245 = vst [vmem:[%s227 + $0x40] sm:$0xff] %v244
                  %v246 = vld [vmem:[%s226 + $0x90] sm:$0xff]
                  %247 = vst [vmem:[%s227 + $0x48] sm:$0xff] %v246
                  %v248 = vld [vmem:[%s226 + $0xa0] sm:$0xff]
                  %249 = vst [vmem:[%s227 + $0x50] sm:$0xff] %v248
                  %v250 = vld [vmem:[%s226 + $0xb0] sm:$0xff]
                  %251 = vst [vmem:[%s227 + $0x58] sm:$0xff] %v250
                  %v252 = vld [vmem:[%s226 + $0xc0] sm:$0xff]
                  %253 = vst [vmem:[%s227 + $0x60] sm:$0xff] %v252
                  %v254 = vld [vmem:[%s226 + $0xd0] sm:$0xff]
                  %255 = vst [vmem:[%s227 + $0x68] sm:$0xff] %v254
                  %v256 = vld [vmem:[%s226 + $0xe0] sm:$0xff]
                  %257 = vst [vmem:[%s227 + $0x70] sm:$0xff] %v256
                  %v258 = vld [vmem:[%s226 + $0xf0] sm:$0xff]
                  %259 = vst [vmem:[%s227 + $0x78] sm:$0xff] %v258
                  %v260 = vld [vmem:[%s226 + $0x100] sm:$0xff]
                  %261 = vst [vmem:[%s227 + $0x80] sm:$0xff] %v260
                  %v262 = vld [vmem:[%s226 + $0x110] sm:$0xff]
                  %263 = vst [vmem:[%s227 + $0x88] sm:$0xff] %v262
                $region52: #{_lambda_.23} parent=46 // loop_footer
                  %s225 = sadd.s32 1, %s221
                $region53: #{_lambda_.23} parent=46 // loop_footer_branch
                  %220 = sbr.rel target = $region49
                $region54: #{_lambda_.23} parent=46 // loop_exit
                  _
              $region47: #{_lambda_.23} parent=31 // pred_fallthru
                _
              // Predicated region
              $region55: #{_lambda_.23} parent=31 // pred_check
                _
              $region56: #{_lambda_.23} parent=31 // pred_check_branch
                %265 = sbr.rel target = $region58
              $region57: #{_lambda_.23} parent=31 // pred_region
                _
              $region58: #{_lambda_.23} parent=31 // pred_fallthru
                _
            $region32: #{_lambda_.23} parent=27 // pred_fallthru
              _
            // Predicated region
            $region33: #{_lambda_.23} parent=27 // pred_check
              _
            $region34: #{_lambda_.23} parent=27 // pred_check_branch
              %171 = sbr.rel target = $region36
            $region35: #{_lambda_.23} parent=27 // pred_region
              %s173 = ssub.s32 256, 1
              loop: start=0, step=1, limit=1
              $region37: #{_lambda_.23} parent=35 // loop_pre_header
                _
              $region38: #{_lambda_.23} parent=35 // loop_header
                %s175 = sphi 0, %s179
                %p176 = scmp.ge.s32.totalorder %s175, 1
                %s180 = sphi %s165, %s165
                %s181 = sphi %s162, %s162
              $region39: #{_lambda_.23} parent=35 // loop_header_branch
                %178 = sbr.rel (%p176) target = $region43
              $region40: #{_lambda_.23} parent=35 // loop_body
                %v182 = vld [vmem:[%s180] sm:%s173]
                %183 = vst [vmem:[%s181] sm:%s173] %v182
                %v184 = vld [vmem:[%s180 + $0x10] sm:%s173]
                %185 = vst [vmem:[%s181 + $0x8] sm:%s173] %v184
                %v186 = vld [vmem:[%s180 + $0x20] sm:%s173]
                %187 = vst [vmem:[%s181 + $0x10] sm:%s173] %v186
                %v188 = vld [vmem:[%s180 + $0x30] sm:%s173]
                %189 = vst [vmem:[%s181 + $0x18] sm:%s173] %v188
                %v190 = vld [vmem:[%s180 + $0x40] sm:%s173]
                %191 = vst [vmem:[%s181 + $0x20] sm:%s173] %v190
                %v192 = vld [vmem:[%s180 + $0x50] sm:%s173]
                %193 = vst [vmem:[%s181 + $0x28] sm:%s173] %v192
                %v194 = vld [vmem:[%s180 + $0x60] sm:%s173]
                %195 = vst [vmem:[%s181 + $0x30] sm:%s173] %v194
                %v196 = vld [vmem:[%s180 + $0x70] sm:%s173]
                %197 = vst [vmem:[%s181 + $0x38] sm:%s173] %v196
                %v198 = vld [vmem:[%s180 + $0x80] sm:%s173]
                %199 = vst [vmem:[%s181 + $0x40] sm:%s173] %v198
                %v200 = vld [vmem:[%s180 + $0x90] sm:%s173]
                %201 = vst [vmem:[%s181 + $0x48] sm:%s173] %v200
                %v202 = vld [vmem:[%s180 + $0xa0] sm:%s173]
                %203 = vst [vmem:[%s181 + $0x50] sm:%s173] %v202
                %v204 = vld [vmem:[%s180 + $0xb0] sm:%s173]
                %205 = vst [vmem:[%s181 + $0x58] sm:%s173] %v204
                %v206 = vld [vmem:[%s180 + $0xc0] sm:%s173]
                %207 = vst [vmem:[%s181 + $0x60] sm:%s173] %v206
                %v208 = vld [vmem:[%s180 + $0xd0] sm:%s173]
                %209 = vst [vmem:[%s181 + $0x68] sm:%s173] %v208
                %v210 = vld [vmem:[%s180 + $0xe0] sm:%s173]
                %211 = vst [vmem:[%s181 + $0x70] sm:%s173] %v210
                %v212 = vld [vmem:[%s180 + $0xf0] sm:%s173]
                %213 = vst [vmem:[%s181 + $0x78] sm:%s173] %v212
                %v214 = vld [vmem:[%s180 + $0x100] sm:%s173]
                %215 = vst [vmem:[%s181 + $0x80] sm:%s173] %v214
                %v216 = vld [vmem:[%s180 + $0x110] sm:%s173]
                %217 = vst [vmem:[%s181 + $0x88] sm:%s173] %v216
              $region41: #{_lambda_.23} parent=35 // loop_footer
                %s179 = sadd.s32 1, %s175
              $region42: #{_lambda_.23} parent=35 // loop_footer_branch
                %174 = sbr.rel target = $region38
              $region43: #{_lambda_.23} parent=35 // loop_exit
                _
            $region36: #{_lambda_.23} parent=27 // pred_fallthru
              _
          $region28: #{_lambda_.23} parent=23 // pred_fallthru
            _
          %266 = vnop
        $region24: #{_lambda_.23} parent=19 // pred_fallthru
          _
        // Predicated region
        $region59: #{_lambda_.23} parent=19 // pred_check
          %p267 = pneg %p93
        $region60: #{_lambda_.23} parent=19 // pred_check_branch
          %269 = sbr.rel (%p267) target = $region62
        $region61: #{_lambda_.23} parent=19 // pred_region
          %s270 = smul.u32 2, %s17
          %p271 = scmp.lt.s32.totalorder %s270, 3
          %s272 = scalar_select %p271, %s270, 3
          %s273 = scalar_lea.vmem %s2, %s272
          %s274 = smul.u32 2, %s17
        $region62: #{_lambda_.23} parent=19 // pred_fallthru
          _
      $region20: #{_lambda_.23} parent=5 // pred_fallthru
        _
      %p275 = scmp.le.s32.totalorder 1, %s9
      %p276 = scmp.lt.s32.totalorder %s9, 3
      %p277 = pnand %p275, %p276
      %p278 = pneg %p277
      // Predicated region
      $region63: #{_lambda_.23} parent=5 // pred_check
        _
      $region64: #{_lambda_.23} parent=5 // pred_check_branch
        %280 = sbr.rel (%p277) target = $region66
      $region65: #{_lambda_.23} parent=5 // pred_region
        %s281 = ssub.s32 %s9, 1
        %s282 = sand.u32 %s60, 1
        %s283 = sand.u32 %s60, 1
        %s284 = smul.addr %s283, 144
        %s285 = scalar_lea.vmem [#allocation2], %s284
        // Predicated region
        $region67: #{_lambda_.23} parent=65 // pred_check
          %p286 = pneg %p73
        $region68: #{_lambda_.23} parent=65 // pred_check_branch
          %288 = sbr.rel (%p286) target = $region70
        $region69: #{_lambda_.23} parent=65 // pred_region
          _
        $region70: #{_lambda_.23} parent=65 // pred_fallthru
          _
        %s289 = smul.u32 16, %s18
        %p290 = scmp.lt.s32.totalorder %s289, 15
        %s291 = scalar_select %p290, %s289, 15
        %s292 = smul.addr %s291, 2
        %s293 = smul.addr %s292, 4
        %s294 = scalar_lea.vmem %s0, %s293
        %p295 = pneg %p47
        %p296 = pneg %p44
        %s297 = sand.u32 %s60, 1
        %s298 = sand.u32 %s60, 1
        %s299 = smul.addr %s298, 144
        %s300 = scalar_lea.vmem [#allocation2], %s299
        %p301 = pneg %p73
        %p302 = pneg %p70
        %s303 = smul.u32 2, %s19
        %p304 = scmp.lt.s32.totalorder %s303, 3
        %s305 = scalar_select %p304, %s303, 3
        %s306 = scalar_lea.vmem %s2, %s305
        %p307 = pneg %p99
        %p308 = pneg %p96
        %p309 = pneg %p127
        %p310 = pneg %p124
        %s311 = sand.u32 %s114, 1
        %s312 = sand.u32 %s114, 1
        %s313 = smul.addr %s312, 128
        %s314 = scalar_lea.vmem [#allocation3], %s313
        %s315 = smul.u32 16, %s18
        %p316 = scmp.lt.s32.totalorder %s315, 15
        %s317 = scalar_select %p316, %s315, 15
        %s318 = smul.addr %s317, 2
        %s319 = smul.addr %s318, 4
        %s320 = scalar_lea.vmem %s0, %s319
        %s321 = smul.u32 16, %s18
        %s322 = smul.u32 2, %s19
        %s323 = smul.u32 2, %s19
        %p324 = scmp.lt.s32.totalorder %s323, 3
        %s325 = scalar_select %p324, %s323, 3
        %s326 = scalar_lea.vmem %s2, %s325
        %s327 = smul.u32 2, %s19
        %s328 = smul.u32 16, %s18
        %s329 = smul.u32 2, %s19
        %v331 = vld [vmem:[%s320] sm:$0xff]
        %v332 = vld [vmem:[%s320 + $0x8] sm:$0xff]
        %v333 = vld [vmem:[%s320 + $0x10] sm:$0xff]
        %v334 = vld [vmem:[%s320 + $0x18] sm:$0xff]
        %v335 = vld [vmem:[%s320 + $0x20] sm:$0xff]
        %v336 = vld [vmem:[%s320 + $0x28] sm:$0xff]
        %v337 = vld [vmem:[%s320 + $0x30] sm:$0xff]
        %v338 = vld [vmem:[%s320 + $0x38] sm:$0xff]
        %v339 = vld [vmem:[%s320 + $0x40] sm:$0xff]
        %v340 = vld [vmem:[%s320 + $0x48] sm:$0xff]
        %v341 = vld [vmem:[%s320 + $0x50] sm:$0xff]
        %v342 = vld [vmem:[%s320 + $0x58] sm:$0xff]
        %v343 = vld [vmem:[%s320 + $0x60] sm:$0xff]
        %v344 = vld [vmem:[%s320 + $0x68] sm:$0xff]
        %v345 = vld [vmem:[%s320 + $0x70] sm:$0xff]
        %v346 = vld [vmem:[%s320 + $0x78] sm:$0xff]
        %v347 = vld [vmem:[%s285] sm:$0xff]
        %v348 = vld [vmem:[%s285 + $0x8] sm:$0xff]
        %v349 = vld [vmem:[%s285 + $0x10] sm:$0xff]
        %v350 = vld [vmem:[%s285 + $0x18] sm:$0xff]
        %v351 = vld [vmem:[%s285 + $0x20] sm:$0xff]
        %v352 = vld [vmem:[%s285 + $0x28] sm:$0xff]
        %v353 = vld [vmem:[%s285 + $0x30] sm:$0xff]
        %v354 = vld [vmem:[%s285 + $0x38] sm:$0xff]
        %v355 = vld [vmem:[%s285 + $0x40] sm:$0xff]
        %v356 = vld [vmem:[%s285 + $0x48] sm:$0xff]
        %v357 = vld [vmem:[%s285 + $0x50] sm:$0xff]
        %v358 = vld [vmem:[%s285 + $0x58] sm:$0xff]
        %v359 = vld [vmem:[%s285 + $0x60] sm:$0xff]
        %v360 = vld [vmem:[%s285 + $0x68] sm:$0xff]
        %v361 = vld [vmem:[%s285 + $0x70] sm:$0xff]
        %v362 = vld [vmem:[%s285 + $0x78] sm:$0xff]
        %v363 = vld [vmem:[%s285 + $0x80] sm:$0xff]
        %v364 = vld [vmem:[%s285 + $0x88] sm:$0xff]
        %v365 = vld [vmem:[%s326] sm:$0x3]
        %v367 = vperm.slane %v365, 0
        %v368 = vperm.slane %v365, 1
        %v387 = vunpack.c.l.b16 %v331
        %v388 = vunpack.c.h.b16 %v331
        %v389 = vunpack.c.l.b16 %v332
        %v390 = vunpack.c.h.b16 %v332
        %v391 = vunpack.c.l.b16 %v333
        %v392 = vunpack.c.h.b16 %v333
        %v393 = vunpack.c.l.b16 %v334
        %v394 = vunpack.c.h.b16 %v334
        %v395 = vunpack.c.l.b16 %v335
        %v396 = vunpack.c.h.b16 %v335
        %v397 = vunpack.c.l.b16 %v336
        %v398 = vunpack.c.h.b16 %v336
        %v399 = vunpack.c.l.b16 %v337
        %v400 = vunpack.c.h.b16 %v337
        %v401 = vunpack.c.l.b16 %v338
        %v402 = vunpack.c.h.b16 %v338
        %v403 = vunpack.c.l.b16 %v339
        %v404 = vunpack.c.h.b16 %v339
        %v405 = vunpack.c.l.b16 %v340
        %v406 = vunpack.c.h.b16 %v340
        %v407 = vunpack.c.l.b16 %v341
        %v408 = vunpack.c.h.b16 %v341
        %v409 = vunpack.c.l.b16 %v342
        %v410 = vunpack.c.h.b16 %v342
        %v411 = vunpack.c.l.b16 %v343
        %v412 = vunpack.c.h.b16 %v343
        %v413 = vunpack.c.l.b16 %v344
        %v414 = vunpack.c.h.b16 %v344
        %v415 = vunpack.c.l.b16 %v345
        %v416 = vunpack.c.h.b16 %v345
        %v417 = vunpack.c.l.b16 %v346
        %v418 = vunpack.c.h.b16 %v346
        %v419 = vpack.c.b16 %v389, %v387
        %v420 = vpack.c.b16 %v390, %v388
        %v421 = vpack.c.b16 %v393, %v391
        %v422 = vpack.c.b16 %v394, %v392
        %v423 = vpack.c.b16 %v397, %v395
        %v424 = vpack.c.b16 %v398, %v396
        %v425 = vpack.c.b16 %v401, %v399
        %v426 = vpack.c.b16 %v402, %v400
        %v427 = vpack.c.b16 %v405, %v403
        %v428 = vpack.c.b16 %v406, %v404
        %v429 = vpack.c.b16 %v409, %v407
        %v430 = vpack.c.b16 %v410, %v408
        %v431 = vpack.c.b16 %v413, %v411
        %v432 = vpack.c.b16 %v414, %v412
        %v433 = vpack.c.b16 %v417, %v415
        %v434 = vpack.c.b16 %v418, %v416
        %v461 = vunpack.c.l.b16 %v347
        %v462 = vunpack.c.h.b16 %v347
        %v463 = vunpack.c.l.b16 %v348
        %v464 = vunpack.c.h.b16 %v348
        %v465 = vunpack.c.l.b16 %v349
        %v466 = vunpack.c.h.b16 %v349
        %v467 = vunpack.c.l.b16 %v350
        %v468 = vunpack.c.h.b16 %v350
        %v469 = vunpack.c.l.b16 %v351
        %v470 = vunpack.c.h.b16 %v351
        %v471 = vunpack.c.l.b16 %v352
        %v472 = vunpack.c.h.b16 %v352
        %v473 = vunpack.c.l.b16 %v353
        %v474 = vunpack.c.h.b16 %v353
        %v475 = vunpack.c.l.b16 %v354
        %v476 = vunpack.c.h.b16 %v354
        %v477 = vunpack.c.l.b16 %v355
        %v478 = vunpack.c.h.b16 %v355
        %v479 = vunpack.c.l.b16 %v356
        %v480 = vunpack.c.h.b16 %v356
        %v481 = vunpack.c.l.b16 %v357
        %v482 = vunpack.c.h.b16 %v357
        %v483 = vunpack.c.l.b16 %v358
        %v484 = vunpack.c.h.b16 %v358
        %v485 = vunpack.c.l.b16 %v359
        %v486 = vunpack.c.h.b16 %v359
        %v487 = vunpack.c.l.b16 %v360
        %v488 = vunpack.c.h.b16 %v360
        %v489 = vunpack.c.l.b16 %v361
        %v490 = vunpack.c.h.b16 %v361
        %v491 = vunpack.c.l.b16 %v362
        %v492 = vunpack.c.h.b16 %v362
        %v493 = vunpack.c.l.b16 %v363
        %v494 = vunpack.c.h.b16 %v363
        %v495 = vunpack.c.l.b16 %v364
        %v496 = vunpack.c.h.b16 %v364
        %v497 = vpack.c.b16 %v463, %v461
        %v498 = vpack.c.b16 %v464, %v462
        %v499 = vpack.c.b16 %v467, %v465
        %v500 = vpack.c.b16 %v468, %v466
        %v501 = vpack.c.b16 %v471, %v469
        %v502 = vpack.c.b16 %v472, %v470
        %v503 = vpack.c.b16 %v475, %v473
        %v504 = vpack.c.b16 %v476, %v474
        %v505 = vpack.c.b16 %v479, %v477
        %v506 = vpack.c.b16 %v480, %v478
        %v507 = vpack.c.b16 %v483, %v481
        %v508 = vpack.c.b16 %v484, %v482
        %v509 = vpack.c.b16 %v487, %v485
        %v510 = vpack.c.b16 %v488, %v486
        %v511 = vpack.c.b16 %v491, %v489
        %v512 = vpack.c.b16 %v492, %v490
        %v513 = vpack.c.b16 %v495, %v493
        %v514 = vpack.c.b16 %v496, %v494
        %vm533 = vcmask 130048
        %v535 = vsel %vm533, %v420, 0
        %v538 = vsel %vm533, %v422, 0
        %v541 = vsel %vm533, %v424, 0
        %v544 = vsel %vm533, %v426, 0
        %v547 = vsel %vm533, %v428, 0
        %v550 = vsel %vm533, %v430, 0
        %v553 = vsel %vm533, %v432, 0
        %v556 = vsel %vm533, %v434, 0
        %558 = vmatpush.bf16.msra.mxu0 %v511
        %559 = vmatpush.bf16.msra.mxu0 %v509
        %560 = vmatpush.bf16.msra.mxu0 %v507
        %561 = vmatpush.bf16.msra.mxu0 %v505
        %562 = vmatpush.bf16.msra.mxu0 %v503
        %563 = vmatpush.bf16.msra.mxu0 %v501
        %564 = vmatpush.bf16.msra.mxu0 %v499
        %565 = vmatpush.bf16.msra.mxu0 %v497
        %566 = vmatmul.bf16.gmra.mxu0 %v419
        %v567 = vpop.f32.mrf.mxu0
        %v568 = vadd.f32 %v367, %v567
        %v569 = vpop.f32.mrf.mxu0
        %v570 = vadd.f32 %v367, %v569
        %571 = vmatmul.bf16.gmra.mxu0 %v421
        %v572 = vpop.f32.mrf.mxu0
        %v573 = vadd.f32 %v367, %v572
        %v574 = vpop.f32.mrf.mxu0
        %v575 = vadd.f32 %v367, %v574
        %576 = vmatmul.bf16.gmra.mxu0 %v423
        %v577 = vpop.f32.mrf.mxu0
        %v578 = vadd.f32 %v367, %v577
        %v579 = vpop.f32.mrf.mxu0
        %v580 = vadd.f32 %v367, %v579
        %581 = vmatmul.bf16.gmra.mxu0 %v425
        %v582 = vpop.f32.mrf.mxu0
        %v583 = vadd.f32 %v367, %v582
        %v584 = vpop.f32.mrf.mxu0
        %v585 = vadd.f32 %v367, %v584
        %586 = vmatmul.bf16.gmra.mxu0 %v427
        %v587 = vpop.f32.mrf.mxu0
        %v588 = vadd.f32 %v367, %v587
        %v589 = vpop.f32.mrf.mxu0
        %v590 = vadd.f32 %v367, %v589
        %591 = vmatmul.bf16.gmra.mxu0 %v429
        %v592 = vpop.f32.mrf.mxu0
        %v593 = vadd.f32 %v367, %v592
        %v594 = vpop.f32.mrf.mxu0
        %v595 = vadd.f32 %v367, %v594
        %596 = vmatmul.bf16.gmra.mxu0 %v431
        %v597 = vpop.f32.mrf.mxu0
        %v598 = vadd.f32 %v367, %v597
        %v599 = vpop.f32.mrf.mxu0
        %v600 = vadd.f32 %v367, %v599
        %601 = vmatmul.bf16.gmra.mxu0 %v433
        %v602 = vpop.f32.mrf.mxu0
        %v603 = vadd.f32 %v367, %v602
        %v604 = vpop.f32.mrf.mxu0
        %v605 = vadd.f32 %v367, %v604
        %606 = vdwg.mxu0
        %607 = vmatpush.bf16.msra.mxu0 0
        %608 = vmatpush.bf16.msra.mxu0 0
        %609 = vmatpush.bf16.msra.mxu0 0
        %610 = vmatpush.bf16.msra.mxu0 0
        %611 = vmatpush.bf16.msra.mxu0 0
        %612 = vmatpush.bf16.msra.mxu0 0
        %613 = vmatpush.bf16.msra.mxu0 0
        %614 = vmatpush.bf16.msra.mxu0 %v513
        %615 = vmatmul.bf16.gmra.mxu0 %v535
        %v616 = vpop.f32.mrf.mxu0
        %v617 = vadd.f32 %v568, %v616
        %v618 = vpop.f32.mrf.mxu0
        %v619 = vadd.f32 %v570, %v618
        %620 = vmatmul.bf16.gmra.mxu0 %v538
        %v621 = vpop.f32.mrf.mxu0
        %v622 = vadd.f32 %v573, %v621
        %v623 = vpop.f32.mrf.mxu0
        %v624 = vadd.f32 %v575, %v623
        %625 = vmatmul.bf16.gmra.mxu0 %v541
        %v626 = vpop.f32.mrf.mxu0
        %v627 = vadd.f32 %v578, %v626
        %v628 = vpop.f32.mrf.mxu0
        %v629 = vadd.f32 %v580, %v628
        %630 = vmatmul.bf16.gmra.mxu0 %v544
        %v631 = vpop.f32.mrf.mxu0
        %v632 = vadd.f32 %v583, %v631
        %v633 = vpop.f32.mrf.mxu0
        %v634 = vadd.f32 %v585, %v633
        %635 = vmatmul.bf16.gmra.mxu0 %v547
        %v636 = vpop.f32.mrf.mxu0
        %v637 = vadd.f32 %v588, %v636
        %v638 = vpop.f32.mrf.mxu0
        %v639 = vadd.f32 %v590, %v638
        %640 = vmatmul.bf16.gmra.mxu0 %v550
        %v641 = vpop.f32.mrf.mxu0
        %v642 = vadd.f32 %v593, %v641
        %v643 = vpop.f32.mrf.mxu0
        %v644 = vadd.f32 %v595, %v643
        %645 = vmatmul.bf16.gmra.mxu0 %v553
        %v646 = vpop.f32.mrf.mxu0
        %v647 = vadd.f32 %v598, %v646
        %v648 = vpop.f32.mrf.mxu0
        %v649 = vadd.f32 %v600, %v648
        %650 = vmatmul.bf16.gmra.mxu0 %v556
        %v651 = vpop.f32.mrf.mxu0
        %v652 = vadd.f32 %v603, %v651
        %v653 = vpop.f32.mrf.mxu0
        %v654 = vadd.f32 %v605, %v653
        %655 = vdwg.mxu0
        %656 = vmatpush.bf16.msra.mxu0 %v512
        %657 = vmatpush.bf16.msra.mxu0 %v510
        %658 = vmatpush.bf16.msra.mxu0 %v508
        %659 = vmatpush.bf16.msra.mxu0 %v506
        %660 = vmatpush.bf16.msra.mxu0 %v504
        %661 = vmatpush.bf16.msra.mxu0 %v502
        %662 = vmatpush.bf16.msra.mxu0 %v500
        %663 = vmatpush.bf16.msra.mxu0 %v498
        %664 = vmatmul.bf16.gmra.mxu0 %v419
        %v665 = vpop.f32.mrf.mxu0
        %v666 = vadd.f32 %v368, %v665
        %v667 = vpop.f32.mrf.mxu0
        %v668 = vadd.f32 %v368, %v667
        %669 = vmatmul.bf16.gmra.mxu0 %v421
        %v670 = vpop.f32.mrf.mxu0
        %v671 = vadd.f32 %v368, %v670
        %v672 = vpop.f32.mrf.mxu0
        %v673 = vadd.f32 %v368, %v672
        %674 = vmatmul.bf16.gmra.mxu0 %v423
        %v675 = vpop.f32.mrf.mxu0
        %v676 = vadd.f32 %v368, %v675
        %v677 = vpop.f32.mrf.mxu0
        %v678 = vadd.f32 %v368, %v677
        %679 = vmatmul.bf16.gmra.mxu0 %v425
        %v680 = vpop.f32.mrf.mxu0
        %v681 = vadd.f32 %v368, %v680
        %v682 = vpop.f32.mrf.mxu0
        %v683 = vadd.f32 %v368, %v682
        %684 = vmatmul.bf16.gmra.mxu0 %v427
        %v685 = vpop.f32.mrf.mxu0
        %v686 = vadd.f32 %v368, %v685
        %v687 = vpop.f32.mrf.mxu0
        %v688 = vadd.f32 %v368, %v687
        %689 = vmatmul.bf16.gmra.mxu0 %v429
        %v690 = vpop.f32.mrf.mxu0
        %v691 = vadd.f32 %v368, %v690
        %v692 = vpop.f32.mrf.mxu0
        %v693 = vadd.f32 %v368, %v692
        %694 = vmatmul.bf16.gmra.mxu0 %v431
        %v695 = vpop.f32.mrf.mxu0
        %v696 = vadd.f32 %v368, %v695
        %v697 = vpop.f32.mrf.mxu0
        %v698 = vadd.f32 %v368, %v697
        %699 = vmatmul.bf16.gmra.mxu0 %v433
        %v700 = vpop.f32.mrf.mxu0
        %v701 = vadd.f32 %v368, %v700
        %v702 = vpop.f32.mrf.mxu0
        %v703 = vadd.f32 %v368, %v702
        %704 = vdwg.mxu0
        %705 = vmatpush.bf16.msra.mxu0 0
        %706 = vmatpush.bf16.msra.mxu0 0
        %707 = vmatpush.bf16.msra.mxu0 0
        %708 = vmatpush.bf16.msra.mxu0 0
        %709 = vmatpush.bf16.msra.mxu0 0
        %710 = vmatpush.bf16.msra.mxu0 0
        %711 = vmatpush.bf16.msra.mxu0 0
        %712 = vmatpush.bf16.msra.mxu0 %v514
        %713 = vmatmul.bf16.gmra.mxu0 %v535
        %v714 = vpop.f32.mrf.mxu0
        %v715 = vadd.f32 %v666, %v714
        %v716 = vpop.f32.mrf.mxu0
        %v717 = vadd.f32 %v668, %v716
        %718 = vmatmul.bf16.gmra.mxu0 %v538
        %v719 = vpop.f32.mrf.mxu0
        %v720 = vadd.f32 %v671, %v719
        %v721 = vpop.f32.mrf.mxu0
        %v722 = vadd.f32 %v673, %v721
        %723 = vmatmul.bf16.gmra.mxu0 %v541
        %v724 = vpop.f32.mrf.mxu0
        %v725 = vadd.f32 %v676, %v724
        %v726 = vpop.f32.mrf.mxu0
        %v727 = vadd.f32 %v678, %v726
        %728 = vmatmul.bf16.gmra.mxu0 %v544
        %v729 = vpop.f32.mrf.mxu0
        %v730 = vadd.f32 %v681, %v729
        %v731 = vpop.f32.mrf.mxu0
        %v732 = vadd.f32 %v683, %v731
        %733 = vmatmul.bf16.gmra.mxu0 %v547
        %v734 = vpop.f32.mrf.mxu0
        %v735 = vadd.f32 %v686, %v734
        %v736 = vpop.f32.mrf.mxu0
        %v737 = vadd.f32 %v688, %v736
        %738 = vmatmul.bf16.gmra.mxu0 %v550
        %v739 = vpop.f32.mrf.mxu0
        %v740 = vadd.f32 %v691, %v739
        %v741 = vpop.f32.mrf.mxu0
        %v742 = vadd.f32 %v693, %v741
        %743 = vmatmul.bf16.gmra.mxu0 %v553
        %v744 = vpop.f32.mrf.mxu0
        %v745 = vadd.f32 %v696, %v744
        %v746 = vpop.f32.mrf.mxu0
        %v747 = vadd.f32 %v698, %v746
        %748 = vmatmul.bf16.gmra.mxu0 %v556
        %v749 = vpop.f32.mrf.mxu0
        %v750 = vadd.f32 %v701, %v749
        %v751 = vpop.f32.mrf.mxu0
        %v752 = vadd.f32 %v703, %v751
        %753 = vdwg.mxu0
        %v754 = vpack.c.bf16 %v715, %v617
        %v755 = vpack.c.bf16 %v717, %v619
        %v756 = vpack.c.bf16 %v720, %v622
        %v757 = vpack.c.bf16 %v722, %v624
        %v758 = vpack.c.bf16 %v725, %v627
        %v759 = vpack.c.bf16 %v727, %v629
        %v760 = vpack.c.bf16 %v730, %v632
        %v761 = vpack.c.bf16 %v732, %v634
        %v762 = vpack.c.bf16 %v735, %v637
        %v763 = vpack.c.bf16 %v737, %v639
        %v764 = vpack.c.bf16 %v740, %v642
        %v765 = vpack.c.bf16 %v742, %v644
        %v766 = vpack.c.bf16 %v745, %v647
        %v767 = vpack.c.bf16 %v747, %v649
        %v768 = vpack.c.bf16 %v750, %v652
        %v769 = vpack.c.bf16 %v752, %v654
        %770 = vst [vmem:[%s314] sm:$0xff] %v754
        %771 = vst [vmem:[%s314 + $0x8] sm:$0xff] %v755
        %772 = vst [vmem:[%s314 + $0x10] sm:$0xff] %v756
        %773 = vst [vmem:[%s314 + $0x18] sm:$0xff] %v757
        %774 = vst [vmem:[%s314 + $0x20] sm:$0xff] %v758
        %775 = vst [vmem:[%s314 + $0x28] sm:$0xff] %v759
        %776 = vst [vmem:[%s314 + $0x30] sm:$0xff] %v760
        %777 = vst [vmem:[%s314 + $0x38] sm:$0xff] %v761
        %778 = vst [vmem:[%s314 + $0x40] sm:$0xff] %v762
        %779 = vst [vmem:[%s314 + $0x48] sm:$0xff] %v763
        %780 = vst [vmem:[%s314 + $0x50] sm:$0xff] %v764
        %781 = vst [vmem:[%s314 + $0x58] sm:$0xff] %v765
        %782 = vst [vmem:[%s314 + $0x60] sm:$0xff] %v766
        %783 = vst [vmem:[%s314 + $0x68] sm:$0xff] %v767
        %784 = vst [vmem:[%s314 + $0x70] sm:$0xff] %v768
        %785 = vst [vmem:[%s314 + $0x78] sm:$0xff] %v769
        %s786 = sand.u32 %s114, 1
        %s787 = sand.u32 %s114, 1
        %s788 = smul.addr %s787, 128
        %s789 = scalar_lea.vmem [#allocation3], %s788
        // Predicated region
        $region71: #{_lambda_.23} parent=65 // pred_check
          %p790 = pneg %p124
        $region72: #{_lambda_.23} parent=65 // pred_check_branch
          %792 = sbr.rel (%p790) target = $region74
        $region73: #{_lambda_.23} parent=65 // pred_region
          %s793 = smul.u32 16, %s18
          %s794 = smul.u32 2, %s19
          %s795 = smul.addr %s793, 4
          %s796 = sadd.s32 %s794, %s795
          %s797 = smul.addr %s796, 4
          %s798 = scalar_lea.vmem %s3, %s797
          // Predicated region
          $region75: #{_lambda_.23} parent=73 // pred_check
            _
          $region76: #{_lambda_.23} parent=73 // pred_check_branch
            %800 = sbr.rel (0) target = $region78
          $region77: #{_lambda_.23} parent=73 // pred_region
            // Predicated region
            $region79: #{_lambda_.23} parent=77 // pred_check
              _
            $region80: #{_lambda_.23} parent=77 // pred_check_branch
              %802 = sbr.rel (0) target = $region82
            $region81: #{_lambda_.23} parent=77 // pred_region
              // Predicated region
              $region94: #{_lambda_.23} parent=81 // pred_check
                _
              $region95: #{_lambda_.23} parent=81 // pred_check_branch
                %848 = sbr.rel (0) target = $region97
              $region96: #{_lambda_.23} parent=81 // pred_region
                loop: start=0, step=1, limit=1
                $region98: #{_lambda_.23} parent=96 // loop_pre_header
                  _
                $region99: #{_lambda_.23} parent=96 // loop_header
                  %s850 = sphi 0, %s854
                  %p851 = scmp.ge.s32.totalorder %s850, 1
                  %s855 = sphi %s789, %s789
                  %s856 = sphi %s798, %s798
                $region100: #{_lambda_.23} parent=96 // loop_header_branch
                  %853 = sbr.rel (%p851) target = $region104
                $region101: #{_lambda_.23} parent=96 // loop_body
                  %v857 = vld [vmem:[%s855] sm:$0xff]
                  %858 = vst [vmem:[%s856] sm:$0xff] %v857
                  %v859 = vld [vmem:[%s855 + $0x8] sm:$0xff]
                  %860 = vst [vmem:[%s856 + $0x10] sm:$0xff] %v859
                  %v861 = vld [vmem:[%s855 + $0x10] sm:$0xff]
                  %862 = vst [vmem:[%s856 + $0x20] sm:$0xff] %v861
                  %v863 = vld [vmem:[%s855 + $0x18] sm:$0xff]
                  %864 = vst [vmem:[%s856 + $0x30] sm:$0xff] %v863
                  %v865 = vld [vmem:[%s855 + $0x20] sm:$0xff]
                  %866 = vst [vmem:[%s856 + $0x40] sm:$0xff] %v865
                  %v867 = vld [vmem:[%s855 + $0x28] sm:$0xff]
                  %868 = vst [vmem:[%s856 + $0x50] sm:$0xff] %v867
                  %v869 = vld [vmem:[%s855 + $0x30] sm:$0xff]
                  %870 = vst [vmem:[%s856 + $0x60] sm:$0xff] %v869
                  %v871 = vld [vmem:[%s855 + $0x38] sm:$0xff]
                  %872 = vst [vmem:[%s856 + $0x70] sm:$0xff] %v871
                  %v873 = vld [vmem:[%s855 + $0x40] sm:$0xff]
                  %874 = vst [vmem:[%s856 + $0x80] sm:$0xff] %v873
                  %v875 = vld [vmem:[%s855 + $0x48] sm:$0xff]
                  %876 = vst [vmem:[%s856 + $0x90] sm:$0xff] %v875
                  %v877 = vld [vmem:[%s855 + $0x50] sm:$0xff]
                  %878 = vst [vmem:[%s856 + $0xa0] sm:$0xff] %v877
                  %v879 = vld [vmem:[%s855 + $0x58] sm:$0xff]
                  %880 = vst [vmem:[%s856 + $0xb0] sm:$0xff] %v879
                  %v881 = vld [vmem:[%s855 + $0x60] sm:$0xff]
                  %882 = vst [vmem:[%s856 + $0xc0] sm:$0xff] %v881
                  %v883 = vld [vmem:[%s855 + $0x68] sm:$0xff]
                  %884 = vst [vmem:[%s856 + $0xd0] sm:$0xff] %v883
                  %v885 = vld [vmem:[%s855 + $0x70] sm:$0xff]
                  %886 = vst [vmem:[%s856 + $0xe0] sm:$0xff] %v885
                  %v887 = vld [vmem:[%s855 + $0x78] sm:$0xff]
                  %888 = vst [vmem:[%s856 + $0xf0] sm:$0xff] %v887
                $region102: #{_lambda_.23} parent=96 // loop_footer
                  %s854 = sadd.s32 1, %s850
                $region103: #{_lambda_.23} parent=96 // loop_footer_branch
                  %849 = sbr.rel target = $region99
                $region104: #{_lambda_.23} parent=96 // loop_exit
                  _
              $region97: #{_lambda_.23} parent=81 // pred_fallthru
                _
              // Predicated region
              $region105: #{_lambda_.23} parent=81 // pred_check
                _
              $region106: #{_lambda_.23} parent=81 // pred_check_branch
                %890 = sbr.rel target = $region108
              $region107: #{_lambda_.23} parent=81 // pred_region
                _
              $region108: #{_lambda_.23} parent=81 // pred_fallthru
                _
            $region82: #{_lambda_.23} parent=77 // pred_fallthru
              _
            // Predicated region
            $region83: #{_lambda_.23} parent=77 // pred_check
              _
            $region84: #{_lambda_.23} parent=77 // pred_check_branch
              %804 = sbr.rel target = $region86
            $region85: #{_lambda_.23} parent=77 // pred_region
              %s806 = ssub.s32 256, 1
              loop: start=0, step=1, limit=1
              $region87: #{_lambda_.23} parent=85 // loop_pre_header
                _
              $region88: #{_lambda_.23} parent=85 // loop_header
                %s808 = sphi 0, %s812
                %p809 = scmp.ge.s32.totalorder %s808, 1
                %s813 = sphi %s789, %s789
                %s814 = sphi %s798, %s798
              $region89: #{_lambda_.23} parent=85 // loop_header_branch
                %811 = sbr.rel (%p809) target = $region93
              $region90: #{_lambda_.23} parent=85 // loop_body
                %v815 = vld [vmem:[%s813] sm:%s806]
                %816 = vst [vmem:[%s814] sm:%s806] %v815
                %v817 = vld [vmem:[%s813 + $0x8] sm:%s806]
                %818 = vst [vmem:[%s814 + $0x10] sm:%s806] %v817
                %v819 = vld [vmem:[%s813 + $0x10] sm:%s806]
                %820 = vst [vmem:[%s814 + $0x20] sm:%s806] %v819
                %v821 = vld [vmem:[%s813 + $0x18] sm:%s806]
                %822 = vst [vmem:[%s814 + $0x30] sm:%s806] %v821
                %v823 = vld [vmem:[%s813 + $0x20] sm:%s806]
                %824 = vst [vmem:[%s814 + $0x40] sm:%s806] %v823
                %v825 = vld [vmem:[%s813 + $0x28] sm:%s806]
                %826 = vst [vmem:[%s814 + $0x50] sm:%s806] %v825
                %v827 = vld [vmem:[%s813 + $0x30] sm:%s806]
                %828 = vst [vmem:[%s814 + $0x60] sm:%s806] %v827
                %v829 = vld [vmem:[%s813 + $0x38] sm:%s806]
                %830 = vst [vmem:[%s814 + $0x70] sm:%s806] %v829
                %v831 = vld [vmem:[%s813 + $0x40] sm:%s806]
                %832 = vst [vmem:[%s814 + $0x80] sm:%s806] %v831
                %v833 = vld [vmem:[%s813 + $0x48] sm:%s806]
                %834 = vst [vmem:[%s814 + $0x90] sm:%s806] %v833
                %v835 = vld [vmem:[%s813 + $0x50] sm:%s806]
                %836 = vst [vmem:[%s814 + $0xa0] sm:%s806] %v835
                %v837 = vld [vmem:[%s813 + $0x58] sm:%s806]
                %838 = vst [vmem:[%s814 + $0xb0] sm:%s806] %v837
                %v839 = vld [vmem:[%s813 + $0x60] sm:%s806]
                %840 = vst [vmem:[%s814 + $0xc0] sm:%s806] %v839
                %v841 = vld [vmem:[%s813 + $0x68] sm:%s806]
                %842 = vst [vmem:[%s814 + $0xd0] sm:%s806] %v841
                %v843 = vld [vmem:[%s813 + $0x70] sm:%s806]
                %844 = vst [vmem:[%s814 + $0xe0] sm:%s806] %v843
                %v845 = vld [vmem:[%s813 + $0x78] sm:%s806]
                %846 = vst [vmem:[%s814 + $0xf0] sm:%s806] %v845
              $region91: #{_lambda_.23} parent=85 // loop_footer
                %s812 = sadd.s32 1, %s808
              $region92: #{_lambda_.23} parent=85 // loop_footer_branch
                %807 = sbr.rel target = $region88
              $region93: #{_lambda_.23} parent=85 // loop_exit
                _
            $region86: #{_lambda_.23} parent=77 // pred_fallthru
              _
          $region78: #{_lambda_.23} parent=73 // pred_fallthru
            _
          %891 = vnop
        $region74: #{_lambda_.23} parent=65 // pred_fallthru
          _
      $region66: #{_lambda_.23} parent=5 // pred_fallthru
        _
      %p892 = scmp.le.s32.totalorder 2, %s9
      // Predicated region
      $region109: #{_lambda_.23} parent=5 // pred_check
        %p893 = pneg %p892
      $region110: #{_lambda_.23} parent=5 // pred_check_branch
        %895 = sbr.rel (%p893) target = $region112
      $region111: #{_lambda_.23} parent=5 // pred_region
        %s896 = ssub.s32 %s9, 2
        // Predicated region
        $region113: #{_lambda_.23} parent=111 // pred_check
          %p897 = pneg %p130
        $region114: #{_lambda_.23} parent=111 // pred_check_branch
          %899 = sbr.rel (%p897) target = $region116
        $region115: #{_lambda_.23} parent=111 // pred_region
          %s900 = sand.u32 %s115, 1
          %s901 = sand.u32 %s115, 1
          %s902 = smul.addr %s901, 128
          %s903 = scalar_lea.vmem [#allocation3], %s902
        $region116: #{_lambda_.23} parent=111 // pred_fallthru
          _
      $region112: #{_lambda_.23} parent=5 // pred_fallthru
        _
    $region6: #{_lambda_.23} parent=1 // loop_footer
      %s13 = sadd.s32 1, %s9
    $region7: #{_lambda_.23} parent=1 // loop_footer_branch
      %8 = sbr.rel target = $region3
    $region8: #{_lambda_.23} parent=1 // loop_exit
      _

</llo_original>
